<compile_context>
chip_gen: v5e
topology: v5e:2x2
jax: 0.10.0
libtpu: 0.0.40
codegen_flags: <defaults>
</compile_context>

<pallas_src>
import functools

import jax
import jax.numpy as jnp
from jax.experimental import pallas as pl
from jax.experimental.pallas import tpu as pltpu

LANE_PAD = 128  # pad final logits lane width to one full vreg lane dim


# ----------------------------------------------------------------------------
# Fused kernel: input_linear + LSTM stack + fc head, everything VMEM-resident.
# ----------------------------------------------------------------------------
def _fused_lstm1d_kernel(*refs, seq_len, batch, hidden, num_layers):
    T, B, H = seq_len, batch, hidden
    x_ref = refs[0]                                   # (T*B, C) time-major
    layer_refs = refs[1:1 + 3 * num_layers]           # (w_x, bias, w_hh) per layer
    (fc1w_ref, fc1b_ref, fc2w_ref, fc2b_ref,
     o_ref, hseq_sc, flat_sc) = refs[1 + 3 * num_layers:]

    layer_in = x_ref[...]                             # layer-0 input (T*B, C)
    for l in range(num_layers):
        w_x_ref, b_ref, w_hh_ref = layer_refs[3 * l:3 * l + 3]

        # Hoisted input projection + bias: one matmul covers all T timesteps.
        gx = (jnp.dot(layer_in, w_x_ref[...],
                      preferred_element_type=jnp.float32) + b_ref[...])
        w_hh = w_hh_ref[...]                          # hoisted weight load

        h = jnp.zeros((B, H), jnp.float32)
        c = jnp.zeros((B, H), jnp.float32)
        last = (l == num_layers - 1)

        # Fully unrolled recurrence (T is small & static).
        for t in range(T):
            g = gx[t * B:(t + 1) * B, :]              # (B, 4H) gate order [i,f,o,g]
            if t > 0:                                 # h == 0 at t == 0
                g = g + jnp.dot(h, w_hh, preferred_element_type=jnp.float32)
            sig = jax.nn.sigmoid(g[:, :3 * H])        # i|f|o in ONE EUP pass
            i_g = sig[:, :H]
            f_g = sig[:, H:2 * H]
            o_g = sig[:, 2 * H:]
            g_g = jnp.tanh(g[:, 3 * H:])
            c = f_g * c + i_g * g_g
            h = o_g * jnp.tanh(c)
            if last:
                # batch-major flatten layout == torch out.reshape(B, -1)
                flat_sc[:, t * H:(t + 1) * H] = h
            else:
                # time-major (T*B, H): next layer's hoisted matmul input
                hseq_sc[t * B:(t + 1) * B, :] = h

        if not last:
            layer_in = hseq_sc[...]

    # fc head: Linear -> ReLU -> Linear  (dropout = identity in eval mode)
    z = jnp.dot(flat_sc[...], fc1w_ref[...],
                preferred_element_type=jnp.float32) + fc1b_ref[...]
    z = jnp.maximum(z, 0.0)
    z = jnp.dot(z, fc2w_ref[...],
                preferred_element_type=jnp.float32) + fc2b_ref[...]
    o_ref[...] = z.astype(o_ref.dtype)


def lstm1d_forward(kernel_params, x, *, hidden, num_classes, num_layers):
    """x: (B, C, T) float -> logits (B, num_classes)."""
    layers, (fc1_w, fc1_b, fc2_w, fc2_b) = kernel_params
    B, C, T = x.shape
    H = hidden

    # Glue only: (B, C, T) -> time-major (T*B, C).
    x_tb = jnp.transpose(x, (2, 0, 1)).reshape(T * B, C).astype(jnp.float32)

    args = [x_tb]
    for (w_x, b, w_hh) in layers:
        args.extend([w_x, b, w_hh])
    args.extend([fc1_w, fc1_b, fc2_w, fc2_b])

    kernel = functools.partial(_fused_lstm1d_kernel, seq_len=T, batch=B,
                               hidden=H, num_layers=num_layers)
    # TODO(synk): on v7x with non-trivial batch, add a batch grid axis with
    # dimension_semantics=("parallel",) so each TensorCore runs its own shard.
    out = pl.pallas_call(
        kernel,
        out_shape=jax.ShapeDtypeStruct((B, LANE_PAD), jnp.float32),
        in_specs=[pl.BlockSpec(a.shape, lambda: (0, 0)) for a in args],
        out_specs=pl.BlockSpec((B, LANE_PAD), lambda: (0, 0)),
        scratch_shapes=[
            pltpu.VMEM((T * B, H), jnp.float32),   # intermediate layer outputs
            pltpu.VMEM((B, T * H), jnp.float32),   # last layer, flatten layout
        ],
    )(*args)
    return out[:, :num_classes]


# ----------------------------------------------------------------------------
# Parameters: PyTorch-shaped init, then wrapper-side re-layout for the kernel.
# ----------------------------------------------------------------------------
def init_torch_params(key, input_channels, seq_len, num_classes, hidden,
                      num_layers):
    """Deterministic params in PyTorch layouts (weight: (out, in))."""
    def uniform(k, shape, fan_in):
        bound = 1.0 / jnp.sqrt(jnp.float32(fan_in))
        return jax.random.uniform(k, shape, jnp.float32, -bound, bound)

    keys = jax.random.split(key, 2 + 4 * num_layers + 4)
    p = {}
    p["in_w"] = uniform(keys[0], (hidden, input_channels), input_channels)
    p["in_b"] = uniform(keys[1], (hidden,), input_channels)
    for l in range(num_layers):
        k = keys[2 + 4 * l:2 + 4 * (l + 1)]
        p[f"w_ih_{l}"] = uniform(k[0], (4 * hidden, hidden), hidden)
        p[f"w_hh_{l}"] = uniform(k[1], (4 * hidden, hidden), hidden)
        p[f"b_ih_{l}"] = uniform(k[2], (4 * hidden,), hidden)
        p[f"b_hh_{l}"] = uniform(k[3], (4 * hidden,), hidden)
    kf = keys[2 + 4 * num_layers:]
    fc_in = hidden * seq_len
    p["fc1_w"] = uniform(kf[0], (256, fc_in), fc_in)
    p["fc1_b"] = uniform(kf[1], (256,), fc_in)
    p["fc2_w"] = uniform(kf[2], (num_classes, 256), 256)
    p["fc2_b"] = uniform(kf[3], (num_classes,), 256)
    return p


def prepare_params(tp, *, num_classes, hidden, num_layers):
    """Transpose, reorder gates [i,f,g,o]->[i,f,o,g], sum biases, fold
    input_linear into layer 0, pad fc2 to LANE_PAD output lanes."""
    H = hidden
    perm = jnp.concatenate([jnp.arange(0, 2 * H),        # i, f
                            jnp.arange(3 * H, 4 * H),    # o
                            jnp.arange(2 * H, 3 * H)])   # g

    def reorder(m):          # permute the 4H (last) axis
        return m[..., perm]

    layers = []
    for l in range(num_layers):
        w_ih_t = tp[f"w_ih_{l}"].T                        # (Hin, 4H)
        w_hh_t = tp[f"w_hh_{l}"].T                        # (H, 4H)
        bias = (tp[f"b_ih_{l}"] + tp[f"b_hh_{l}"])[None, :]   # (1, 4H)
        if l == 0:
            # fold input_linear: y = x @ in_w^T + in_b, then y @ w_ih^T + b
            w_x = tp["in_w"].T @ w_ih_t                   # (C, 4H)
            bias = tp["in_b"][None, :] @ w_ih_t + bias
        else:
            w_x = w_ih_t
        layers.append((reorder(w_x), reorder(bias), reorder(w_hh_t)))

    fc1_w = tp["fc1_w"].T                                 # (T*H, 256)
    fc1_b = tp["fc1_b"][None, :]                          # (1, 256)
    nc = num_classes
    fc2_w = jnp.zeros((256, LANE_PAD), jnp.float32).at[:, :nc].set(tp["fc2_w"].T)
    fc2_b = jnp.zeros((1, LANE_PAD), jnp.float32).at[:, :nc].set(tp["fc2_b"][None, :])
    return layers, (fc1_w, fc1_b, fc2_w, fc2_b)


# ----------------------------------------------------------------------------
# Pure-JAX reference (PyTorch semantics) for correctness verification.
# ----------------------------------------------------------------------------
def reference_forward(tp, x, *, hidden, num_layers):
    B, C, T = x.shape
    y = jnp.transpose(x, (0, 2, 1)).astype(jnp.float32)           # (B, T, C)
    h_seq = y @ tp["in_w"].T + tp["in_b"]                         # (B, T, H)
    for l in range(num_layers):
        w_ih, w_hh = tp[f"w_ih_{l}"], tp[f"w_hh_{l}"]
        b = tp[f"b_ih_{l}"] + tp[f"b_hh_{l}"]
        h = jnp.zeros((B, hidden), jnp.float32)
        c = jnp.zeros((B, hidden), jnp.float32)
        outs = []
        for t in range(T):
            g = h_seq[:, t, :] @ w_ih.T + h @ w_hh.T + b
            i_g = jax.nn.sigmoid(g[:, 0 * hidden:1 * hidden])
            f_g = jax.nn.sigmoid(g[:, 1 * hidden:2 * hidden])
            g_g = jnp.tanh(g[:, 2 * hidden:3 * hidden])
            o_g = jax.nn.sigmoid(g[:, 3 * hidden:4 * hidden])
            c = f_g * c + i_g * g_g
            h = o_g * jnp.tanh(c)
            outs.append(h)
        h_seq = jnp.stack(outs, axis=1)                           # (B, T, H)
    flat = h_seq.reshape(B, -1)
    z = jnp.maximum(flat @ tp["fc1_w"].T + tp["fc1_b"], 0.0)
    return z @ tp["fc2_w"].T + tp["fc2_b"]


if __name__ == "__main__":
    BATCH = 2
    INPUT_CHANNELS = 4
    SEQ_LEN = 8
    NUM_CLASSES = 10
    HIDDEN = 32
    NUM_LAYERS = 3

    key = jax.random.PRNGKey(0)
    k_params, k_x = jax.random.split(key)
    torch_params = init_torch_params(k_params, INPUT_CHANNELS, SEQ_LEN,
                                     NUM_CLASSES, HIDDEN, NUM_LAYERS)
    kernel_params = prepare_params(torch_params, num_classes=NUM_CLASSES,
                                   hidden=HIDDEN, num_layers=NUM_LAYERS)
    x = jax.random.normal(k_x, (BATCH, INPUT_CHANNELS, SEQ_LEN), jnp.float32)

    logits = lstm1d_forward(kernel_params, x, hidden=HIDDEN,
                            num_classes=NUM_CLASSES, num_layers=NUM_LAYERS)
    logits = jax.block_until_ready(logits)
    assert logits.shape == (BATCH, NUM_CLASSES)

    ref = jax.block_until_ready(
        reference_forward(torch_params, x, hidden=HIDDEN, num_layers=NUM_LAYERS))
    assert jnp.allclose(logits, ref, atol=1e-3, rtol=1e-3), (logits, ref)
    print("KERNEL_OK")
</pallas_src>

<mosaic_0001>
module attributes {stable_mosaic.version = 11 : i64} {
  func.func @_fused_lstm1d_kernel(%arg0: memref<16x4xf32, #tpu.memory_space<vmem>>, %arg1: memref<4x128xf32, #tpu.memory_space<vmem>>, %arg2: memref<1x128xf32, #tpu.memory_space<vmem>>, %arg3: memref<32x128xf32, #tpu.memory_space<vmem>>, %arg4: memref<32x128xf32, #tpu.memory_space<vmem>>, %arg5: memref<1x128xf32, #tpu.memory_space<vmem>>, %arg6: memref<32x128xf32, #tpu.memory_space<vmem>>, %arg7: memref<32x128xf32, #tpu.memory_space<vmem>>, %arg8: memref<1x128xf32, #tpu.memory_space<vmem>>, %arg9: memref<32x128xf32, #tpu.memory_space<vmem>>, %arg10: memref<256x256xf32, #tpu.memory_space<vmem>>, %arg11: memref<1x256xf32, #tpu.memory_space<vmem>>, %arg12: memref<256x128xf32, #tpu.memory_space<vmem>>, %arg13: memref<1x128xf32, #tpu.memory_space<vmem>>, %arg14: memref<2x128xf32, #tpu.memory_space<vmem>>, %arg15: memref<16x32xf32, #tpu.memory_space<vmem>>, %arg16: memref<2x256xf32, #tpu.memory_space<vmem>>) attributes {dimension_semantics = [], scalar_prefetch = 0 : i64, scratch_operands = 2 : i64, tpu.core_type = #tpu.core_type<tc>} {
    %c0 = arith.constant 0 : index
    %c0_0 = arith.constant 0 : index
    %0 = vector.load %arg0[%c0, %c0_0] : memref<16x4xf32, #tpu.memory_space<vmem>>, vector<16x4xf32>
    %c0_1 = arith.constant 0 : index
    %c0_2 = arith.constant 0 : index
    %1 = vector.load %arg1[%c0_1, %c0_2] : memref<4x128xf32, #tpu.memory_space<vmem>>, vector<4x128xf32>
    %cst = arith.constant dense<0.000000e+00> : vector<16x128xf32>
    %2 = tpu.matmul %0, %1, %cst {dimension_numbers = #tpu.dot_dimension_numbers<[1], [0], [0], [1], [0, 0, 1, 1], [], []>} : vector<16x4xf32>, vector<4x128xf32>, vector<16x128xf32> -> vector<16x128xf32>
    %c0_3 = arith.constant 0 : index
    %c0_4 = arith.constant 0 : index
    %3 = vector.load %arg2[%c0_3, %c0_4] : memref<1x128xf32, #tpu.memory_space<vmem>>, vector<1x128xf32>
    %4 = vector.broadcast %3 : vector<1x128xf32> to vector<16x128xf32>
    %5 = arith.addf %2, %4 : vector<16x128xf32>
    %c0_5 = arith.constant 0 : index
    %c0_6 = arith.constant 0 : index
    %6 = vector.load %arg3[%c0_5, %c0_6] : memref<32x128xf32, #tpu.memory_space<vmem>>, vector<32x128xf32>
    %cst_7 = arith.constant 0.000000e+00 : f32
    %7 = vector.broadcast %cst_7 : f32 to vector<2x32xf32>
    %8 = vector.extract_strided_slice %5 {offsets = [0, 0], sizes = [2, 128], strides = [1, 1]} : vector<16x128xf32> to vector<2x128xf32>
    %9 = vector.extract_strided_slice %8 {offsets = [0, 0], sizes = [2, 96], strides = [1, 1]} : vector<2x128xf32> to vector<2x96xf32>
    %10 = arith.negf %9 : vector<2x96xf32>
    %11 = math.exp %10 : vector<2x96xf32>
    %cst_8 = arith.constant 1.000000e+00 : f32
    %12 = vector.broadcast %cst_8 : f32 to vector<2x96xf32>
    %13 = arith.addf %12, %11 : vector<2x96xf32>
    %14 = arith.divf %12, %13 : vector<2x96xf32>
    %15 = vector.extract_strided_slice %14 {offsets = [0, 0], sizes = [2, 32], strides = [1, 1]} : vector<2x96xf32> to vector<2x32xf32>
    %16 = vector.extract_strided_slice %14 {offsets = [0, 32], sizes = [2, 32], strides = [1, 1]} : vector<2x96xf32> to vector<2x32xf32>
    %17 = vector.extract_strided_slice %14 {offsets = [0, 64], sizes = [2, 32], strides = [1, 1]} : vector<2x96xf32> to vector<2x32xf32>
    %18 = vector.extract_strided_slice %8 {offsets = [0, 96], sizes = [2, 32], strides = [1, 1]} : vector<2x128xf32> to vector<2x32xf32>
    %19 = math.tanh %18 : vector<2x32xf32>
    %20 = arith.mulf %16, %7 : vector<2x32xf32>
    %21 = arith.mulf %15, %19 : vector<2x32xf32>
    %22 = arith.addf %20, %21 : vector<2x32xf32>
    %23 = math.tanh %22 : vector<2x32xf32>
    %24 = arith.mulf %17, %23 : vector<2x32xf32>
    %c0_9 = arith.constant 0 : index
    %c0_10 = arith.constant 0 : index
    %25 = vector.load %arg15[%c0_9, %c0_10] : memref<16x32xf32, #tpu.memory_space<vmem>>, vector<2x32xf32>
    tpu.vector_store %arg15[%c0_9, %c0_10], %24 {strides = array<i32>} : memref<16x32xf32, #tpu.memory_space<vmem>>, vector<2x32xf32>,
    %26 = vector.extract_strided_slice %5 {offsets = [2, 0], sizes = [2, 128], strides = [1, 1]} : vector<16x128xf32> to vector<2x128xf32>
    %cst_11 = arith.constant dense<0.000000e+00> : vector<2x128xf32>
    %27 = tpu.matmul %24, %6, %cst_11 {dimension_numbers = #tpu.dot_dimension_numbers<[1], [0], [0], [1], [0, 0, 1, 1], [], []>} : vector<2x32xf32>, vector<32x128xf32>, vector<2x128xf32> -> vector<2x128xf32>
    %28 = arith.addf %26, %27 : vector<2x128xf32>
    %29 = vector.extract_strided_slice %28 {offsets = [0, 0], sizes = [2, 96], strides = [1, 1]} : vector<2x128xf32> to vector<2x96xf32>
    %30 = arith.negf %29 : vector<2x96xf32>
    %31 = math.exp %30 : vector<2x96xf32>
    %cst_12 = arith.constant 1.000000e+00 : f32
    %32 = vector.broadcast %cst_12 : f32 to vector<2x96xf32>
    %33 = arith.addf %32, %31 : vector<2x96xf32>
    %34 = arith.divf %32, %33 : vector<2x96xf32>
    %35 = vector.extract_strided_slice %34 {offsets = [0, 0], sizes = [2, 32], strides = [1, 1]} : vector<2x96xf32> to vector<2x32xf32>
    %36 = vector.extract_strided_slice %34 {offsets = [0, 32], sizes = [2, 32], strides = [1, 1]} : vector<2x96xf32> to vector<2x32xf32>
    %37 = vector.extract_strided_slice %34 {offsets = [0, 64], sizes = [2, 32], strides = [1, 1]} : vector<2x96xf32> to vector<2x32xf32>
    %38 = vector.extract_strided_slice %28 {offsets = [0, 96], sizes = [2, 32], strides = [1, 1]} : vector<2x128xf32> to vector<2x32xf32>
    %39 = math.tanh %38 : vector<2x32xf32>
    %40 = arith.mulf %36, %22 : vector<2x32xf32>
    %41 = arith.mulf %35, %39 : vector<2x32xf32>
    %42 = arith.addf %40, %41 : vector<2x32xf32>
    %43 = math.tanh %42 : vector<2x32xf32>
    %44 = arith.mulf %37, %43 : vector<2x32xf32>
    %c2 = arith.constant 2 : index
    %c0_13 = arith.constant 0 : index
    %45 = vector.load %arg15[%c2, %c0_13] : memref<16x32xf32, #tpu.memory_space<vmem>>, vector<2x32xf32>
    tpu.vector_store %arg15[%c2, %c0_13], %44 {strides = array<i32>} : memref<16x32xf32, #tpu.memory_space<vmem>>, vector<2x32xf32>,
    %46 = vector.extract_strided_slice %5 {offsets = [4, 0], sizes = [2, 128], strides = [1, 1]} : vector<16x128xf32> to vector<2x128xf32>
    %cst_14 = arith.constant dense<0.000000e+00> : vector<2x128xf32>
    %47 = tpu.matmul %44, %6, %cst_14 {dimension_numbers = #tpu.dot_dimension_numbers<[1], [0], [0], [1], [0, 0, 1, 1], [], []>} : vector<2x32xf32>, vector<32x128xf32>, vector<2x128xf32> -> vector<2x128xf32>
    %48 = arith.addf %46, %47 : vector<2x128xf32>
    %49 = vector.extract_strided_slice %48 {offsets = [0, 0], sizes = [2, 96], strides = [1, 1]} : vector<2x128xf32> to vector<2x96xf32>
    %50 = arith.negf %49 : vector<2x96xf32>
    %51 = math.exp %50 : vector<2x96xf32>
    %cst_15 = arith.constant 1.000000e+00 : f32
    %52 = vector.broadcast %cst_15 : f32 to vector<2x96xf32>
    %53 = arith.addf %52, %51 : vector<2x96xf32>
    %54 = arith.divf %52, %53 : vector<2x96xf32>
    %55 = vector.extract_strided_slice %54 {offsets = [0, 0], sizes = [2, 32], strides = [1, 1]} : vector<2x96xf32> to vector<2x32xf32>
    %56 = vector.extract_strided_slice %54 {offsets = [0, 32], sizes = [2, 32], strides = [1, 1]} : vector<2x96xf32> to vector<2x32xf32>
    %57 = vector.extract_strided_slice %54 {offsets = [0, 64], sizes = [2, 32], strides = [1, 1]} : vector<2x96xf32> to vector<2x32xf32>
    %58 = vector.extract_strided_slice %48 {offsets = [0, 96], sizes = [2, 32], strides = [1, 1]} : vector<2x128xf32> to vector<2x32xf32>
    %59 = math.tanh %58 : vector<2x32xf32>
    %60 = arith.mulf %56, %42 : vector<2x32xf32>
    %61 = arith.mulf %55, %59 : vector<2x32xf32>
    %62 = arith.addf %60, %61 : vector<2x32xf32>
    %63 = math.tanh %62 : vector<2x32xf32>
    %64 = arith.mulf %57, %63 : vector<2x32xf32>
    %c4 = arith.constant 4 : index
    %c0_16 = arith.constant 0 : index
    %65 = vector.load %arg15[%c4, %c0_16] : memref<16x32xf32, #tpu.memory_space<vmem>>, vector<2x32xf32>
    tpu.vector_store %arg15[%c4, %c0_16], %64 {strides = array<i32>} : memref<16x32xf32, #tpu.memory_space<vmem>>, vector<2x32xf32>,
    %66 = vector.extract_strided_slice %5 {offsets = [6, 0], sizes = [2, 128], strides = [1, 1]} : vector<16x128xf32> to vector<2x128xf32>
    %cst_17 = arith.constant dense<0.000000e+00> : vector<2x128xf32>
    %67 = tpu.matmul %64, %6, %cst_17 {dimension_numbers = #tpu.dot_dimension_numbers<[1], [0], [0], [1], [0, 0, 1, 1], [], []>} : vector<2x32xf32>, vector<32x128xf32>, vector<2x128xf32> -> vector<2x128xf32>
    %68 = arith.addf %66, %67 : vector<2x128xf32>
    %69 = vector.extract_strided_slice %68 {offsets = [0, 0], sizes = [2, 96], strides = [1, 1]} : vector<2x128xf32> to vector<2x96xf32>
    %70 = arith.negf %69 : vector<2x96xf32>
    %71 = math.exp %70 : vector<2x96xf32>
    %cst_18 = arith.constant 1.000000e+00 : f32
    %72 = vector.broadcast %cst_18 : f32 to vector<2x96xf32>
    %73 = arith.addf %72, %71 : vector<2x96xf32>
    %74 = arith.divf %72, %73 : vector<2x96xf32>
    %75 = vector.extract_strided_slice %74 {offsets = [0, 0], sizes = [2, 32], strides = [1, 1]} : vector<2x96xf32> to vector<2x32xf32>
    %76 = vector.extract_strided_slice %74 {offsets = [0, 32], sizes = [2, 32], strides = [1, 1]} : vector<2x96xf32> to vector<2x32xf32>
    %77 = vector.extract_strided_slice %74 {offsets = [0, 64], sizes = [2, 32], strides = [1, 1]} : vector<2x96xf32> to vector<2x32xf32>
    %78 = vector.extract_strided_slice %68 {offsets = [0, 96], sizes = [2, 32], strides = [1, 1]} : vector<2x128xf32> to vector<2x32xf32>
    %79 = math.tanh %78 : vector<2x32xf32>
    %80 = arith.mulf %76, %62 : vector<2x32xf32>
    %81 = arith.mulf %75, %79 : vector<2x32xf32>
    %82 = arith.addf %80, %81 : vector<2x32xf32>
    %83 = math.tanh %82 : vector<2x32xf32>
    %84 = arith.mulf %77, %83 : vector<2x32xf32>
    %c6 = arith.constant 6 : index
    %c0_19 = arith.constant 0 : index
    %85 = vector.load %arg15[%c6, %c0_19] : memref<16x32xf32, #tpu.memory_space<vmem>>, vector<2x32xf32>
    tpu.vector_store %arg15[%c6, %c0_19], %84 {strides = array<i32>} : memref<16x32xf32, #tpu.memory_space<vmem>>, vector<2x32xf32>,
    %86 = vector.extract_strided_slice %5 {offsets = [8, 0], sizes = [2, 128], strides = [1, 1]} : vector<16x128xf32> to vector<2x128xf32>
    %cst_20 = arith.constant dense<0.000000e+00> : vector<2x128xf32>
    %87 = tpu.matmul %84, %6, %cst_20 {dimension_numbers = #tpu.dot_dimension_numbers<[1], [0], [0], [1], [0, 0, 1, 1], [], []>} : vector<2x32xf32>, vector<32x128xf32>, vector<2x128xf32> -> vector<2x128xf32>
    %88 = arith.addf %86, %87 : vector<2x128xf32>
    %89 = vector.extract_strided_slice %88 {offsets = [0, 0], sizes = [2, 96], strides = [1, 1]} : vector<2x128xf32> to vector<2x96xf32>
    %90 = arith.negf %89 : vector<2x96xf32>
    %91 = math.exp %90 : vector<2x96xf32>
    %cst_21 = arith.constant 1.000000e+00 : f32
    %92 = vector.broadcast %cst_21 : f32 to vector<2x96xf32>
    %93 = arith.addf %92, %91 : vector<2x96xf32>
    %94 = arith.divf %92, %93 : vector<2x96xf32>
    %95 = vector.extract_strided_slice %94 {offsets = [0, 0], sizes = [2, 32], strides = [1, 1]} : vector<2x96xf32> to vector<2x32xf32>
    %96 = vector.extract_strided_slice %94 {offsets = [0, 32], sizes = [2, 32], strides = [1, 1]} : vector<2x96xf32> to vector<2x32xf32>
    %97 = vector.extract_strided_slice %94 {offsets = [0, 64], sizes = [2, 32], strides = [1, 1]} : vector<2x96xf32> to vector<2x32xf32>
    %98 = vector.extract_strided_slice %88 {offsets = [0, 96], sizes = [2, 32], strides = [1, 1]} : vector<2x128xf32> to vector<2x32xf32>
    %99 = math.tanh %98 : vector<2x32xf32>
    %100 = arith.mulf %96, %82 : vector<2x32xf32>
    %101 = arith.mulf %95, %99 : vector<2x32xf32>
    %102 = arith.addf %100, %101 : vector<2x32xf32>
    %103 = math.tanh %102 : vector<2x32xf32>
    %104 = arith.mulf %97, %103 : vector<2x32xf32>
    %c8 = arith.constant 8 : index
    %c0_22 = arith.constant 0 : index
    %105 = vector.load %arg15[%c8, %c0_22] : memref<16x32xf32, #tpu.memory_space<vmem>>, vector<2x32xf32>
    tpu.vector_store %arg15[%c8, %c0_22], %104 {strides = array<i32>} : memref<16x32xf32, #tpu.memory_space<vmem>>, vector<2x32xf32>,
    %106 = vector.extract_strided_slice %5 {offsets = [10, 0], sizes = [2, 128], strides = [1, 1]} : vector<16x128xf32> to vector<2x128xf32>
    %cst_23 = arith.constant dense<0.000000e+00> : vector<2x128xf32>
    %107 = tpu.matmul %104, %6, %cst_23 {dimension_numbers = #tpu.dot_dimension_numbers<[1], [0], [0], [1], [0, 0, 1, 1], [], []>} : vector<2x32xf32>, vector<32x128xf32>, vector<2x128xf32> -> vector<2x128xf32>
    %108 = arith.addf %106, %107 : vector<2x128xf32>
    %109 = vector.extract_strided_slice %108 {offsets = [0, 0], sizes = [2, 96], strides = [1, 1]} : vector<2x128xf32> to vector<2x96xf32>
    %110 = arith.negf %109 : vector<2x96xf32>
    %111 = math.exp %110 : vector<2x96xf32>
    %cst_24 = arith.constant 1.000000e+00 : f32
    %112 = vector.broadcast %cst_24 : f32 to vector<2x96xf32>
    %113 = arith.addf %112, %111 : vector<2x96xf32>
    %114 = arith.divf %112, %113 : vector<2x96xf32>
    %115 = vector.extract_strided_slice %114 {offsets = [0, 0], sizes = [2, 32], strides = [1, 1]} : vector<2x96xf32> to vector<2x32xf32>
    %116 = vector.extract_strided_slice %114 {offsets = [0, 32], sizes = [2, 32], strides = [1, 1]} : vector<2x96xf32> to vector<2x32xf32>
    %117 = vector.extract_strided_slice %114 {offsets = [0, 64], sizes = [2, 32], strides = [1, 1]} : vector<2x96xf32> to vector<2x32xf32>
    %118 = vector.extract_strided_slice %108 {offsets = [0, 96], sizes = [2, 32], strides = [1, 1]} : vector<2x128xf32> to vector<2x32xf32>
    %119 = math.tanh %118 : vector<2x32xf32>
    %120 = arith.mulf %116, %102 : vector<2x32xf32>
    %121 = arith.mulf %115, %119 : vector<2x32xf32>
    %122 = arith.addf %120, %121 : vector<2x32xf32>
    %123 = math.tanh %122 : vector<2x32xf32>
    %124 = arith.mulf %117, %123 : vector<2x32xf32>
    %c10 = arith.constant 10 : index
    %c0_25 = arith.constant 0 : index
    %125 = vector.load %arg15[%c10, %c0_25] : memref<16x32xf32, #tpu.memory_space<vmem>>, vector<2x32xf32>
    tpu.vector_store %arg15[%c10, %c0_25], %124 {strides = array<i32>} : memref<16x32xf32, #tpu.memory_space<vmem>>, vector<2x32xf32>,
    %126 = vector.extract_strided_slice %5 {offsets = [12, 0], sizes = [2, 128], strides = [1, 1]} : vector<16x128xf32> to vector<2x128xf32>
    %cst_26 = arith.constant dense<0.000000e+00> : vector<2x128xf32>
    %127 = tpu.matmul %124, %6, %cst_26 {dimension_numbers = #tpu.dot_dimension_numbers<[1], [0], [0], [1], [0, 0, 1, 1], [], []>} : vector<2x32xf32>, vector<32x128xf32>, vector<2x128xf32> -> vector<2x128xf32>
    %128 = arith.addf %126, %127 : vector<2x128xf32>
    %129 = vector.extract_strided_slice %128 {offsets = [0, 0], sizes = [2, 96], strides = [1, 1]} : vector<2x128xf32> to vector<2x96xf32>
    %130 = arith.negf %129 : vector<2x96xf32>
    %131 = math.exp %130 : vector<2x96xf32>
    %cst_27 = arith.constant 1.000000e+00 : f32
    %132 = vector.broadcast %cst_27 : f32 to vector<2x96xf32>
    %133 = arith.addf %132, %131 : vector<2x96xf32>
    %134 = arith.divf %132, %133 : vector<2x96xf32>
    %135 = vector.extract_strided_slice %134 {offsets = [0, 0], sizes = [2, 32], strides = [1, 1]} : vector<2x96xf32> to vector<2x32xf32>
    %136 = vector.extract_strided_slice %134 {offsets = [0, 32], sizes = [2, 32], strides = [1, 1]} : vector<2x96xf32> to vector<2x32xf32>
    %137 = vector.extract_strided_slice %134 {offsets = [0, 64], sizes = [2, 32], strides = [1, 1]} : vector<2x96xf32> to vector<2x32xf32>
    %138 = vector.extract_strided_slice %128 {offsets = [0, 96], sizes = [2, 32], strides = [1, 1]} : vector<2x128xf32> to vector<2x32xf32>
    %139 = math.tanh %138 : vector<2x32xf32>
    %140 = arith.mulf %136, %122 : vector<2x32xf32>
    %141 = arith.mulf %135, %139 : vector<2x32xf32>
    %142 = arith.addf %140, %141 : vector<2x32xf32>
    %143 = math.tanh %142 : vector<2x32xf32>
    %144 = arith.mulf %137, %143 : vector<2x32xf32>
    %c12 = arith.constant 12 : index
    %c0_28 = arith.constant 0 : index
    %145 = vector.load %arg15[%c12, %c0_28] : memref<16x32xf32, #tpu.memory_space<vmem>>, vector<2x32xf32>
    tpu.vector_store %arg15[%c12, %c0_28], %144 {strides = array<i32>} : memref<16x32xf32, #tpu.memory_space<vmem>>, vector<2x32xf32>,
    %146 = vector.extract_strided_slice %5 {offsets = [14, 0], sizes = [2, 128], strides = [1, 1]} : vector<16x128xf32> to vector<2x128xf32>
    %cst_29 = arith.constant dense<0.000000e+00> : vector<2x128xf32>
    %147 = tpu.matmul %144, %6, %cst_29 {dimension_numbers = #tpu.dot_dimension_numbers<[1], [0], [0], [1], [0, 0, 1, 1], [], []>} : vector<2x32xf32>, vector<32x128xf32>, vector<2x128xf32> -> vector<2x128xf32>
    %148 = arith.addf %146, %147 : vector<2x128xf32>
    %149 = vector.extract_strided_slice %148 {offsets = [0, 0], sizes = [2, 96], strides = [1, 1]} : vector<2x128xf32> to vector<2x96xf32>
    %150 = arith.negf %149 : vector<2x96xf32>
    %151 = math.exp %150 : vector<2x96xf32>
    %cst_30 = arith.constant 1.000000e+00 : f32
    %152 = vector.broadcast %cst_30 : f32 to vector<2x96xf32>
    %153 = arith.addf %152, %151 : vector<2x96xf32>
    %154 = arith.divf %152, %153 : vector<2x96xf32>
    %155 = vector.extract_strided_slice %154 {offsets = [0, 0], sizes = [2, 32], strides = [1, 1]} : vector<2x96xf32> to vector<2x32xf32>
    %156 = vector.extract_strided_slice %154 {offsets = [0, 32], sizes = [2, 32], strides = [1, 1]} : vector<2x96xf32> to vector<2x32xf32>
    %157 = vector.extract_strided_slice %154 {offsets = [0, 64], sizes = [2, 32], strides = [1, 1]} : vector<2x96xf32> to vector<2x32xf32>
    %158 = vector.extract_strided_slice %148 {offsets = [0, 96], sizes = [2, 32], strides = [1, 1]} : vector<2x128xf32> to vector<2x32xf32>
    %159 = math.tanh %158 : vector<2x32xf32>
    %160 = arith.mulf %156, %142 : vector<2x32xf32>
    %161 = arith.mulf %155, %159 : vector<2x32xf32>
    %162 = arith.addf %160, %161 : vector<2x32xf32>
    %163 = math.tanh %162 : vector<2x32xf32>
    %164 = arith.mulf %157, %163 : vector<2x32xf32>
    %c14 = arith.constant 14 : index
    %c0_31 = arith.constant 0 : index
    %165 = vector.load %arg15[%c14, %c0_31] : memref<16x32xf32, #tpu.memory_space<vmem>>, vector<2x32xf32>
    tpu.vector_store %arg15[%c14, %c0_31], %164 {strides = array<i32>} : memref<16x32xf32, #tpu.memory_space<vmem>>, vector<2x32xf32>,
    %c0_32 = arith.constant 0 : index
    %c0_33 = arith.constant 0 : index
    %166 = vector.load %arg15[%c0_32, %c0_33] : memref<16x32xf32, #tpu.memory_space<vmem>>, vector<16x32xf32>
    %c0_34 = arith.constant 0 : index
    %c0_35 = arith.constant 0 : index
    %167 = vector.load %arg4[%c0_34, %c0_35] : memref<32x128xf32, #tpu.memory_space<vmem>>, vector<32x128xf32>
    %cst_36 = arith.constant dense<0.000000e+00> : vector<16x128xf32>
    %168 = tpu.matmul %166, %167, %cst_36 {dimension_numbers = #tpu.dot_dimension_numbers<[1], [0], [0], [1], [0, 0, 1, 1], [], []>} : vector<16x32xf32>, vector<32x128xf32>, vector<16x128xf32> -> vector<16x128xf32>
    %c0_37 = arith.constant 0 : index
    %c0_38 = arith.constant 0 : index
    %169 = vector.load %arg5[%c0_37, %c0_38] : memref<1x128xf32, #tpu.memory_space<vmem>>, vector<1x128xf32>
    %170 = vector.broadcast %169 : vector<1x128xf32> to vector<16x128xf32>
    %171 = arith.addf %168, %170 : vector<16x128xf32>
    %c0_39 = arith.constant 0 : index
    %c0_40 = arith.constant 0 : index
    %172 = vector.load %arg6[%c0_39, %c0_40] : memref<32x128xf32, #tpu.memory_space<vmem>>, vector<32x128xf32>
    %cst_41 = arith.constant 0.000000e+00 : f32
    %173 = vector.broadcast %cst_41 : f32 to vector<2x32xf32>
    %174 = vector.extract_strided_slice %171 {offsets = [0, 0], sizes = [2, 128], strides = [1, 1]} : vector<16x128xf32> to vector<2x128xf32>
    %175 = vector.extract_strided_slice %174 {offsets = [0, 0], sizes = [2, 96], strides = [1, 1]} : vector<2x128xf32> to vector<2x96xf32>
    %176 = arith.negf %175 : vector<2x96xf32>
    %177 = math.exp %176 : vector<2x96xf32>
    %cst_42 = arith.constant 1.000000e+00 : f32
    %178 = vector.broadcast %cst_42 : f32 to vector<2x96xf32>
    %179 = arith.addf %178, %177 : vector<2x96xf32>
    %180 = arith.divf %178, %179 : vector<2x96xf32>
    %181 = vector.extract_strided_slice %180 {offsets = [0, 0], sizes = [2, 32], strides = [1, 1]} : vector<2x96xf32> to vector<2x32xf32>
    %182 = vector.extract_strided_slice %180 {offsets = [0, 32], sizes = [2, 32], strides = [1, 1]} : vector<2x96xf32> to vector<2x32xf32>
    %183 = vector.extract_strided_slice %180 {offsets = [0, 64], sizes = [2, 32], strides = [1, 1]} : vector<2x96xf32> to vector<2x32xf32>
    %184 = vector.extract_strided_slice %174 {offsets = [0, 96], sizes = [2, 32], strides = [1, 1]} : vector<2x128xf32> to vector<2x32xf32>
    %185 = math.tanh %184 : vector<2x32xf32>
    %186 = arith.mulf %182, %173 : vector<2x32xf32>
    %187 = arith.mulf %181, %185 : vector<2x32xf32>
    %188 = arith.addf %186, %187 : vector<2x32xf32>
    %189 = math.tanh %188 : vector<2x32xf32>
    %190 = arith.mulf %183, %189 : vector<2x32xf32>
    %c0_43 = arith.constant 0 : index
    %c0_44 = arith.constant 0 : index
    %191 = vector.load %arg15[%c0_43, %c0_44] : memref<16x32xf32, #tpu.memory_space<vmem>>, vector<2x32xf32>
    tpu.vector_store %arg15[%c0_43, %c0_44], %190 {strides = array<i32>} : memref<16x32xf32, #tpu.memory_space<vmem>>, vector<2x32xf32>,
    %192 = vector.extract_strided_slice %171 {offsets = [2, 0], sizes = [2, 128], strides = [1, 1]} : vector<16x128xf32> to vector<2x128xf32>
    %cst_45 = arith.constant dense<0.000000e+00> : vector<2x128xf32>
    %193 = tpu.matmul %190, %172, %cst_45 {dimension_numbers = #tpu.dot_dimension_numbers<[1], [0], [0], [1], [0, 0, 1, 1], [], []>} : vector<2x32xf32>, vector<32x128xf32>, vector<2x128xf32> -> vector<2x128xf32>
    %194 = arith.addf %192, %193 : vector<2x128xf32>
    %195 = vector.extract_strided_slice %194 {offsets = [0, 0], sizes = [2, 96], strides = [1, 1]} : vector<2x128xf32> to vector<2x96xf32>
    %196 = arith.negf %195 : vector<2x96xf32>
    %197 = math.exp %196 : vector<2x96xf32>
    %cst_46 = arith.constant 1.000000e+00 : f32
    %198 = vector.broadcast %cst_46 : f32 to vector<2x96xf32>
    %199 = arith.addf %198, %197 : vector<2x96xf32>
    %200 = arith.divf %198, %199 : vector<2x96xf32>
    %201 = vector.extract_strided_slice %200 {offsets = [0, 0], sizes = [2, 32], strides = [1, 1]} : vector<2x96xf32> to vector<2x32xf32>
    %202 = vector.extract_strided_slice %200 {offsets = [0, 32], sizes = [2, 32], strides = [1, 1]} : vector<2x96xf32> to vector<2x32xf32>
    %203 = vector.extract_strided_slice %200 {offsets = [0, 64], sizes = [2, 32], strides = [1, 1]} : vector<2x96xf32> to vector<2x32xf32>
    %204 = vector.extract_strided_slice %194 {offsets = [0, 96], sizes = [2, 32], strides = [1, 1]} : vector<2x128xf32> to vector<2x32xf32>
    %205 = math.tanh %204 : vector<2x32xf32>
    %206 = arith.mulf %202, %188 : vector<2x32xf32>
    %207 = arith.mulf %201, %205 : vector<2x32xf32>
    %208 = arith.addf %206, %207 : vector<2x32xf32>
    %209 = math.tanh %208 : vector<2x32xf32>
    %210 = arith.mulf %203, %209 : vector<2x32xf32>
    %c2_47 = arith.constant 2 : index
    %c0_48 = arith.constant 0 : index
    %211 = vector.load %arg15[%c2_47, %c0_48] : memref<16x32xf32, #tpu.memory_space<vmem>>, vector<2x32xf32>
    tpu.vector_store %arg15[%c2_47, %c0_48], %210 {strides = array<i32>} : memref<16x32xf32, #tpu.memory_space<vmem>>, vector<2x32xf32>,
    %212 = vector.extract_strided_slice %171 {offsets = [4, 0], sizes = [2, 128], strides = [1, 1]} : vector<16x128xf32> to vector<2x128xf32>
    %cst_49 = arith.constant dense<0.000000e+00> : vector<2x128xf32>
    %213 = tpu.matmul %210, %172, %cst_49 {dimension_numbers = #tpu.dot_dimension_numbers<[1], [0], [0], [1], [0, 0, 1, 1], [], []>} : vector<2x32xf32>, vector<32x128xf32>, vector<2x128xf32> -> vector<2x128xf32>
    %214 = arith.addf %212, %213 : vector<2x128xf32>
    %215 = vector.extract_strided_slice %214 {offsets = [0, 0], sizes = [2, 96], strides = [1, 1]} : vector<2x128xf32> to vector<2x96xf32>
    %216 = arith.negf %215 : vector<2x96xf32>
    %217 = math.exp %216 : vector<2x96xf32>
    %cst_50 = arith.constant 1.000000e+00 : f32
    %218 = vector.broadcast %cst_50 : f32 to vector<2x96xf32>
    %219 = arith.addf %218, %217 : vector<2x96xf32>
    %220 = arith.divf %218, %219 : vector<2x96xf32>
    %221 = vector.extract_strided_slice %220 {offsets = [0, 0], sizes = [2, 32], strides = [1, 1]} : vector<2x96xf32> to vector<2x32xf32>
    %222 = vector.extract_strided_slice %220 {offsets = [0, 32], sizes = [2, 32], strides = [1, 1]} : vector<2x96xf32> to vector<2x32xf32>
    %223 = vector.extract_strided_slice %220 {offsets = [0, 64], sizes = [2, 32], strides = [1, 1]} : vector<2x96xf32> to vector<2x32xf32>
    %224 = vector.extract_strided_slice %214 {offsets = [0, 96], sizes = [2, 32], strides = [1, 1]} : vector<2x128xf32> to vector<2x32xf32>
    %225 = math.tanh %224 : vector<2x32xf32>
    %226 = arith.mulf %222, %208 : vector<2x32xf32>
    %227 = arith.mulf %221, %225 : vector<2x32xf32>
    %228 = arith.addf %226, %227 : vector<2x32xf32>
    %229 = math.tanh %228 : vector<2x32xf32>
    %230 = arith.mulf %223, %229 : vector<2x32xf32>
    %c4_51 = arith.constant 4 : index
    %c0_52 = arith.constant 0 : index
    %231 = vector.load %arg15[%c4_51, %c0_52] : memref<16x32xf32, #tpu.memory_space<vmem>>, vector<2x32xf32>
    tpu.vector_store %arg15[%c4_51, %c0_52], %230 {strides = array<i32>} : memref<16x32xf32, #tpu.memory_space<vmem>>, vector<2x32xf32>,
    %232 = vector.extract_strided_slice %171 {offsets = [6, 0], sizes = [2, 128], strides = [1, 1]} : vector<16x128xf32> to vector<2x128xf32>
    %cst_53 = arith.constant dense<0.000000e+00> : vector<2x128xf32>
    %233 = tpu.matmul %230, %172, %cst_53 {dimension_numbers = #tpu.dot_dimension_numbers<[1], [0], [0], [1], [0, 0, 1, 1], [], []>} : vector<2x32xf32>, vector<32x128xf32>, vector<2x128xf32> -> vector<2x128xf32>
    %234 = arith.addf %232, %233 : vector<2x128xf32>
    %235 = vector.extract_strided_slice %234 {offsets = [0, 0], sizes = [2, 96], strides = [1, 1]} : vector<2x128xf32> to vector<2x96xf32>
    %236 = arith.negf %235 : vector<2x96xf32>
    %237 = math.exp %236 : vector<2x96xf32>
    %cst_54 = arith.constant 1.000000e+00 : f32
    %238 = vector.broadcast %cst_54 : f32 to vector<2x96xf32>
    %239 = arith.addf %238, %237 : vector<2x96xf32>
    %240 = arith.divf %238, %239 : vector<2x96xf32>
    %241 = vector.extract_strided_slice %240 {offsets = [0, 0], sizes = [2, 32], strides = [1, 1]} : vector<2x96xf32> to vector<2x32xf32>
    %242 = vector.extract_strided_slice %240 {offsets = [0, 32], sizes = [2, 32], strides = [1, 1]} : vector<2x96xf32> to vector<2x32xf32>
    %243 = vector.extract_strided_slice %240 {offsets = [0, 64], sizes = [2, 32], strides = [1, 1]} : vector<2x96xf32> to vector<2x32xf32>
    %244 = vector.extract_strided_slice %234 {offsets = [0, 96], sizes = [2, 32], strides = [1, 1]} : vector<2x128xf32> to vector<2x32xf32>
    %245 = math.tanh %244 : vector<2x32xf32>
    %246 = arith.mulf %242, %228 : vector<2x32xf32>
    %247 = arith.mulf %241, %245 : vector<2x32xf32>
    %248 = arith.addf %246, %247 : vector<2x32xf32>
    %249 = math.tanh %248 : vector<2x32xf32>
    %250 = arith.mulf %243, %249 : vector<2x32xf32>
    %c6_55 = arith.constant 6 : index
    %c0_56 = arith.constant 0 : index
    %251 = vector.load %arg15[%c6_55, %c0_56] : memref<16x32xf32, #tpu.memory_space<vmem>>, vector<2x32xf32>
    tpu.vector_store %arg15[%c6_55, %c0_56], %250 {strides = array<i32>} : memref<16x32xf32, #tpu.memory_space<vmem>>, vector<2x32xf32>,
    %252 = vector.extract_strided_slice %171 {offsets = [8, 0], sizes = [2, 128], strides = [1, 1]} : vector<16x128xf32> to vector<2x128xf32>
    %cst_57 = arith.constant dense<0.000000e+00> : vector<2x128xf32>
    %253 = tpu.matmul %250, %172, %cst_57 {dimension_numbers = #tpu.dot_dimension_numbers<[1], [0], [0], [1], [0, 0, 1, 1], [], []>} : vector<2x32xf32>, vector<32x128xf32>, vector<2x128xf32> -> vector<2x128xf32>
    %254 = arith.addf %252, %253 : vector<2x128xf32>
    %255 = vector.extract_strided_slice %254 {offsets = [0, 0], sizes = [2, 96], strides = [1, 1]} : vector<2x128xf32> to vector<2x96xf32>
    %256 = arith.negf %255 : vector<2x96xf32>
    %257 = math.exp %256 : vector<2x96xf32>
    %cst_58 = arith.constant 1.000000e+00 : f32
    %258 = vector.broadcast %cst_58 : f32 to vector<2x96xf32>
    %259 = arith.addf %258, %257 : vector<2x96xf32>
    %260 = arith.divf %258, %259 : vector<2x96xf32>
    %261 = vector.extract_strided_slice %260 {offsets = [0, 0], sizes = [2, 32], strides = [1, 1]} : vector<2x96xf32> to vector<2x32xf32>
    %262 = vector.extract_strided_slice %260 {offsets = [0, 32], sizes = [2, 32], strides = [1, 1]} : vector<2x96xf32> to vector<2x32xf32>
    %263 = vector.extract_strided_slice %260 {offsets = [0, 64], sizes = [2, 32], strides = [1, 1]} : vector<2x96xf32> to vector<2x32xf32>
    %264 = vector.extract_strided_slice %254 {offsets = [0, 96], sizes = [2, 32], strides = [1, 1]} : vector<2x128xf32> to vector<2x32xf32>
    %265 = math.tanh %264 : vector<2x32xf32>
    %266 = arith.mulf %262, %248 : vector<2x32xf32>
    %267 = arith.mulf %261, %265 : vector<2x32xf32>
    %268 = arith.addf %266, %267 : vector<2x32xf32>
    %269 = math.tanh %268 : vector<2x32xf32>
    %270 = arith.mulf %263, %269 : vector<2x32xf32>
    %c8_59 = arith.constant 8 : index
    %c0_60 = arith.constant 0 : index
    %271 = vector.load %arg15[%c8_59, %c0_60] : memref<16x32xf32, #tpu.memory_space<vmem>>, vector<2x32xf32>
    tpu.vector_store %arg15[%c8_59, %c0_60], %270 {strides = array<i32>} : memref<16x32xf32, #tpu.memory_space<vmem>>, vector<2x32xf32>,
    %272 = vector.extract_strided_slice %171 {offsets = [10, 0], sizes = [2, 128], strides = [1, 1]} : vector<16x128xf32> to vector<2x128xf32>
    %cst_61 = arith.constant dense<0.000000e+00> : vector<2x128xf32>
    %273 = tpu.matmul %270, %172, %cst_61 {dimension_numbers = #tpu.dot_dimension_numbers<[1], [0], [0], [1], [0, 0, 1, 1], [], []>} : vector<2x32xf32>, vector<32x128xf32>, vector<2x128xf32> -> vector<2x128xf32>
    %274 = arith.addf %272, %273 : vector<2x128xf32>
    %275 = vector.extract_strided_slice %274 {offsets = [0, 0], sizes = [2, 96], strides = [1, 1]} : vector<2x128xf32> to vector<2x96xf32>
    %276 = arith.negf %275 : vector<2x96xf32>
    %277 = math.exp %276 : vector<2x96xf32>
    %cst_62 = arith.constant 1.000000e+00 : f32
    %278 = vector.broadcast %cst_62 : f32 to vector<2x96xf32>
    %279 = arith.addf %278, %277 : vector<2x96xf32>
    %280 = arith.divf %278, %279 : vector<2x96xf32>
    %281 = vector.extract_strided_slice %280 {offsets = [0, 0], sizes = [2, 32], strides = [1, 1]} : vector<2x96xf32> to vector<2x32xf32>
    %282 = vector.extract_strided_slice %280 {offsets = [0, 32], sizes = [2, 32], strides = [1, 1]} : vector<2x96xf32> to vector<2x32xf32>
    %283 = vector.extract_strided_slice %280 {offsets = [0, 64], sizes = [2, 32], strides = [1, 1]} : vector<2x96xf32> to vector<2x32xf32>
    %284 = vector.extract_strided_slice %274 {offsets = [0, 96], sizes = [2, 32], strides = [1, 1]} : vector<2x128xf32> to vector<2x32xf32>
    %285 = math.tanh %284 : vector<2x32xf32>
    %286 = arith.mulf %282, %268 : vector<2x32xf32>
    %287 = arith.mulf %281, %285 : vector<2x32xf32>
    %288 = arith.addf %286, %287 : vector<2x32xf32>
    %289 = math.tanh %288 : vector<2x32xf32>
    %290 = arith.mulf %283, %289 : vector<2x32xf32>
    %c10_63 = arith.constant 10 : index
    %c0_64 = arith.constant 0 : index
    %291 = vector.load %arg15[%c10_63, %c0_64] : memref<16x32xf32, #tpu.memory_space<vmem>>, vector<2x32xf32>
    tpu.vector_store %arg15[%c10_63, %c0_64], %290 {strides = array<i32>} : memref<16x32xf32, #tpu.memory_space<vmem>>, vector<2x32xf32>,
    %292 = vector.extract_strided_slice %171 {offsets = [12, 0], sizes = [2, 128], strides = [1, 1]} : vector<16x128xf32> to vector<2x128xf32>
    %cst_65 = arith.constant dense<0.000000e+00> : vector<2x128xf32>
    %293 = tpu.matmul %290, %172, %cst_65 {dimension_numbers = #tpu.dot_dimension_numbers<[1], [0], [0], [1], [0, 0, 1, 1], [], []>} : vector<2x32xf32>, vector<32x128xf32>, vector<2x128xf32> -> vector<2x128xf32>
    %294 = arith.addf %292, %293 : vector<2x128xf32>
    %295 = vector.extract_strided_slice %294 {offsets = [0, 0], sizes = [2, 96], strides = [1, 1]} : vector<2x128xf32> to vector<2x96xf32>
    %296 = arith.negf %295 : vector<2x96xf32>
    %297 = math.exp %296 : vector<2x96xf32>
    %cst_66 = arith.constant 1.000000e+00 : f32
    %298 = vector.broadcast %cst_66 : f32 to vector<2x96xf32>
    %299 = arith.addf %298, %297 : vector<2x96xf32>
    %300 = arith.divf %298, %299 : vector<2x96xf32>
    %301 = vector.extract_strided_slice %300 {offsets = [0, 0], sizes = [2, 32], strides = [1, 1]} : vector<2x96xf32> to vector<2x32xf32>
    %302 = vector.extract_strided_slice %300 {offsets = [0, 32], sizes = [2, 32], strides = [1, 1]} : vector<2x96xf32> to vector<2x32xf32>
    %303 = vector.extract_strided_slice %300 {offsets = [0, 64], sizes = [2, 32], strides = [1, 1]} : vector<2x96xf32> to vector<2x32xf32>
    %304 = vector.extract_strided_slice %294 {offsets = [0, 96], sizes = [2, 32], strides = [1, 1]} : vector<2x128xf32> to vector<2x32xf32>
    %305 = math.tanh %304 : vector<2x32xf32>
    %306 = arith.mulf %302, %288 : vector<2x32xf32>
    %307 = arith.mulf %301, %305 : vector<2x32xf32>
    %308 = arith.addf %306, %307 : vector<2x32xf32>
    %309 = math.tanh %308 : vector<2x32xf32>
    %310 = arith.mulf %303, %309 : vector<2x32xf32>
    %c12_67 = arith.constant 12 : index
    %c0_68 = arith.constant 0 : index
    %311 = vector.load %arg15[%c12_67, %c0_68] : memref<16x32xf32, #tpu.memory_space<vmem>>, vector<2x32xf32>
    tpu.vector_store %arg15[%c12_67, %c0_68], %310 {strides = array<i32>} : memref<16x32xf32, #tpu.memory_space<vmem>>, vector<2x32xf32>,
    %312 = vector.extract_strided_slice %171 {offsets = [14, 0], sizes = [2, 128], strides = [1, 1]} : vector<16x128xf32> to vector<2x128xf32>
    %cst_69 = arith.constant dense<0.000000e+00> : vector<2x128xf32>
    %313 = tpu.matmul %310, %172, %cst_69 {dimension_numbers = #tpu.dot_dimension_numbers<[1], [0], [0], [1], [0, 0, 1, 1], [], []>} : vector<2x32xf32>, vector<32x128xf32>, vector<2x128xf32> -> vector<2x128xf32>
    %314 = arith.addf %312, %313 : vector<2x128xf32>
    %315 = vector.extract_strided_slice %314 {offsets = [0, 0], sizes = [2, 96], strides = [1, 1]} : vector<2x128xf32> to vector<2x96xf32>
    %316 = arith.negf %315 : vector<2x96xf32>
    %317 = math.exp %316 : vector<2x96xf32>
    %cst_70 = arith.constant 1.000000e+00 : f32
    %318 = vector.broadcast %cst_70 : f32 to vector<2x96xf32>
    %319 = arith.addf %318, %317 : vector<2x96xf32>
    %320 = arith.divf %318, %319 : vector<2x96xf32>
    %321 = vector.extract_strided_slice %320 {offsets = [0, 0], sizes = [2, 32], strides = [1, 1]} : vector<2x96xf32> to vector<2x32xf32>
    %322 = vector.extract_strided_slice %320 {offsets = [0, 32], sizes = [2, 32], strides = [1, 1]} : vector<2x96xf32> to vector<2x32xf32>
    %323 = vector.extract_strided_slice %320 {offsets = [0, 64], sizes = [2, 32], strides = [1, 1]} : vector<2x96xf32> to vector<2x32xf32>
    %324 = vector.extract_strided_slice %314 {offsets = [0, 96], sizes = [2, 32], strides = [1, 1]} : vector<2x128xf32> to vector<2x32xf32>
    %325 = math.tanh %324 : vector<2x32xf32>
    %326 = arith.mulf %322, %308 : vector<2x32xf32>
    %327 = arith.mulf %321, %325 : vector<2x32xf32>
    %328 = arith.addf %326, %327 : vector<2x32xf32>
    %329 = math.tanh %328 : vector<2x32xf32>
    %330 = arith.mulf %323, %329 : vector<2x32xf32>
    %c14_71 = arith.constant 14 : index
    %c0_72 = arith.constant 0 : index
    %331 = vector.load %arg15[%c14_71, %c0_72] : memref<16x32xf32, #tpu.memory_space<vmem>>, vector<2x32xf32>
    tpu.vector_store %arg15[%c14_71, %c0_72], %330 {strides = array<i32>} : memref<16x32xf32, #tpu.memory_space<vmem>>, vector<2x32xf32>,
    %c0_73 = arith.constant 0 : index
    %c0_74 = arith.constant 0 : index
    %332 = vector.load %arg15[%c0_73, %c0_74] : memref<16x32xf32, #tpu.memory_space<vmem>>, vector<16x32xf32>
    %c0_75 = arith.constant 0 : index
    %c0_76 = arith.constant 0 : index
    %333 = vector.load %arg7[%c0_75, %c0_76] : memref<32x128xf32, #tpu.memory_space<vmem>>, vector<32x128xf32>
    %cst_77 = arith.constant dense<0.000000e+00> : vector<16x128xf32>
    %334 = tpu.matmul %332, %333, %cst_77 {dimension_numbers = #tpu.dot_dimension_numbers<[1], [0], [0], [1], [0, 0, 1, 1], [], []>} : vector<16x32xf32>, vector<32x128xf32>, vector<16x128xf32> -> vector<16x128xf32>
    %c0_78 = arith.constant 0 : index
    %c0_79 = arith.constant 0 : index
    %335 = vector.load %arg8[%c0_78, %c0_79] : memref<1x128xf32, #tpu.memory_space<vmem>>, vector<1x128xf32>
    %336 = vector.broadcast %335 : vector<1x128xf32> to vector<16x128xf32>
    %337 = arith.addf %334, %336 : vector<16x128xf32>
    %c0_80 = arith.constant 0 : index
    %c0_81 = arith.constant 0 : index
    %338 = vector.load %arg9[%c0_80, %c0_81] : memref<32x128xf32, #tpu.memory_space<vmem>>, vector<32x128xf32>
    %cst_82 = arith.constant 0.000000e+00 : f32
    %339 = vector.broadcast %cst_82 : f32 to vector<2x32xf32>
    %340 = vector.extract_strided_slice %337 {offsets = [0, 0], sizes = [2, 128], strides = [1, 1]} : vector<16x128xf32> to vector<2x128xf32>
    %341 = vector.extract_strided_slice %340 {offsets = [0, 0], sizes = [2, 96], strides = [1, 1]} : vector<2x128xf32> to vector<2x96xf32>
    %342 = arith.negf %341 : vector<2x96xf32>
    %343 = math.exp %342 : vector<2x96xf32>
    %cst_83 = arith.constant 1.000000e+00 : f32
    %344 = vector.broadcast %cst_83 : f32 to vector<2x96xf32>
    %345 = arith.addf %344, %343 : vector<2x96xf32>
    %346 = arith.divf %344, %345 : vector<2x96xf32>
    %347 = vector.extract_strided_slice %346 {offsets = [0, 0], sizes = [2, 32], strides = [1, 1]} : vector<2x96xf32> to vector<2x32xf32>
    %348 = vector.extract_strided_slice %346 {offsets = [0, 32], sizes = [2, 32], strides = [1, 1]} : vector<2x96xf32> to vector<2x32xf32>
    %349 = vector.extract_strided_slice %346 {offsets = [0, 64], sizes = [2, 32], strides = [1, 1]} : vector<2x96xf32> to vector<2x32xf32>
    %350 = vector.extract_strided_slice %340 {offsets = [0, 96], sizes = [2, 32], strides = [1, 1]} : vector<2x128xf32> to vector<2x32xf32>
    %351 = math.tanh %350 : vector<2x32xf32>
    %352 = arith.mulf %348, %339 : vector<2x32xf32>
    %353 = arith.mulf %347, %351 : vector<2x32xf32>
    %354 = arith.addf %352, %353 : vector<2x32xf32>
    %355 = math.tanh %354 : vector<2x32xf32>
    %356 = arith.mulf %349, %355 : vector<2x32xf32>
    %c0_84 = arith.constant 0 : index
    %c0_85 = arith.constant 0 : index
    %357 = vector.load %arg16[%c0_84, %c0_85] : memref<2x256xf32, #tpu.memory_space<vmem>>, vector<2x32xf32>
    tpu.vector_store %arg16[%c0_84, %c0_85], %356 {strides = array<i32>} : memref<2x256xf32, #tpu.memory_space<vmem>>, vector<2x32xf32>,
    %358 = vector.extract_strided_slice %337 {offsets = [2, 0], sizes = [2, 128], strides = [1, 1]} : vector<16x128xf32> to vector<2x128xf32>
    %cst_86 = arith.constant dense<0.000000e+00> : vector<2x128xf32>
    %359 = tpu.matmul %356, %338, %cst_86 {dimension_numbers = #tpu.dot_dimension_numbers<[1], [0], [0], [1], [0, 0, 1, 1], [], []>} : vector<2x32xf32>, vector<32x128xf32>, vector<2x128xf32> -> vector<2x128xf32>
    %360 = arith.addf %358, %359 : vector<2x128xf32>
    %361 = vector.extract_strided_slice %360 {offsets = [0, 0], sizes = [2, 96], strides = [1, 1]} : vector<2x128xf32> to vector<2x96xf32>
    %362 = arith.negf %361 : vector<2x96xf32>
    %363 = math.exp %362 : vector<2x96xf32>
    %cst_87 = arith.constant 1.000000e+00 : f32
    %364 = vector.broadcast %cst_87 : f32 to vector<2x96xf32>
    %365 = arith.addf %364, %363 : vector<2x96xf32>
    %366 = arith.divf %364, %365 : vector<2x96xf32>
    %367 = vector.extract_strided_slice %366 {offsets = [0, 0], sizes = [2, 32], strides = [1, 1]} : vector<2x96xf32> to vector<2x32xf32>
    %368 = vector.extract_strided_slice %366 {offsets = [0, 32], sizes = [2, 32], strides = [1, 1]} : vector<2x96xf32> to vector<2x32xf32>
    %369 = vector.extract_strided_slice %366 {offsets = [0, 64], sizes = [2, 32], strides = [1, 1]} : vector<2x96xf32> to vector<2x32xf32>
    %370 = vector.extract_strided_slice %360 {offsets = [0, 96], sizes = [2, 32], strides = [1, 1]} : vector<2x128xf32> to vector<2x32xf32>
    %371 = math.tanh %370 : vector<2x32xf32>
    %372 = arith.mulf %368, %354 : vector<2x32xf32>
    %373 = arith.mulf %367, %371 : vector<2x32xf32>
    %374 = arith.addf %372, %373 : vector<2x32xf32>
    %375 = math.tanh %374 : vector<2x32xf32>
    %376 = arith.mulf %369, %375 : vector<2x32xf32>
    %c0_88 = arith.constant 0 : index
    %c32 = arith.constant 32 : index
    %377 = vector.load %arg16[%c0_88, %c32] : memref<2x256xf32, #tpu.memory_space<vmem>>, vector<2x32xf32>
    tpu.vector_store %arg16[%c0_88, %c32], %376 {strides = array<i32>} : memref<2x256xf32, #tpu.memory_space<vmem>>, vector<2x32xf32>,
    %378 = vector.extract_strided_slice %337 {offsets = [4, 0], sizes = [2, 128], strides = [1, 1]} : vector<16x128xf32> to vector<2x128xf32>
    %cst_89 = arith.constant dense<0.000000e+00> : vector<2x128xf32>
    %379 = tpu.matmul %376, %338, %cst_89 {dimension_numbers = #tpu.dot_dimension_numbers<[1], [0], [0], [1], [0, 0, 1, 1], [], []>} : vector<2x32xf32>, vector<32x128xf32>, vector<2x128xf32> -> vector<2x128xf32>
    %380 = arith.addf %378, %379 : vector<2x128xf32>
    %381 = vector.extract_strided_slice %380 {offsets = [0, 0], sizes = [2, 96], strides = [1, 1]} : vector<2x128xf32> to vector<2x96xf32>
    %382 = arith.negf %381 : vector<2x96xf32>
    %383 = math.exp %382 : vector<2x96xf32>
    %cst_90 = arith.constant 1.000000e+00 : f32
    %384 = vector.broadcast %cst_90 : f32 to vector<2x96xf32>
    %385 = arith.addf %384, %383 : vector<2x96xf32>
    %386 = arith.divf %384, %385 : vector<2x96xf32>
    %387 = vector.extract_strided_slice %386 {offsets = [0, 0], sizes = [2, 32], strides = [1, 1]} : vector<2x96xf32> to vector<2x32xf32>
    %388 = vector.extract_strided_slice %386 {offsets = [0, 32], sizes = [2, 32], strides = [1, 1]} : vector<2x96xf32> to vector<2x32xf32>
    %389 = vector.extract_strided_slice %386 {offsets = [0, 64], sizes = [2, 32], strides = [1, 1]} : vector<2x96xf32> to vector<2x32xf32>
    %390 = vector.extract_strided_slice %380 {offsets = [0, 96], sizes = [2, 32], strides = [1, 1]} : vector<2x128xf32> to vector<2x32xf32>
    %391 = math.tanh %390 : vector<2x32xf32>
    %392 = arith.mulf %388, %374 : vector<2x32xf32>
    %393 = arith.mulf %387, %391 : vector<2x32xf32>
    %394 = arith.addf %392, %393 : vector<2x32xf32>
    %395 = math.tanh %394 : vector<2x32xf32>
    %396 = arith.mulf %389, %395 : vector<2x32xf32>
    %c0_91 = arith.constant 0 : index
    %c64 = arith.constant 64 : index
    %397 = vector.load %arg16[%c0_91, %c64] : memref<2x256xf32, #tpu.memory_space<vmem>>, vector<2x32xf32>
    tpu.vector_store %arg16[%c0_91, %c64], %396 {strides = array<i32>} : memref<2x256xf32, #tpu.memory_space<vmem>>, vector<2x32xf32>,
    %398 = vector.extract_strided_slice %337 {offsets = [6, 0], sizes = [2, 128], strides = [1, 1]} : vector<16x128xf32> to vector<2x128xf32>
    %cst_92 = arith.constant dense<0.000000e+00> : vector<2x128xf32>
    %399 = tpu.matmul %396, %338, %cst_92 {dimension_numbers = #tpu.dot_dimension_numbers<[1], [0], [0], [1], [0, 0, 1, 1], [], []>} : vector<2x32xf32>, vector<32x128xf32>, vector<2x128xf32> -> vector<2x128xf32>
    %400 = arith.addf %398, %399 : vector<2x128xf32>
    %401 = vector.extract_strided_slice %400 {offsets = [0, 0], sizes = [2, 96], strides = [1, 1]} : vector<2x128xf32> to vector<2x96xf32>
    %402 = arith.negf %401 : vector<2x96xf32>
    %403 = math.exp %402 : vector<2x96xf32>
    %cst_93 = arith.constant 1.000000e+00 : f32
    %404 = vector.broadcast %cst_93 : f32 to vector<2x96xf32>
    %405 = arith.addf %404, %403 : vector<2x96xf32>
    %406 = arith.divf %404, %405 : vector<2x96xf32>
    %407 = vector.extract_strided_slice %406 {offsets = [0, 0], sizes = [2, 32], strides = [1, 1]} : vector<2x96xf32> to vector<2x32xf32>
    %408 = vector.extract_strided_slice %406 {offsets = [0, 32], sizes = [2, 32], strides = [1, 1]} : vector<2x96xf32> to vector<2x32xf32>
    %409 = vector.extract_strided_slice %406 {offsets = [0, 64], sizes = [2, 32], strides = [1, 1]} : vector<2x96xf32> to vector<2x32xf32>
    %410 = vector.extract_strided_slice %400 {offsets = [0, 96], sizes = [2, 32], strides = [1, 1]} : vector<2x128xf32> to vector<2x32xf32>
    %411 = math.tanh %410 : vector<2x32xf32>
    %412 = arith.mulf %408, %394 : vector<2x32xf32>
    %413 = arith.mulf %407, %411 : vector<2x32xf32>
    %414 = arith.addf %412, %413 : vector<2x32xf32>
    %415 = math.tanh %414 : vector<2x32xf32>
    %416 = arith.mulf %409, %415 : vector<2x32xf32>
    %c0_94 = arith.constant 0 : index
    %c96 = arith.constant 96 : index
    %417 = vector.load %arg16[%c0_94, %c96] : memref<2x256xf32, #tpu.memory_space<vmem>>, vector<2x32xf32>
    tpu.vector_store %arg16[%c0_94, %c96], %416 {strides = array<i32>} : memref<2x256xf32, #tpu.memory_space<vmem>>, vector<2x32xf32>,
    %418 = vector.extract_strided_slice %337 {offsets = [8, 0], sizes = [2, 128], strides = [1, 1]} : vector<16x128xf32> to vector<2x128xf32>
    %cst_95 = arith.constant dense<0.000000e+00> : vector<2x128xf32>
    %419 = tpu.matmul %416, %338, %cst_95 {dimension_numbers = #tpu.dot_dimension_numbers<[1], [0], [0], [1], [0, 0, 1, 1], [], []>} : vector<2x32xf32>, vector<32x128xf32>, vector<2x128xf32> -> vector<2x128xf32>
    %420 = arith.addf %418, %419 : vector<2x128xf32>
    %421 = vector.extract_strided_slice %420 {offsets = [0, 0], sizes = [2, 96], strides = [1, 1]} : vector<2x128xf32> to vector<2x96xf32>
    %422 = arith.negf %421 : vector<2x96xf32>
    %423 = math.exp %422 : vector<2x96xf32>
    %cst_96 = arith.constant 1.000000e+00 : f32
    %424 = vector.broadcast %cst_96 : f32 to vector<2x96xf32>
    %425 = arith.addf %424, %423 : vector<2x96xf32>
    %426 = arith.divf %424, %425 : vector<2x96xf32>
    %427 = vector.extract_strided_slice %426 {offsets = [0, 0], sizes = [2, 32], strides = [1, 1]} : vector<2x96xf32> to vector<2x32xf32>
    %428 = vector.extract_strided_slice %426 {offsets = [0, 32], sizes = [2, 32], strides = [1, 1]} : vector<2x96xf32> to vector<2x32xf32>
    %429 = vector.extract_strided_slice %426 {offsets = [0, 64], sizes = [2, 32], strides = [1, 1]} : vector<2x96xf32> to vector<2x32xf32>
    %430 = vector.extract_strided_slice %420 {offsets = [0, 96], sizes = [2, 32], strides = [1, 1]} : vector<2x128xf32> to vector<2x32xf32>
    %431 = math.tanh %430 : vector<2x32xf32>
    %432 = arith.mulf %428, %414 : vector<2x32xf32>
    %433 = arith.mulf %427, %431 : vector<2x32xf32>
    %434 = arith.addf %432, %433 : vector<2x32xf32>
    %435 = math.tanh %434 : vector<2x32xf32>
    %436 = arith.mulf %429, %435 : vector<2x32xf32>
    %c0_97 = arith.constant 0 : index
    %c128 = arith.constant 128 : index
    %437 = vector.load %arg16[%c0_97, %c128] : memref<2x256xf32, #tpu.memory_space<vmem>>, vector<2x32xf32>
    tpu.vector_store %arg16[%c0_97, %c128], %436 {strides = array<i32>} : memref<2x256xf32, #tpu.memory_space<vmem>>, vector<2x32xf32>,
    %438 = vector.extract_strided_slice %337 {offsets = [10, 0], sizes = [2, 128], strides = [1, 1]} : vector<16x128xf32> to vector<2x128xf32>
    %cst_98 = arith.constant dense<0.000000e+00> : vector<2x128xf32>
    %439 = tpu.matmul %436, %338, %cst_98 {dimension_numbers = #tpu.dot_dimension_numbers<[1], [0], [0], [1], [0, 0, 1, 1], [], []>} : vector<2x32xf32>, vector<32x128xf32>, vector<2x128xf32> -> vector<2x128xf32>
    %440 = arith.addf %438, %439 : vector<2x128xf32>
    %441 = vector.extract_strided_slice %440 {offsets = [0, 0], sizes = [2, 96], strides = [1, 1]} : vector<2x128xf32> to vector<2x96xf32>
    %442 = arith.negf %441 : vector<2x96xf32>
    %443 = math.exp %442 : vector<2x96xf32>
    %cst_99 = arith.constant 1.000000e+00 : f32
    %444 = vector.broadcast %cst_99 : f32 to vector<2x96xf32>
    %445 = arith.addf %444, %443 : vector<2x96xf32>
    %446 = arith.divf %444, %445 : vector<2x96xf32>
    %447 = vector.extract_strided_slice %446 {offsets = [0, 0], sizes = [2, 32], strides = [1, 1]} : vector<2x96xf32> to vector<2x32xf32>
    %448 = vector.extract_strided_slice %446 {offsets = [0, 32], sizes = [2, 32], strides = [1, 1]} : vector<2x96xf32> to vector<2x32xf32>
    %449 = vector.extract_strided_slice %446 {offsets = [0, 64], sizes = [2, 32], strides = [1, 1]} : vector<2x96xf32> to vector<2x32xf32>
    %450 = vector.extract_strided_slice %440 {offsets = [0, 96], sizes = [2, 32], strides = [1, 1]} : vector<2x128xf32> to vector<2x32xf32>
    %451 = math.tanh %450 : vector<2x32xf32>
    %452 = arith.mulf %448, %434 : vector<2x32xf32>
    %453 = arith.mulf %447, %451 : vector<2x32xf32>
    %454 = arith.addf %452, %453 : vector<2x32xf32>
    %455 = math.tanh %454 : vector<2x32xf32>
    %456 = arith.mulf %449, %455 : vector<2x32xf32>
    %c0_100 = arith.constant 0 : index
    %c160 = arith.constant 160 : index
    %457 = vector.load %arg16[%c0_100, %c160] : memref<2x256xf32, #tpu.memory_space<vmem>>, vector<2x32xf32>
    tpu.vector_store %arg16[%c0_100, %c160], %456 {strides = array<i32>} : memref<2x256xf32, #tpu.memory_space<vmem>>, vector<2x32xf32>,
    %458 = vector.extract_strided_slice %337 {offsets = [12, 0], sizes = [2, 128], strides = [1, 1]} : vector<16x128xf32> to vector<2x128xf32>
    %cst_101 = arith.constant dense<0.000000e+00> : vector<2x128xf32>
    %459 = tpu.matmul %456, %338, %cst_101 {dimension_numbers = #tpu.dot_dimension_numbers<[1], [0], [0], [1], [0, 0, 1, 1], [], []>} : vector<2x32xf32>, vector<32x128xf32>, vector<2x128xf32> -> vector<2x128xf32>
    %460 = arith.addf %458, %459 : vector<2x128xf32>
    %461 = vector.extract_strided_slice %460 {offsets = [0, 0], sizes = [2, 96], strides = [1, 1]} : vector<2x128xf32> to vector<2x96xf32>
    %462 = arith.negf %461 : vector<2x96xf32>
    %463 = math.exp %462 : vector<2x96xf32>
    %cst_102 = arith.constant 1.000000e+00 : f32
    %464 = vector.broadcast %cst_102 : f32 to vector<2x96xf32>
    %465 = arith.addf %464, %463 : vector<2x96xf32>
    %466 = arith.divf %464, %465 : vector<2x96xf32>
    %467 = vector.extract_strided_slice %466 {offsets = [0, 0], sizes = [2, 32], strides = [1, 1]} : vector<2x96xf32> to vector<2x32xf32>
    %468 = vector.extract_strided_slice %466 {offsets = [0, 32], sizes = [2, 32], strides = [1, 1]} : vector<2x96xf32> to vector<2x32xf32>
    %469 = vector.extract_strided_slice %466 {offsets = [0, 64], sizes = [2, 32], strides = [1, 1]} : vector<2x96xf32> to vector<2x32xf32>
    %470 = vector.extract_strided_slice %460 {offsets = [0, 96], sizes = [2, 32], strides = [1, 1]} : vector<2x128xf32> to vector<2x32xf32>
    %471 = math.tanh %470 : vector<2x32xf32>
    %472 = arith.mulf %468, %454 : vector<2x32xf32>
    %473 = arith.mulf %467, %471 : vector<2x32xf32>
    %474 = arith.addf %472, %473 : vector<2x32xf32>
    %475 = math.tanh %474 : vector<2x32xf32>
    %476 = arith.mulf %469, %475 : vector<2x32xf32>
    %c0_103 = arith.constant 0 : index
    %c192 = arith.constant 192 : index
    %477 = vector.load %arg16[%c0_103, %c192] : memref<2x256xf32, #tpu.memory_space<vmem>>, vector<2x32xf32>
    tpu.vector_store %arg16[%c0_103, %c192], %476 {strides = array<i32>} : memref<2x256xf32, #tpu.memory_space<vmem>>, vector<2x32xf32>,
    %478 = vector.extract_strided_slice %337 {offsets = [14, 0], sizes = [2, 128], strides = [1, 1]} : vector<16x128xf32> to vector<2x128xf32>
    %cst_104 = arith.constant dense<0.000000e+00> : vector<2x128xf32>
    %479 = tpu.matmul %476, %338, %cst_104 {dimension_numbers = #tpu.dot_dimension_numbers<[1], [0], [0], [1], [0, 0, 1, 1], [], []>} : vector<2x32xf32>, vector<32x128xf32>, vector<2x128xf32> -> vector<2x128xf32>
    %480 = arith.addf %478, %479 : vector<2x128xf32>
    %481 = vector.extract_strided_slice %480 {offsets = [0, 0], sizes = [2, 96], strides = [1, 1]} : vector<2x128xf32> to vector<2x96xf32>
    %482 = arith.negf %481 : vector<2x96xf32>
    %483 = math.exp %482 : vector<2x96xf32>
    %cst_105 = arith.constant 1.000000e+00 : f32
    %484 = vector.broadcast %cst_105 : f32 to vector<2x96xf32>
    %485 = arith.addf %484, %483 : vector<2x96xf32>
    %486 = arith.divf %484, %485 : vector<2x96xf32>
    %487 = vector.extract_strided_slice %486 {offsets = [0, 0], sizes = [2, 32], strides = [1, 1]} : vector<2x96xf32> to vector<2x32xf32>
    %488 = vector.extract_strided_slice %486 {offsets = [0, 32], sizes = [2, 32], strides = [1, 1]} : vector<2x96xf32> to vector<2x32xf32>
    %489 = vector.extract_strided_slice %486 {offsets = [0, 64], sizes = [2, 32], strides = [1, 1]} : vector<2x96xf32> to vector<2x32xf32>
    %490 = vector.extract_strided_slice %480 {offsets = [0, 96], sizes = [2, 32], strides = [1, 1]} : vector<2x128xf32> to vector<2x32xf32>
    %491 = math.tanh %490 : vector<2x32xf32>
    %492 = arith.mulf %488, %474 : vector<2x32xf32>
    %493 = arith.mulf %487, %491 : vector<2x32xf32>
    %494 = arith.addf %492, %493 : vector<2x32xf32>
    %495 = math.tanh %494 : vector<2x32xf32>
    %496 = arith.mulf %489, %495 : vector<2x32xf32>
    %c0_106 = arith.constant 0 : index
    %c224 = arith.constant 224 : index
    %497 = vector.load %arg16[%c0_106, %c224] : memref<2x256xf32, #tpu.memory_space<vmem>>, vector<2x32xf32>
    tpu.vector_store %arg16[%c0_106, %c224], %496 {strides = array<i32>} : memref<2x256xf32, #tpu.memory_space<vmem>>, vector<2x32xf32>,
    %c0_107 = arith.constant 0 : index
    %c0_108 = arith.constant 0 : index
    %498 = vector.load %arg16[%c0_107, %c0_108] : memref<2x256xf32, #tpu.memory_space<vmem>>, vector<2x256xf32>
    %c0_109 = arith.constant 0 : index
    %c0_110 = arith.constant 0 : index
    %499 = vector.load %arg10[%c0_109, %c0_110] : memref<256x256xf32, #tpu.memory_space<vmem>>, vector<256x256xf32>
    %cst_111 = arith.constant dense<0.000000e+00> : vector<2x256xf32>
    %500 = tpu.matmul %498, %499, %cst_111 {dimension_numbers = #tpu.dot_dimension_numbers<[1], [0], [0], [1], [0, 0, 1, 1], [], []>} : vector<2x256xf32>, vector<256x256xf32>, vector<2x256xf32> -> vector<2x256xf32>
    %c0_112 = arith.constant 0 : index
    %c0_113 = arith.constant 0 : index
    %501 = vector.load %arg11[%c0_112, %c0_113] : memref<1x256xf32, #tpu.memory_space<vmem>>, vector<1x256xf32>
    %502 = vector.broadcast %501 : vector<1x256xf32> to vector<2x256xf32>
    %503 = arith.addf %500, %502 : vector<2x256xf32>
    %cst_114 = arith.constant 0.000000e+00 : f32
    %504 = vector.broadcast %cst_114 : f32 to vector<2x256xf32>
    %505 = arith.maximumf %503, %504 : vector<2x256xf32>
    %c0_115 = arith.constant 0 : index
    %c0_116 = arith.constant 0 : index
    %506 = vector.load %arg12[%c0_115, %c0_116] : memref<256x128xf32, #tpu.memory_space<vmem>>, vector<256x128xf32>
    %cst_117 = arith.constant dense<0.000000e+00> : vector<2x128xf32>
    %507 = tpu.matmul %505, %506, %cst_117 {dimension_numbers = #tpu.dot_dimension_numbers<[1], [0], [0], [1], [0, 0, 1, 1], [], []>} : vector<2x256xf32>, vector<256x128xf32>, vector<2x128xf32> -> vector<2x128xf32>
    %c0_118 = arith.constant 0 : index
    %c0_119 = arith.constant 0 : index
    %508 = vector.load %arg13[%c0_118, %c0_119] : memref<1x128xf32, #tpu.memory_space<vmem>>, vector<1x128xf32>
    %509 = vector.broadcast %508 : vector<1x128xf32> to vector<2x128xf32>
    %510 = arith.addf %507, %509 : vector<2x128xf32>
    %c0_120 = arith.constant 0 : index
    %c0_121 = arith.constant 0 : index
    %511 = vector.load %arg14[%c0_120, %c0_121] : memref<2x128xf32, #tpu.memory_space<vmem>>, vector<2x128xf32>
    tpu.vector_store %arg14[%c0_120, %c0_121], %510 {strides = array<i32>} : memref<2x128xf32, #tpu.memory_space<vmem>>, vector<2x128xf32>,
    return
  }
}

</mosaic_0001>

<llo_original>
// kernel: tpu_custom_call.1
$region0: #{tpu_custom_call.1}
  #allocation0 [shape = 'u32[]', space=smem, size = 0x4, offset = 0x4, fixed_abs, tag = 'smem constant byte address 0x4 - core index']
  #allocation1 [shape = 'u32[72,128]{1,0:T(1,128)}', space=vmem, size = 0x9000, scoped, tag = 'internal scratch']
  #allocation2 [shape = 'f32[16,32]{1,0:T(8,128)}', space=vmem, size = 0x2000, scoped, tag = 'scratch operand']
  #allocation3 [shape = 'f32[2,256]{1,0:T(2,128)}', space=vmem, size = 0x800, scoped, tag = 'scratch operand']
  %s0 = inlined_call_operand.vmem [shape: f32[16,4], index: 0, kind: input, shape index: {}]
  %s1 = inlined_call_operand.vmem [shape: f32[4,128], index: 1, kind: input, shape index: {}]
  %s2 = inlined_call_operand.vmem [shape: f32[1,128], index: 2, kind: input, shape index: {}]
  %s3 = inlined_call_operand.hbm [shape: f32[32,128], index: 3, kind: input, shape index: {}]
  %s4 = inlined_call_operand.hbm [shape: f32[32,128], index: 4, kind: input, shape index: {}]
  %s5 = inlined_call_operand.vmem [shape: f32[1,128], index: 5, kind: input, shape index: {}]
  %s6 = inlined_call_operand.hbm [shape: f32[32,128], index: 6, kind: input, shape index: {}]
  %s7 = inlined_call_operand.hbm [shape: f32[32,128], index: 7, kind: input, shape index: {}]
  %s8 = inlined_call_operand.vmem [shape: f32[1,128], index: 8, kind: input, shape index: {}]
  %s9 = inlined_call_operand.hbm [shape: f32[32,128], index: 9, kind: input, shape index: {}]
  %s10 = inlined_call_operand.hbm [shape: f32[256,256], index: 10, kind: input, shape index: {}]
  %s11 = inlined_call_operand.vmem [shape: f32[1,256], index: 11, kind: input, shape index: {}]
  %s12 = inlined_call_operand.hbm [shape: f32[256,128], index: 12, kind: input, shape index: {}]
  %s13 = inlined_call_operand.vmem [shape: f32[1,128], index: 13, kind: input, shape index: {}]
  %s14 = inlined_call_operand.hbm [shape: f32[2,128], index: 14, kind: output, shape index: {}]
  %s15 = sld [smem:[#allocation0]]
  $region94: #{tpu_custom_call.1} parent=0
    _
  %s17 = ssub.s32 1, %s15
  %s18 = scalar_select 0, %s17, %s15
  $region1: #{tpu_custom_call.1} parent=0
    #allocation4 [shape = 'u8[16384]{0}', space=vmem, size = 0x4000, scoped, tag = 'input window, operand 3, single buffered']
    #allocation5 [shape = 's32[1]{0}', space=sflag, size = 0x4, scoped, tag = 'scoped memory for tpu_custom_call.1']
    #allocation6 [shape = 's32[1]{0}', space=sflag, size = 0x4, scoped, tag = 'scoped memory for tpu_custom_call.1']
    #allocation7 [shape = 'u8[16384]{0}', space=vmem, size = 0x4000, scoped, tag = 'input window, operand 4, single buffered']
    #allocation8 [shape = 's32[1]{0}', space=sflag, size = 0x4, scoped, tag = 'scoped memory for tpu_custom_call.1']
    #allocation9 [shape = 'u8[16384]{0}', space=vmem, size = 0x4000, scoped, tag = 'input window, operand 6, single buffered']
    #allocation10 [shape = 'u8[16384]{0}', space=vmem, size = 0x4000, scoped, tag = 'input window, operand 7, single buffered']
    #allocation11 [shape = 's32[1]{0}', space=sflag, size = 0x4, scoped, tag = 'scoped memory for tpu_custom_call.1']
    #allocation12 [shape = 'u8[16384]{0}', space=vmem, size = 0x4000, scoped, tag = 'input window, operand 9, single buffered']
    #allocation13 [shape = 'u8[262144]{0}', space=vmem, size = 0x40000, scoped, tag = 'input window, operand 10, single buffered']
    #allocation14 [shape = 's32[1]{0}', space=sflag, size = 0x4, scoped, tag = 'scoped memory for tpu_custom_call.1']
    #allocation15 [shape = 'u8[131072]{0}', space=vmem, size = 0x20000, scoped, tag = 'input window, operand 12, single buffered']
    #allocation16 [shape = 'u8[1024]{0}', space=vmem, size = 0x400, scoped, tag = 'output window, operand 0, single buffered']
    %19 = vsyncpa [#allocation5], 0
    %20 = vsyncpa [#allocation8], 0
    %21 = vsyncpa [#allocation11], 0
    %22 = vsyncpa [#allocation14], 0
    %23 = vsyncpa [#allocation6], 0
    // Predicated region
    $region2: #{tpu_custom_call.1} parent=1 // pred_check
      _
    $region3: #{tpu_custom_call.1} parent=1 // pred_check_branch
      %25 = sbr.rel (0) target = $region5
    $region4: #{tpu_custom_call.1} parent=1 // pred_region
      _
    $region5: #{tpu_custom_call.1} parent=1 // pred_fallthru
      _
    // Predicated region
    $region6: #{tpu_custom_call.1} parent=1 // pred_check
      _
    $region7: #{tpu_custom_call.1} parent=1 // pred_check_branch
      %27 = sbr.rel (0) target = $region9
    $region8: #{tpu_custom_call.1} parent=1 // pred_region
      _
    $region9: #{tpu_custom_call.1} parent=1 // pred_fallthru
      _
    // Predicated region
    $region10: #{tpu_custom_call.1} parent=1 // pred_check
      _
    $region11: #{tpu_custom_call.1} parent=1 // pred_check_branch
      %29 = sbr.rel (0) target = $region13
    $region12: #{tpu_custom_call.1} parent=1 // pred_region
      _
    $region13: #{tpu_custom_call.1} parent=1 // pred_fallthru
      _
    // Predicated region
    $region14: #{tpu_custom_call.1} parent=1 // pred_check
      _
    $region15: #{tpu_custom_call.1} parent=1 // pred_check_branch
      %31 = sbr.rel (0) target = $region17
    $region16: #{tpu_custom_call.1} parent=1 // pred_region
      %33 = vsyncadd [#allocation5], 0
      %s34 = sshll.u32 %s3, 4
      %s35 = int_to_ptr.hbm [resolvable:$true] %s34
      %s36 = sshll.u32 [#allocation4], 4
      %s37 = int_to_ptr.vmem [resolvable:$true] %s36
      %42 = dma.hbm_to_vmem [thread:$0]  %s35, 512, %s37, [#allocation5], 128, 128, 8
    $region17: #{tpu_custom_call.1} parent=1 // pred_fallthru
      _
    // Predicated region
    $region18: #{tpu_custom_call.1} parent=1 // pred_check
      _
    $region19: #{tpu_custom_call.1} parent=1 // pred_check_branch
      %44 = sbr.rel (0) target = $region21
    $region20: #{tpu_custom_call.1} parent=1 // pred_region
      %46 = vsyncadd [#allocation8], 0
      %s47 = sshll.u32 %s4, 4
      %s48 = int_to_ptr.hbm [resolvable:$true] %s47
      %s49 = sshll.u32 [#allocation7], 4
      %s50 = int_to_ptr.vmem [resolvable:$true] %s49
      %55 = dma.hbm_to_vmem [thread:$0]  %s48, 512, %s50, [#allocation8], 128, 128, 8
    $region21: #{tpu_custom_call.1} parent=1 // pred_fallthru
      _
    // Predicated region
    $region22: #{tpu_custom_call.1} parent=1 // pred_check
      _
    $region23: #{tpu_custom_call.1} parent=1 // pred_check_branch
      %57 = sbr.rel (0) target = $region25
    $region24: #{tpu_custom_call.1} parent=1 // pred_region
      _
    $region25: #{tpu_custom_call.1} parent=1 // pred_fallthru
      _
    // Predicated region
    $region26: #{tpu_custom_call.1} parent=1 // pred_check
      _
    $region27: #{tpu_custom_call.1} parent=1 // pred_check_branch
      %59 = sbr.rel (0) target = $region29
    $region28: #{tpu_custom_call.1} parent=1 // pred_region
      %61 = vsyncadd [#allocation8], 0
      %s62 = sshll.u32 %s6, 4
      %s63 = int_to_ptr.hbm [resolvable:$true] %s62
      %s64 = sshll.u32 [#allocation9], 4
      %s65 = int_to_ptr.vmem [resolvable:$true] %s64
      %70 = dma.hbm_to_vmem [thread:$0]  %s63, 512, %s65, [#allocation8], 128, 128, 8
    $region29: #{tpu_custom_call.1} parent=1 // pred_fallthru
      _
    // Predicated region
    $region30: #{tpu_custom_call.1} parent=1 // pred_check
      _
    $region31: #{tpu_custom_call.1} parent=1 // pred_check_branch
      %72 = sbr.rel (0) target = $region33
    $region32: #{tpu_custom_call.1} parent=1 // pred_region
      %74 = vsyncadd [#allocation11], 0
      %s75 = sshll.u32 %s7, 4
      %s76 = int_to_ptr.hbm [resolvable:$true] %s75
      %s77 = sshll.u32 [#allocation10], 4
      %s78 = int_to_ptr.vmem [resolvable:$true] %s77
      %83 = dma.hbm_to_vmem [thread:$0]  %s76, 512, %s78, [#allocation11], 128, 128, 8
    $region33: #{tpu_custom_call.1} parent=1 // pred_fallthru
      _
    // Predicated region
    $region34: #{tpu_custom_call.1} parent=1 // pred_check
      _
    $region35: #{tpu_custom_call.1} parent=1 // pred_check_branch
      %85 = sbr.rel (0) target = $region37
    $region36: #{tpu_custom_call.1} parent=1 // pred_region
      _
    $region37: #{tpu_custom_call.1} parent=1 // pred_fallthru
      _
    // Predicated region
    $region38: #{tpu_custom_call.1} parent=1 // pred_check
      _
    $region39: #{tpu_custom_call.1} parent=1 // pred_check_branch
      %87 = sbr.rel (0) target = $region41
    $region40: #{tpu_custom_call.1} parent=1 // pred_region
      %89 = vsyncadd [#allocation11], 0
      %s90 = sshll.u32 %s9, 4
      %s91 = int_to_ptr.hbm [resolvable:$true] %s90
      %s92 = sshll.u32 [#allocation12], 4
      %s93 = int_to_ptr.vmem [resolvable:$true] %s92
      %98 = dma.hbm_to_vmem [thread:$0]  %s91, 512, %s93, [#allocation11], 128, 128, 8
    $region41: #{tpu_custom_call.1} parent=1 // pred_fallthru
      _
    // Predicated region
    $region42: #{tpu_custom_call.1} parent=1 // pred_check
      _
    $region43: #{tpu_custom_call.1} parent=1 // pred_check_branch
      %100 = sbr.rel (0) target = $region45
    $region44: #{tpu_custom_call.1} parent=1 // pred_region
      %102 = vsyncadd [#allocation14], 0
      %s103 = sshll.u32 %s10, 4
      %s104 = int_to_ptr.hbm [resolvable:$true] %s103
      %s105 = sshll.u32 [#allocation13], 4
      %s106 = int_to_ptr.vmem [resolvable:$true] %s105
      %111 = dma.hbm_to_vmem [thread:$0]  %s104, 8192, %s106, [#allocation14], 256, 256, 16
    $region45: #{tpu_custom_call.1} parent=1 // pred_fallthru
      _
    // Predicated region
    $region46: #{tpu_custom_call.1} parent=1 // pred_check
      _
    $region47: #{tpu_custom_call.1} parent=1 // pred_check_branch
      %113 = sbr.rel (0) target = $region49
    $region48: #{tpu_custom_call.1} parent=1 // pred_region
      _
    $region49: #{tpu_custom_call.1} parent=1 // pred_fallthru
      _
    // Predicated region
    $region50: #{tpu_custom_call.1} parent=1 // pred_check
      _
    $region51: #{tpu_custom_call.1} parent=1 // pred_check_branch
      %115 = sbr.rel (0) target = $region53
    $region52: #{tpu_custom_call.1} parent=1 // pred_region
      %117 = vsyncadd [#allocation14], 0
      %s118 = sshll.u32 %s12, 4
      %s119 = int_to_ptr.hbm [resolvable:$true] %s118
      %s120 = sshll.u32 [#allocation15], 4
      %s121 = int_to_ptr.vmem [resolvable:$true] %s120
      %126 = dma.hbm_to_vmem [thread:$0]  %s119, 4096, %s121, [#allocation14], 128, 128, 8
    $region53: #{tpu_custom_call.1} parent=1 // pred_fallthru
      _
    // Predicated region
    $region54: #{tpu_custom_call.1} parent=1 // pred_check
      _
    $region55: #{tpu_custom_call.1} parent=1 // pred_check_branch
      %128 = sbr.rel (0) target = $region57
    $region56: #{tpu_custom_call.1} parent=1 // pred_region
      _
    $region57: #{tpu_custom_call.1} parent=1 // pred_fallthru
      _
    // Predicated region
    $region58: #{tpu_custom_call.1} parent=1 // pred_check
      _
    $region59: #{tpu_custom_call.1} parent=1 // pred_check_branch
      %130 = sbr.rel (0) target = $region61
    $region60: #{tpu_custom_call.1} parent=1 // pred_region
      %132 = dma.done [#allocation5], 512
    $region61: #{tpu_custom_call.1} parent=1 // pred_fallthru
      _
    // Predicated region
    $region62: #{tpu_custom_call.1} parent=1 // pred_check
      _
    $region63: #{tpu_custom_call.1} parent=1 // pred_check_branch
      %134 = sbr.rel (0) target = $region65
    $region64: #{tpu_custom_call.1} parent=1 // pred_region
      %136 = dma.done [#allocation8], 512
    $region65: #{tpu_custom_call.1} parent=1 // pred_fallthru
      _
    // Predicated region
    $region66: #{tpu_custom_call.1} parent=1 // pred_check
      _
    $region67: #{tpu_custom_call.1} parent=1 // pred_check_branch
      %138 = sbr.rel (0) target = $region69
    $region68: #{tpu_custom_call.1} parent=1 // pred_region
      %140 = dma.done [#allocation8], 512
    $region69: #{tpu_custom_call.1} parent=1 // pred_fallthru
      _
    // Predicated region
    $region70: #{tpu_custom_call.1} parent=1 // pred_check
      _
    $region71: #{tpu_custom_call.1} parent=1 // pred_check_branch
      %142 = sbr.rel (0) target = $region73
    $region72: #{tpu_custom_call.1} parent=1 // pred_region
      %144 = dma.done [#allocation11], 512
    $region73: #{tpu_custom_call.1} parent=1 // pred_fallthru
      _
    // Predicated region
    $region74: #{tpu_custom_call.1} parent=1 // pred_check
      _
    $region75: #{tpu_custom_call.1} parent=1 // pred_check_branch
      %146 = sbr.rel (0) target = $region77
    $region76: #{tpu_custom_call.1} parent=1 // pred_region
      %148 = dma.done [#allocation11], 512
    $region77: #{tpu_custom_call.1} parent=1 // pred_fallthru
      _
    // Predicated region
    $region78: #{tpu_custom_call.1} parent=1 // pred_check
      _
    $region79: #{tpu_custom_call.1} parent=1 // pred_check_branch
      %150 = sbr.rel (0) target = $region81
    $region80: #{tpu_custom_call.1} parent=1 // pred_region
      %152 = dma.done [#allocation14], 8192
    $region81: #{tpu_custom_call.1} parent=1 // pred_fallthru
      _
    // Predicated region
    $region82: #{tpu_custom_call.1} parent=1 // pred_check
      _
    $region83: #{tpu_custom_call.1} parent=1 // pred_check_branch
      %154 = sbr.rel (0) target = $region85
    $region84: #{tpu_custom_call.1} parent=1 // pred_region
      %156 = dma.done [#allocation14], 4096
    $region85: #{tpu_custom_call.1} parent=1 // pred_fallthru
      _
    %v157 = vld [vmem:[%s0] sm:$0xff]
    %v158 = vld [vmem:[%s0 + $0x8] sm:$0xff]
    %v159 = vld [vmem:[%s1] sm:$0xf]
    %v160 = vld [vmem:[%s2] sm:$0x1]
    %v162 = vperm.slane %v160, 0
    %vm164 = vcmask 31744
    %v166 = vsel %vm164, %v157, 0
    %v169 = vsel %vm164, %v158, 0
    %vm171 = vcmask 1043456
    %v173 = vsel %vm171, %v159, 0
    %175 = vmatpush.msra.mxu0 0.0
    %176 = vmatpush.msra.mxu0 0.0
    %177 = vmatpush.msra.mxu0 0.0
    %178 = vmatpush.msra.mxu0 0.0
    %179 = vmatpush.msra.mxu0 0.0
    %180 = vmatpush.msra.mxu0 0.0
    %181 = vmatpush.msra.mxu0 0.0
    %182 = vmatpush.msra.mxu0 0.0
    %183 = vmatpush.msra.mxu0 0.0
    %184 = vmatpush.msra.mxu0 0.0
    %185 = vmatpush.msra.mxu0 0.0
    %186 = vmatpush.msra.mxu0 0.0
    %187 = vmatpush.msra.mxu0 0.0
    %188 = vmatpush.msra.mxu0 0.0
    %189 = vmatpush.msra.mxu0 0.0
    %190 = vmatpush.msra.mxu0 %v173
    %191 = vmatmul.f32.gmra.mxu0 %v166
    %v192 = vpop.f32.mrf.mxu0
    %v193 = vadd.f32 %v162, %v192
    %194 = vmatmul.f32.gmra.mxu0 %v169
    %v195 = vpop.f32.mrf.mxu0
    %v196 = vadd.f32 %v162, %v195
    %197 = vdwg.mxu0
    %v198 = vld [vmem:[#allocation4] sm:$0xff]
    %v199 = vld [vmem:[#allocation4 + $0x8] sm:$0xff]
    %v200 = vld [vmem:[#allocation4 + $0x10] sm:$0xff]
    %v201 = vld [vmem:[#allocation4 + $0x18] sm:$0xff]
    %v202 = vxor.u32 %v193, 2147483648
    %v203 = vmul.f32 %v202, 1.442695
    %v204 = vpow.pop %v203
    %v205 = vadd.f32 %v204, 1.0
    %v206 = vrcp.pop %v205
    %v207 = vmul.f32 %v205, %v206
    %v208 = vsub.f32 1.0, %v207
    %v209 = vmul.f32 %v206, %v208
    %v210 = vadd.f32 %v206, %v209
    %vm211 = vweird.f32 %v205
    %vm212 = vweird.f32 %v206
    %vm213 = vmor %vm211, %vm212
    %v214 = vsel %vm213, %v206, %v210
    %v215 = vand.u32 2147483647, %v205
    %vm216 = vcmp.eq.f32.partialorder %v215, 8.507059e+37
    %v217 = vand.u32 %v205, 2147483648
    %v218 = vor.u32 1.1754944e-38, %v217
    %v219 = vsel %vm216, %v218, %v214
    %v220 = vmul.f32 1.0, %v219
    %v221 = vtanh.pop %v193
    %v222 = vmul.f32 %v220, 0.0
    %224 = vrot.lane.b32.xlu0 %v221, 32
    %v225 = vpop.permute.xlu0 %224
    %v227 = vmul.f32 %v220, %v225
    %229 = vrot.lane.b32.xlu0 %v227, 32
    %v230 = vpop.permute.xlu0 %229
    %v232 = vadd.f32 %v222, %v230
    %v233 = vtanh.pop %v232
    %235 = vrot.lane.b32.xlu0 %v233, 32
    %v236 = vpop.permute.xlu0 %235
    %v238 = vmul.f32 %v220, %v236
    %240 = vrot.lane.b32.xlu0 %v238, 64
    %v241 = vpop.permute.xlu0 %240
    %vm243 = vcmask 254976
    %244 = vst.msk [vmem:[#allocation2] sm:$0x3] %vm243, %v241
    %vm245 = vcmask 261120
    %v246 = vsel %vm245, %v241, 0
    %248 = vmatpush.msra.mxu0 0.0
    %249 = vmatpush.msra.mxu0 0.0
    %250 = vmatpush.msra.mxu0 0.0
    %251 = vmatpush.msra.mxu0 0.0
    %252 = vmatpush.msra.mxu0 0.0
    %253 = vmatpush.msra.mxu0 0.0
    %254 = vmatpush.msra.mxu0 0.0
    %255 = vmatpush.msra.mxu0 0.0
    %256 = vmatpush.msra.mxu0 0.0
    %257 = vmatpush.msra.mxu0 0.0
    %258 = vmatpush.msra.mxu0 0.0
    %259 = vmatpush.msra.mxu0 0.0
    %260 = vmatpush.msra.mxu0 %v201
    %261 = vmatpush.msra.mxu0 %v200
    %262 = vmatpush.msra.mxu0 %v199
    %263 = vmatpush.msra.mxu0 %v198
    %264 = vmatmul.f32.gmra.mxu0 %v246
    %v265 = vpop.f32.mrf.mxu0
    %v266 = vadd.f32 0.0, %v265
    %267 = vdwg.mxu0
    %v269 = vrot.slane %v266, 6
    %v271 = vadd.f32 %v193, %v269
    %v272 = vxor.u32 %v271, 2147483648
    %v273 = vmul.f32 %v272, 1.442695
    %v274 = vpow.pop %v273
    %v275 = vadd.f32 %v274, 1.0
    %v276 = vrcp.pop %v275
    %v277 = vmul.f32 %v275, %v276
    %v278 = vsub.f32 1.0, %v277
    %v279 = vmul.f32 %v276, %v278
    %v280 = vadd.f32 %v276, %v279
    %vm281 = vweird.f32 %v275
    %vm282 = vweird.f32 %v276
    %vm283 = vmor %vm281, %vm282
    %v284 = vsel %vm283, %v276, %v280
    %v285 = vand.u32 2147483647, %v275
    %vm286 = vcmp.eq.f32.partialorder %v285, 8.507059e+37
    %v287 = vand.u32 %v275, 2147483648
    %v288 = vor.u32 1.1754944e-38, %v287
    %v289 = vsel %vm286, %v288, %v284
    %v290 = vmul.f32 1.0, %v289
    %v291 = vtanh.pop %v271
    %v293 = vrot.slane %v232, 6
    %v295 = vmul.f32 %v290, %v293
    %297 = vrot.lane.b32.xlu0 %v291, 32
    %v298 = vpop.permute.xlu0 %297
    %v300 = vmul.f32 %v290, %v298
    %302 = vrot.lane.b32.xlu0 %v300, 32
    %v303 = vpop.permute.xlu0 %302
    %v305 = vadd.f32 %v295, %v303
    %v306 = vtanh.pop %v305
    %308 = vrot.lane.b32.xlu0 %v306, 32
    %v309 = vpop.permute.xlu0 %308
    %v311 = vmul.f32 %v290, %v309
    %313 = vrot.lane.b32.xlu0 %v311, 64
    %v314 = vpop.permute.xlu0 %313
    %vm316 = vcmask 257026
    %317 = vst.msk [vmem:[#allocation2] sm:$0xc] %vm316, %v314
    %v318 = vrot.slane %v311, 2
    %319 = vrot.lane.b32.xlu0 %v318, 64
    %v320 = vpop.permute.xlu0 %319
    %v321 = vsel %vm245, %v320, 0
    %323 = vmatpush.msra.mxu0 0.0
    %324 = vmatpush.msra.mxu0 0.0
    %325 = vmatpush.msra.mxu0 0.0
    %326 = vmatpush.msra.mxu0 0.0
    %327 = vmatpush.msra.mxu0 0.0
    %328 = vmatpush.msra.mxu0 0.0
    %329 = vmatpush.msra.mxu0 0.0
    %330 = vmatpush.msra.mxu0 0.0
    %331 = vmatpush.msra.mxu0 0.0
    %332 = vmatpush.msra.mxu0 0.0
    %333 = vmatpush.msra.mxu0 0.0
    %334 = vmatpush.msra.mxu0 0.0
    %335 = vmatpush.msra.mxu0 %v201
    %336 = vmatpush.msra.mxu0 %v200
    %337 = vmatpush.msra.mxu0 %v199
    %338 = vmatpush.msra.mxu0 %v198
    %339 = vmatmul.f32.gmra.mxu0 %v321
    %v340 = vpop.f32.mrf.mxu0
    %v341 = vadd.f32 0.0, %v340
    %342 = vdwg.mxu0
    %v344 = vrot.slane %v341, 4
    %v346 = vadd.f32 %v193, %v344
    %v347 = vxor.u32 %v346, 2147483648
    %v348 = vmul.f32 %v347, 1.442695
    %v349 = vpow.pop %v348
    %v350 = vadd.f32 %v349, 1.0
    %v351 = vrcp.pop %v350
    %v352 = vmul.f32 %v350, %v351
    %v353 = vsub.f32 1.0, %v352
    %v354 = vmul.f32 %v351, %v353
    %v355 = vadd.f32 %v351, %v354
    %vm356 = vweird.f32 %v350
    %vm357 = vweird.f32 %v351
    %vm358 = vmor %vm356, %vm357
    %v359 = vsel %vm358, %v351, %v355
    %v360 = vand.u32 2147483647, %v350
    %vm361 = vcmp.eq.f32.partialorder %v360, 8.507059e+37
    %v362 = vand.u32 %v350, 2147483648
    %v363 = vor.u32 1.1754944e-38, %v362
    %v364 = vsel %vm361, %v363, %v359
    %v365 = vmul.f32 1.0, %v364
    %v366 = vtanh.pop %v346
    %v368 = vrot.slane %v305, 6
    %v370 = vmul.f32 %v365, %v368
    %372 = vrot.lane.b32.xlu0 %v366, 32
    %v373 = vpop.permute.xlu0 %372
    %v375 = vmul.f32 %v365, %v373
    %377 = vrot.lane.b32.xlu0 %v375, 32
    %v378 = vpop.permute.xlu0 %377
    %v380 = vadd.f32 %v370, %v378
    %v381 = vtanh.pop %v380
    %383 = vrot.lane.b32.xlu0 %v381, 32
    %v384 = vpop.permute.xlu0 %383
    %v386 = vmul.f32 %v365, %v384
    %388 = vrot.lane.b32.xlu0 %v386, 64
    %v389 = vpop.permute.xlu0 %388
    %vm391 = vcmask 259076
    %392 = vst.msk [vmem:[#allocation2] sm:$0x30] %vm391, %v389
    %v393 = vrot.slane %v386, 4
    %394 = vrot.lane.b32.xlu0 %v393, 64
    %v395 = vpop.permute.xlu0 %394
    %v396 = vsel %vm245, %v395, 0
    %398 = vmatpush.msra.mxu0 0.0
    %399 = vmatpush.msra.mxu0 0.0
    %400 = vmatpush.msra.mxu0 0.0
    %401 = vmatpush.msra.mxu0 0.0
    %402 = vmatpush.msra.mxu0 0.0
    %403 = vmatpush.msra.mxu0 0.0
    %404 = vmatpush.msra.mxu0 0.0
    %405 = vmatpush.msra.mxu0 0.0
    %406 = vmatpush.msra.mxu0 0.0
    %407 = vmatpush.msra.mxu0 0.0
    %408 = vmatpush.msra.mxu0 0.0
    %409 = vmatpush.msra.mxu0 0.0
    %410 = vmatpush.msra.mxu0 %v201
    %411 = vmatpush.msra.mxu0 %v200
    %412 = vmatpush.msra.mxu0 %v199
    %413 = vmatpush.msra.mxu0 %v198
    %414 = vmatmul.f32.gmra.mxu0 %v396
    %v415 = vpop.f32.mrf.mxu0
    %v416 = vadd.f32 0.0, %v415
    %417 = vdwg.mxu0
    %v419 = vrot.slane %v416, 2
    %v421 = vadd.f32 %v193, %v419
    %v422 = vxor.u32 %v421, 2147483648
    %v423 = vmul.f32 %v422, 1.442695
    %v424 = vpow.pop %v423
    %v425 = vadd.f32 %v424, 1.0
    %v426 = vrcp.pop %v425
    %v427 = vmul.f32 %v425, %v426
    %v428 = vsub.f32 1.0, %v427
    %v429 = vmul.f32 %v426, %v428
    %v430 = vadd.f32 %v426, %v429
    %vm431 = vweird.f32 %v425
    %vm432 = vweird.f32 %v426
    %vm433 = vmor %vm431, %vm432
    %v434 = vsel %vm433, %v426, %v430
    %v435 = vand.u32 2147483647, %v425
    %vm436 = vcmp.eq.f32.partialorder %v435, 8.507059e+37
    %v437 = vand.u32 %v425, 2147483648
    %v438 = vor.u32 1.1754944e-38, %v437
    %v439 = vsel %vm436, %v438, %v434
    %v440 = vmul.f32 1.0, %v439
    %v441 = vtanh.pop %v421
    %v443 = vrot.slane %v380, 6
    %v445 = vmul.f32 %v440, %v443
    %447 = vrot.lane.b32.xlu0 %v441, 32
    %v448 = vpop.permute.xlu0 %447
    %v450 = vmul.f32 %v440, %v448
    %452 = vrot.lane.b32.xlu0 %v450, 32
    %v453 = vpop.permute.xlu0 %452
    %v455 = vadd.f32 %v445, %v453
    %v456 = vtanh.pop %v455
    %458 = vrot.lane.b32.xlu0 %v456, 32
    %v459 = vpop.permute.xlu0 %458
    %v461 = vmul.f32 %v440, %v459
    %463 = vrot.lane.b32.xlu0 %v461, 64
    %v464 = vpop.permute.xlu0 %463
    %vm466 = vcmask 261126
    %467 = vst.msk [vmem:[#allocation2] sm:$0xc0] %vm466, %v464
    %v468 = vrot.slane %v461, 6
    %469 = vrot.lane.b32.xlu0 %v468, 64
    %v470 = vpop.permute.xlu0 %469
    %v471 = vsel %vm245, %v470, 0
    %473 = vmatpush.msra.mxu0 0.0
    %474 = vmatpush.msra.mxu0 0.0
    %475 = vmatpush.msra.mxu0 0.0
    %476 = vmatpush.msra.mxu0 0.0
    %477 = vmatpush.msra.mxu0 0.0
    %478 = vmatpush.msra.mxu0 0.0
    %479 = vmatpush.msra.mxu0 0.0
    %480 = vmatpush.msra.mxu0 0.0
    %481 = vmatpush.msra.mxu0 0.0
    %482 = vmatpush.msra.mxu0 0.0
    %483 = vmatpush.msra.mxu0 0.0
    %484 = vmatpush.msra.mxu0 0.0
    %485 = vmatpush.msra.mxu0 %v201
    %486 = vmatpush.msra.mxu0 %v200
    %487 = vmatpush.msra.mxu0 %v199
    %488 = vmatpush.msra.mxu0 %v198
    %489 = vmatmul.f32.gmra.mxu0 %v471
    %v490 = vpop.f32.mrf.mxu0
    %v491 = vadd.f32 0.0, %v490
    %492 = vdwg.mxu0
    %v493 = vadd.f32 %v196, %v491
    %v494 = vxor.u32 %v493, 2147483648
    %v495 = vmul.f32 %v494, 1.442695
    %v496 = vpow.pop %v495
    %v497 = vadd.f32 %v496, 1.0
    %v498 = vrcp.pop %v497
    %v499 = vmul.f32 %v497, %v498
    %v500 = vsub.f32 1.0, %v499
    %v501 = vmul.f32 %v498, %v500
    %v502 = vadd.f32 %v498, %v501
    %vm503 = vweird.f32 %v497
    %vm504 = vweird.f32 %v498
    %vm505 = vmor %vm503, %vm504
    %v506 = vsel %vm505, %v498, %v502
    %v507 = vand.u32 2147483647, %v497
    %vm508 = vcmp.eq.f32.partialorder %v507, 8.507059e+37
    %v509 = vand.u32 %v497, 2147483648
    %v510 = vor.u32 1.1754944e-38, %v509
    %v511 = vsel %vm508, %v510, %v506
    %v512 = vmul.f32 1.0, %v511
    %v513 = vtanh.pop %v493
    %v515 = vrot.slane %v455, 6
    %v517 = vmul.f32 %v512, %v515
    %519 = vrot.lane.b32.xlu0 %v513, 32
    %v520 = vpop.permute.xlu0 %519
    %v522 = vmul.f32 %v512, %v520
    %524 = vrot.lane.b32.xlu0 %v522, 32
    %v525 = vpop.permute.xlu0 %524
    %v527 = vadd.f32 %v517, %v525
    %v528 = vtanh.pop %v527
    %530 = vrot.lane.b32.xlu0 %v528, 32
    %v531 = vpop.permute.xlu0 %530
    %v533 = vmul.f32 %v512, %v531
    %535 = vrot.lane.b32.xlu0 %v533, 64
    %v536 = vpop.permute.xlu0 %535
    %538 = vst.msk [vmem:[#allocation2 + $0x8] sm:$0x3] %vm243, %v536
    %v539 = vsel %vm245, %v536, 0
    %541 = vmatpush.msra.mxu0 0.0
    %542 = vmatpush.msra.mxu0 0.0
    %543 = vmatpush.msra.mxu0 0.0
    %544 = vmatpush.msra.mxu0 0.0
    %545 = vmatpush.msra.mxu0 0.0
    %546 = vmatpush.msra.mxu0 0.0
    %547 = vmatpush.msra.mxu0 0.0
    %548 = vmatpush.msra.mxu0 0.0
    %549 = vmatpush.msra.mxu0 0.0
    %550 = vmatpush.msra.mxu0 0.0
    %551 = vmatpush.msra.mxu0 0.0
    %552 = vmatpush.msra.mxu0 0.0
    %553 = vmatpush.msra.mxu0 %v201
    %554 = vmatpush.msra.mxu0 %v200
    %555 = vmatpush.msra.mxu0 %v199
    %556 = vmatpush.msra.mxu0 %v198
    %557 = vmatmul.f32.gmra.mxu0 %v539
    %v558 = vpop.f32.mrf.mxu0
    %v559 = vadd.f32 0.0, %v558
    %560 = vdwg.mxu0
    %v562 = vrot.slane %v559, 6
    %v564 = vadd.f32 %v196, %v562
    %v565 = vxor.u32 %v564, 2147483648
    %v566 = vmul.f32 %v565, 1.442695
    %v567 = vpow.pop %v566
    %v568 = vadd.f32 %v567, 1.0
    %v569 = vrcp.pop %v568
    %v570 = vmul.f32 %v568, %v569
    %v571 = vsub.f32 1.0, %v570
    %v572 = vmul.f32 %v569, %v571
    %v573 = vadd.f32 %v569, %v572
    %vm574 = vweird.f32 %v568
    %vm575 = vweird.f32 %v569
    %vm576 = vmor %vm574, %vm575
    %v577 = vsel %vm576, %v569, %v573
    %v578 = vand.u32 2147483647, %v568
    %vm579 = vcmp.eq.f32.partialorder %v578, 8.507059e+37
    %v580 = vand.u32 %v568, 2147483648
    %v581 = vor.u32 1.1754944e-38, %v580
    %v582 = vsel %vm579, %v581, %v577
    %v583 = vmul.f32 1.0, %v582
    %v584 = vtanh.pop %v564
    %v586 = vrot.slane %v527, 6
    %v588 = vmul.f32 %v583, %v586
    %590 = vrot.lane.b32.xlu0 %v584, 32
    %v591 = vpop.permute.xlu0 %590
    %v593 = vmul.f32 %v583, %v591
    %595 = vrot.lane.b32.xlu0 %v593, 32
    %v596 = vpop.permute.xlu0 %595
    %v598 = vadd.f32 %v588, %v596
    %v599 = vtanh.pop %v598
    %601 = vrot.lane.b32.xlu0 %v599, 32
    %v602 = vpop.permute.xlu0 %601
    %v604 = vmul.f32 %v583, %v602
    %606 = vrot.lane.b32.xlu0 %v604, 64
    %v607 = vpop.permute.xlu0 %606
    %609 = vst.msk [vmem:[#allocation2 + $0x8] sm:$0xc] %vm316, %v607
    %v610 = vrot.slane %v604, 2
    %611 = vrot.lane.b32.xlu0 %v610, 64
    %v612 = vpop.permute.xlu0 %611
    %v613 = vsel %vm245, %v612, 0
    %615 = vmatpush.msra.mxu0 0.0
    %616 = vmatpush.msra.mxu0 0.0
    %617 = vmatpush.msra.mxu0 0.0
    %618 = vmatpush.msra.mxu0 0.0
    %619 = vmatpush.msra.mxu0 0.0
    %620 = vmatpush.msra.mxu0 0.0
    %621 = vmatpush.msra.mxu0 0.0
    %622 = vmatpush.msra.mxu0 0.0
    %623 = vmatpush.msra.mxu0 0.0
    %624 = vmatpush.msra.mxu0 0.0
    %625 = vmatpush.msra.mxu0 0.0
    %626 = vmatpush.msra.mxu0 0.0
    %627 = vmatpush.msra.mxu0 %v201
    %628 = vmatpush.msra.mxu0 %v200
    %629 = vmatpush.msra.mxu0 %v199
    %630 = vmatpush.msra.mxu0 %v198
    %631 = vmatmul.f32.gmra.mxu0 %v613
    %v632 = vpop.f32.mrf.mxu0
    %v633 = vadd.f32 0.0, %v632
    %634 = vdwg.mxu0
    %v636 = vrot.slane %v633, 4
    %v638 = vadd.f32 %v196, %v636
    %v639 = vxor.u32 %v638, 2147483648
    %v640 = vmul.f32 %v639, 1.442695
    %v641 = vpow.pop %v640
    %v642 = vadd.f32 %v641, 1.0
    %v643 = vrcp.pop %v642
    %v644 = vmul.f32 %v642, %v643
    %v645 = vsub.f32 1.0, %v644
    %v646 = vmul.f32 %v643, %v645
    %v647 = vadd.f32 %v643, %v646
    %vm648 = vweird.f32 %v642
    %vm649 = vweird.f32 %v643
    %vm650 = vmor %vm648, %vm649
    %v651 = vsel %vm650, %v643, %v647
    %v652 = vand.u32 2147483647, %v642
    %vm653 = vcmp.eq.f32.partialorder %v652, 8.507059e+37
    %v654 = vand.u32 %v642, 2147483648
    %v655 = vor.u32 1.1754944e-38, %v654
    %v656 = vsel %vm653, %v655, %v651
    %v657 = vmul.f32 1.0, %v656
    %v658 = vtanh.pop %v638
    %v660 = vrot.slane %v598, 6
    %v662 = vmul.f32 %v657, %v660
    %664 = vrot.lane.b32.xlu0 %v658, 32
    %v665 = vpop.permute.xlu0 %664
    %v667 = vmul.f32 %v657, %v665
    %669 = vrot.lane.b32.xlu0 %v667, 32
    %v670 = vpop.permute.xlu0 %669
    %v672 = vadd.f32 %v662, %v670
    %v673 = vtanh.pop %v672
    %675 = vrot.lane.b32.xlu0 %v673, 32
    %v676 = vpop.permute.xlu0 %675
    %v678 = vmul.f32 %v657, %v676
    %680 = vrot.lane.b32.xlu0 %v678, 64
    %v681 = vpop.permute.xlu0 %680
    %683 = vst.msk [vmem:[#allocation2 + $0x8] sm:$0x30] %vm391, %v681
    %v684 = vrot.slane %v678, 4
    %685 = vrot.lane.b32.xlu0 %v684, 64
    %v686 = vpop.permute.xlu0 %685
    %v687 = vsel %vm245, %v686, 0
    %689 = vmatpush.msra.mxu0 0.0
    %690 = vmatpush.msra.mxu0 0.0
    %691 = vmatpush.msra.mxu0 0.0
    %692 = vmatpush.msra.mxu0 0.0
    %693 = vmatpush.msra.mxu0 0.0
    %694 = vmatpush.msra.mxu0 0.0
    %695 = vmatpush.msra.mxu0 0.0
    %696 = vmatpush.msra.mxu0 0.0
    %697 = vmatpush.msra.mxu0 0.0
    %698 = vmatpush.msra.mxu0 0.0
    %699 = vmatpush.msra.mxu0 0.0
    %700 = vmatpush.msra.mxu0 0.0
    %701 = vmatpush.msra.mxu0 %v201
    %702 = vmatpush.msra.mxu0 %v200
    %703 = vmatpush.msra.mxu0 %v199
    %704 = vmatpush.msra.mxu0 %v198
    %705 = vmatmul.f32.gmra.mxu0 %v687
    %v706 = vpop.f32.mrf.mxu0
    %v707 = vadd.f32 0.0, %v706
    %708 = vdwg.mxu0
    %v710 = vrot.slane %v707, 2
    %v712 = vadd.f32 %v196, %v710
    %v713 = vxor.u32 %v712, 2147483648
    %v714 = vmul.f32 %v713, 1.442695
    %v715 = vpow.pop %v714
    %v716 = vadd.f32 %v715, 1.0
    %v717 = vrcp.pop %v716
    %v718 = vmul.f32 %v716, %v717
    %v719 = vsub.f32 1.0, %v718
    %v720 = vmul.f32 %v717, %v719
    %v721 = vadd.f32 %v717, %v720
    %vm722 = vweird.f32 %v716
    %vm723 = vweird.f32 %v717
    %vm724 = vmor %vm722, %vm723
    %v725 = vsel %vm724, %v717, %v721
    %v726 = vand.u32 2147483647, %v716
    %vm727 = vcmp.eq.f32.partialorder %v726, 8.507059e+37
    %v728 = vand.u32 %v716, 2147483648
    %v729 = vor.u32 1.1754944e-38, %v728
    %v730 = vsel %vm727, %v729, %v725
    %v731 = vmul.f32 1.0, %v730
    %v732 = vtanh.pop %v712
    %v734 = vrot.slane %v672, 6
    %v736 = vmul.f32 %v731, %v734
    %738 = vrot.lane.b32.xlu0 %v732, 32
    %v739 = vpop.permute.xlu0 %738
    %v741 = vmul.f32 %v731, %v739
    %743 = vrot.lane.b32.xlu0 %v741, 32
    %v744 = vpop.permute.xlu0 %743
    %v746 = vadd.f32 %v736, %v744
    %v747 = vtanh.pop %v746
    %749 = vrot.lane.b32.xlu0 %v747, 32
    %v750 = vpop.permute.xlu0 %749
    %v752 = vmul.f32 %v731, %v750
    %754 = vrot.lane.b32.xlu0 %v752, 64
    %v755 = vpop.permute.xlu0 %754
    %757 = vst.msk [vmem:[#allocation2 + $0x8] sm:$0xc0] %vm466, %v755
    %v758 = vld [vmem:[#allocation2] sm:$0xff]
    %v759 = vld [vmem:[#allocation2 + $0x8] sm:$0xff]
    %v760 = vld [vmem:[#allocation7] sm:$0xff]
    %v761 = vld [vmem:[#allocation7 + $0x8] sm:$0xff]
    %v762 = vld [vmem:[#allocation7 + $0x10] sm:$0xff]
    %v763 = vld [vmem:[#allocation7 + $0x18] sm:$0xff]
    %v764 = vld [vmem:[%s5] sm:$0x1]
    %v766 = vperm.slane %v764, 0
    %v769 = vsel %vm245, %v758, 0
    %v772 = vsel %vm245, %v759, 0
    %774 = vmatpush.msra.mxu0 0.0
    %775 = vmatpush.msra.mxu0 0.0
    %776 = vmatpush.msra.mxu0 0.0
    %777 = vmatpush.msra.mxu0 0.0
    %778 = vmatpush.msra.mxu0 0.0
    %779 = vmatpush.msra.mxu0 0.0
    %780 = vmatpush.msra.mxu0 0.0
    %781 = vmatpush.msra.mxu0 0.0
    %782 = vmatpush.msra.mxu0 0.0
    %783 = vmatpush.msra.mxu0 0.0
    %784 = vmatpush.msra.mxu0 0.0
    %785 = vmatpush.msra.mxu0 0.0
    %786 = vmatpush.msra.mxu0 %v763
    %787 = vmatpush.msra.mxu0 %v762
    %788 = vmatpush.msra.mxu0 %v761
    %789 = vmatpush.msra.mxu0 %v760
    %790 = vmatmul.f32.gmra.mxu0 %v769
    %v791 = vpop.f32.mrf.mxu0
    %v792 = vadd.f32 %v766, %v791
    %793 = vmatmul.f32.gmra.mxu0 %v772
    %v794 = vpop.f32.mrf.mxu0
    %v795 = vadd.f32 %v766, %v794
    %796 = vdwg.mxu0
    %v797 = vld [vmem:[#allocation9] sm:$0xff]
    %v798 = vld [vmem:[#allocation9 + $0x8] sm:$0xff]
    %v799 = vld [vmem:[#allocation9 + $0x10] sm:$0xff]
    %v800 = vld [vmem:[#allocation9 + $0x18] sm:$0xff]
    %v801 = vxor.u32 %v792, 2147483648
    %v802 = vmul.f32 %v801, 1.442695
    %v803 = vpow.pop %v802
    %v804 = vadd.f32 %v803, 1.0
    %v805 = vrcp.pop %v804
    %v806 = vmul.f32 %v804, %v805
    %v807 = vsub.f32 1.0, %v806
    %v808 = vmul.f32 %v805, %v807
    %v809 = vadd.f32 %v805, %v808
    %vm810 = vweird.f32 %v804
    %vm811 = vweird.f32 %v805
    %vm812 = vmor %vm810, %vm811
    %v813 = vsel %vm812, %v805, %v809
    %v814 = vand.u32 2147483647, %v804
    %vm815 = vcmp.eq.f32.partialorder %v814, 8.507059e+37
    %v816 = vand.u32 %v804, 2147483648
    %v817 = vor.u32 1.1754944e-38, %v816
    %v818 = vsel %vm815, %v817, %v813
    %v819 = vmul.f32 1.0, %v818
    %v820 = vtanh.pop %v792
    %v821 = vmul.f32 %v819, 0.0
    %823 = vrot.lane.b32.xlu0 %v820, 32
    %v824 = vpop.permute.xlu0 %823
    %v826 = vmul.f32 %v819, %v824
    %828 = vrot.lane.b32.xlu0 %v826, 32
    %v829 = vpop.permute.xlu0 %828
    %v831 = vadd.f32 %v821, %v829
    %v832 = vtanh.pop %v831
    %834 = vrot.lane.b32.xlu0 %v832, 32
    %v835 = vpop.permute.xlu0 %834
    %v837 = vmul.f32 %v819, %v835
    %839 = vrot.lane.b32.xlu0 %v837, 64
    %v840 = vpop.permute.xlu0 %839
    %842 = vst.msk [vmem:[#allocation2] sm:$0x3] %vm243, %v840
    %v843 = vsel %vm245, %v840, 0
    %845 = vmatpush.msra.mxu0 0.0
    %846 = vmatpush.msra.mxu0 0.0
    %847 = vmatpush.msra.mxu0 0.0
    %848 = vmatpush.msra.mxu0 0.0
    %849 = vmatpush.msra.mxu0 0.0
    %850 = vmatpush.msra.mxu0 0.0
    %851 = vmatpush.msra.mxu0 0.0
    %852 = vmatpush.msra.mxu0 0.0
    %853 = vmatpush.msra.mxu0 0.0
    %854 = vmatpush.msra.mxu0 0.0
    %855 = vmatpush.msra.mxu0 0.0
    %856 = vmatpush.msra.mxu0 0.0
    %857 = vmatpush.msra.mxu0 %v800
    %858 = vmatpush.msra.mxu0 %v799
    %859 = vmatpush.msra.mxu0 %v798
    %860 = vmatpush.msra.mxu0 %v797
    %861 = vmatmul.f32.gmra.mxu0 %v843
    %v862 = vpop.f32.mrf.mxu0
    %v863 = vadd.f32 0.0, %v862
    %864 = vdwg.mxu0
    %v866 = vrot.slane %v863, 6
    %v868 = vadd.f32 %v792, %v866
    %v869 = vxor.u32 %v868, 2147483648
    %v870 = vmul.f32 %v869, 1.442695
    %v871 = vpow.pop %v870
    %v872 = vadd.f32 %v871, 1.0
    %v873 = vrcp.pop %v872
    %v874 = vmul.f32 %v872, %v873
    %v875 = vsub.f32 1.0, %v874
    %v876 = vmul.f32 %v873, %v875
    %v877 = vadd.f32 %v873, %v876
    %vm878 = vweird.f32 %v872
    %vm879 = vweird.f32 %v873
    %vm880 = vmor %vm878, %vm879
    %v881 = vsel %vm880, %v873, %v877
    %v882 = vand.u32 2147483647, %v872
    %vm883 = vcmp.eq.f32.partialorder %v882, 8.507059e+37
    %v884 = vand.u32 %v872, 2147483648
    %v885 = vor.u32 1.1754944e-38, %v884
    %v886 = vsel %vm883, %v885, %v881
    %v887 = vmul.f32 1.0, %v886
    %v888 = vtanh.pop %v868
    %v890 = vrot.slane %v831, 6
    %v892 = vmul.f32 %v887, %v890
    %894 = vrot.lane.b32.xlu0 %v888, 32
    %v895 = vpop.permute.xlu0 %894
    %v897 = vmul.f32 %v887, %v895
    %899 = vrot.lane.b32.xlu0 %v897, 32
    %v900 = vpop.permute.xlu0 %899
    %v902 = vadd.f32 %v892, %v900
    %v903 = vtanh.pop %v902
    %905 = vrot.lane.b32.xlu0 %v903, 32
    %v906 = vpop.permute.xlu0 %905
    %v908 = vmul.f32 %v887, %v906
    %910 = vrot.lane.b32.xlu0 %v908, 64
    %v911 = vpop.permute.xlu0 %910
    %913 = vst.msk [vmem:[#allocation2] sm:$0xc] %vm316, %v911
    %v914 = vrot.slane %v908, 2
    %915 = vrot.lane.b32.xlu0 %v914, 64
    %v916 = vpop.permute.xlu0 %915
    %v917 = vsel %vm245, %v916, 0
    %919 = vmatpush.msra.mxu0 0.0
    %920 = vmatpush.msra.mxu0 0.0
    %921 = vmatpush.msra.mxu0 0.0
    %922 = vmatpush.msra.mxu0 0.0
    %923 = vmatpush.msra.mxu0 0.0
    %924 = vmatpush.msra.mxu0 0.0
    %925 = vmatpush.msra.mxu0 0.0
    %926 = vmatpush.msra.mxu0 0.0
    %927 = vmatpush.msra.mxu0 0.0
    %928 = vmatpush.msra.mxu0 0.0
    %929 = vmatpush.msra.mxu0 0.0
    %930 = vmatpush.msra.mxu0 0.0
    %931 = vmatpush.msra.mxu0 %v800
    %932 = vmatpush.msra.mxu0 %v799
    %933 = vmatpush.msra.mxu0 %v798
    %934 = vmatpush.msra.mxu0 %v797
    %935 = vmatmul.f32.gmra.mxu0 %v917
    %v936 = vpop.f32.mrf.mxu0
    %v937 = vadd.f32 0.0, %v936
    %938 = vdwg.mxu0
    %v940 = vrot.slane %v937, 4
    %v942 = vadd.f32 %v792, %v940
    %v943 = vxor.u32 %v942, 2147483648
    %v944 = vmul.f32 %v943, 1.442695
    %v945 = vpow.pop %v944
    %v946 = vadd.f32 %v945, 1.0
    %v947 = vrcp.pop %v946
    %v948 = vmul.f32 %v946, %v947
    %v949 = vsub.f32 1.0, %v948
    %v950 = vmul.f32 %v947, %v949
    %v951 = vadd.f32 %v947, %v950
    %vm952 = vweird.f32 %v946
    %vm953 = vweird.f32 %v947
    %vm954 = vmor %vm952, %vm953
    %v955 = vsel %vm954, %v947, %v951
    %v956 = vand.u32 2147483647, %v946
    %vm957 = vcmp.eq.f32.partialorder %v956, 8.507059e+37
    %v958 = vand.u32 %v946, 2147483648
    %v959 = vor.u32 1.1754944e-38, %v958
    %v960 = vsel %vm957, %v959, %v955
    %v961 = vmul.f32 1.0, %v960
    %v962 = vtanh.pop %v942
    %v964 = vrot.slane %v902, 6
    %v966 = vmul.f32 %v961, %v964
    %968 = vrot.lane.b32.xlu0 %v962, 32
    %v969 = vpop.permute.xlu0 %968
    %v971 = vmul.f32 %v961, %v969
    %973 = vrot.lane.b32.xlu0 %v971, 32
    %v974 = vpop.permute.xlu0 %973
    %v976 = vadd.f32 %v966, %v974
    %v977 = vtanh.pop %v976
    %979 = vrot.lane.b32.xlu0 %v977, 32
    %v980 = vpop.permute.xlu0 %979
    %v982 = vmul.f32 %v961, %v980
    %984 = vrot.lane.b32.xlu0 %v982, 64
    %v985 = vpop.permute.xlu0 %984
    %987 = vst.msk [vmem:[#allocation2] sm:$0x30] %vm391, %v985
    %v988 = vrot.slane %v982, 4
    %989 = vrot.lane.b32.xlu0 %v988, 64
    %v990 = vpop.permute.xlu0 %989
    %v991 = vsel %vm245, %v990, 0
    %993 = vmatpush.msra.mxu0 0.0
    %994 = vmatpush.msra.mxu0 0.0
    %995 = vmatpush.msra.mxu0 0.0
    %996 = vmatpush.msra.mxu0 0.0
    %997 = vmatpush.msra.mxu0 0.0
    %998 = vmatpush.msra.mxu0 0.0
    %999 = vmatpush.msra.mxu0 0.0
    %1000 = vmatpush.msra.mxu0 0.0
    %1001 = vmatpush.msra.mxu0 0.0
    %1002 = vmatpush.msra.mxu0 0.0
    %1003 = vmatpush.msra.mxu0 0.0
    %1004 = vmatpush.msra.mxu0 0.0
    %1005 = vmatpush.msra.mxu0 %v800
    %1006 = vmatpush.msra.mxu0 %v799
    %1007 = vmatpush.msra.mxu0 %v798
    %1008 = vmatpush.msra.mxu0 %v797
    %1009 = vmatmul.f32.gmra.mxu0 %v991
    %v1010 = vpop.f32.mrf.mxu0
    %v1011 = vadd.f32 0.0, %v1010
    %1012 = vdwg.mxu0
    %v1014 = vrot.slane %v1011, 2
    %v1016 = vadd.f32 %v792, %v1014
    %v1017 = vxor.u32 %v1016, 2147483648
    %v1018 = vmul.f32 %v1017, 1.442695
    %v1019 = vpow.pop %v1018
    %v1020 = vadd.f32 %v1019, 1.0
    %v1021 = vrcp.pop %v1020
    %v1022 = vmul.f32 %v1020, %v1021
    %v1023 = vsub.f32 1.0, %v1022
    %v1024 = vmul.f32 %v1021, %v1023
    %v1025 = vadd.f32 %v1021, %v1024
    %vm1026 = vweird.f32 %v1020
    %vm1027 = vweird.f32 %v1021
    %vm1028 = vmor %vm1026, %vm1027
    %v1029 = vsel %vm1028, %v1021, %v1025
    %v1030 = vand.u32 2147483647, %v1020
    %vm1031 = vcmp.eq.f32.partialorder %v1030, 8.507059e+37
    %v1032 = vand.u32 %v1020, 2147483648
    %v1033 = vor.u32 1.1754944e-38, %v1032
    %v1034 = vsel %vm1031, %v1033, %v1029
    %v1035 = vmul.f32 1.0, %v1034
    %v1036 = vtanh.pop %v1016
    %v1038 = vrot.slane %v976, 6
    %v1040 = vmul.f32 %v1035, %v1038
    %1042 = vrot.lane.b32.xlu0 %v1036, 32
    %v1043 = vpop.permute.xlu0 %1042
    %v1045 = vmul.f32 %v1035, %v1043
    %1047 = vrot.lane.b32.xlu0 %v1045, 32
    %v1048 = vpop.permute.xlu0 %1047
    %v1050 = vadd.f32 %v1040, %v1048
    %v1051 = vtanh.pop %v1050
    %1053 = vrot.lane.b32.xlu0 %v1051, 32
    %v1054 = vpop.permute.xlu0 %1053
    %v1056 = vmul.f32 %v1035, %v1054
    %1058 = vrot.lane.b32.xlu0 %v1056, 64
    %v1059 = vpop.permute.xlu0 %1058
    %1061 = vst.msk [vmem:[#allocation2] sm:$0xc0] %vm466, %v1059
    %v1062 = vrot.slane %v1056, 6
    %1063 = vrot.lane.b32.xlu0 %v1062, 64
    %v1064 = vpop.permute.xlu0 %1063
    %v1065 = vsel %vm245, %v1064, 0
    %1067 = vmatpush.msra.mxu0 0.0
    %1068 = vmatpush.msra.mxu0 0.0
    %1069 = vmatpush.msra.mxu0 0.0
    %1070 = vmatpush.msra.mxu0 0.0
    %1071 = vmatpush.msra.mxu0 0.0
    %1072 = vmatpush.msra.mxu0 0.0
    %1073 = vmatpush.msra.mxu0 0.0
    %1074 = vmatpush.msra.mxu0 0.0
    %1075 = vmatpush.msra.mxu0 0.0
    %1076 = vmatpush.msra.mxu0 0.0
    %1077 = vmatpush.msra.mxu0 0.0
    %1078 = vmatpush.msra.mxu0 0.0
    %1079 = vmatpush.msra.mxu0 %v800
    %1080 = vmatpush.msra.mxu0 %v799
    %1081 = vmatpush.msra.mxu0 %v798
    %1082 = vmatpush.msra.mxu0 %v797
    %1083 = vmatmul.f32.gmra.mxu0 %v1065
    %v1084 = vpop.f32.mrf.mxu0
    %v1085 = vadd.f32 0.0, %v1084
    %1086 = vdwg.mxu0
    %v1087 = vadd.f32 %v795, %v1085
    %v1088 = vxor.u32 %v1087, 2147483648
    %v1089 = vmul.f32 %v1088, 1.442695
    %v1090 = vpow.pop %v1089
    %v1091 = vadd.f32 %v1090, 1.0
    %v1092 = vrcp.pop %v1091
    %v1093 = vmul.f32 %v1091, %v1092
    %v1094 = vsub.f32 1.0, %v1093
    %v1095 = vmul.f32 %v1092, %v1094
    %v1096 = vadd.f32 %v1092, %v1095
    %vm1097 = vweird.f32 %v1091
    %vm1098 = vweird.f32 %v1092
    %vm1099 = vmor %vm1097, %vm1098
    %v1100 = vsel %vm1099, %v1092, %v1096
    %v1101 = vand.u32 2147483647, %v1091
    %vm1102 = vcmp.eq.f32.partialorder %v1101, 8.507059e+37
    %v1103 = vand.u32 %v1091, 2147483648
    %v1104 = vor.u32 1.1754944e-38, %v1103
    %v1105 = vsel %vm1102, %v1104, %v1100
    %v1106 = vmul.f32 1.0, %v1105
    %v1107 = vtanh.pop %v1087
    %v1109 = vrot.slane %v1050, 6
    %v1111 = vmul.f32 %v1106, %v1109
    %1113 = vrot.lane.b32.xlu0 %v1107, 32
    %v1114 = vpop.permute.xlu0 %1113
    %v1116 = vmul.f32 %v1106, %v1114
    %1118 = vrot.lane.b32.xlu0 %v1116, 32
    %v1119 = vpop.permute.xlu0 %1118
    %v1121 = vadd.f32 %v1111, %v1119
    %v1122 = vtanh.pop %v1121
    %1124 = vrot.lane.b32.xlu0 %v1122, 32
    %v1125 = vpop.permute.xlu0 %1124
    %v1127 = vmul.f32 %v1106, %v1125
    %1129 = vrot.lane.b32.xlu0 %v1127, 64
    %v1130 = vpop.permute.xlu0 %1129
    %1132 = vst.msk [vmem:[#allocation2 + $0x8] sm:$0x3] %vm243, %v1130
    %v1133 = vsel %vm245, %v1130, 0
    %1135 = vmatpush.msra.mxu0 0.0
    %1136 = vmatpush.msra.mxu0 0.0
    %1137 = vmatpush.msra.mxu0 0.0
    %1138 = vmatpush.msra.mxu0 0.0
    %1139 = vmatpush.msra.mxu0 0.0
    %1140 = vmatpush.msra.mxu0 0.0
    %1141 = vmatpush.msra.mxu0 0.0
    %1142 = vmatpush.msra.mxu0 0.0
    %1143 = vmatpush.msra.mxu0 0.0
    %1144 = vmatpush.msra.mxu0 0.0
    %1145 = vmatpush.msra.mxu0 0.0
    %1146 = vmatpush.msra.mxu0 0.0
    %1147 = vmatpush.msra.mxu0 %v800
    %1148 = vmatpush.msra.mxu0 %v799
    %1149 = vmatpush.msra.mxu0 %v798
    %1150 = vmatpush.msra.mxu0 %v797
    %1151 = vmatmul.f32.gmra.mxu0 %v1133
    %v1152 = vpop.f32.mrf.mxu0
    %v1153 = vadd.f32 0.0, %v1152
    %1154 = vdwg.mxu0
    %v1156 = vrot.slane %v1153, 6
    %v1158 = vadd.f32 %v795, %v1156
    %v1159 = vxor.u32 %v1158, 2147483648
    %v1160 = vmul.f32 %v1159, 1.442695
    %v1161 = vpow.pop %v1160
    %v1162 = vadd.f32 %v1161, 1.0
    %v1163 = vrcp.pop %v1162
    %v1164 = vmul.f32 %v1162, %v1163
    %v1165 = vsub.f32 1.0, %v1164
    %v1166 = vmul.f32 %v1163, %v1165
    %v1167 = vadd.f32 %v1163, %v1166
    %vm1168 = vweird.f32 %v1162
    %vm1169 = vweird.f32 %v1163
    %vm1170 = vmor %vm1168, %vm1169
    %v1171 = vsel %vm1170, %v1163, %v1167
    %v1172 = vand.u32 2147483647, %v1162
    %vm1173 = vcmp.eq.f32.partialorder %v1172, 8.507059e+37
    %v1174 = vand.u32 %v1162, 2147483648
    %v1175 = vor.u32 1.1754944e-38, %v1174
    %v1176 = vsel %vm1173, %v1175, %v1171
    %v1177 = vmul.f32 1.0, %v1176
    %v1178 = vtanh.pop %v1158
    %v1180 = vrot.slane %v1121, 6
    %v1182 = vmul.f32 %v1177, %v1180
    %1184 = vrot.lane.b32.xlu0 %v1178, 32
    %v1185 = vpop.permute.xlu0 %1184
    %v1187 = vmul.f32 %v1177, %v1185
    %1189 = vrot.lane.b32.xlu0 %v1187, 32
    %v1190 = vpop.permute.xlu0 %1189
    %v1192 = vadd.f32 %v1182, %v1190
    %v1193 = vtanh.pop %v1192
    %1195 = vrot.lane.b32.xlu0 %v1193, 32
    %v1196 = vpop.permute.xlu0 %1195
    %v1198 = vmul.f32 %v1177, %v1196
    %1200 = vrot.lane.b32.xlu0 %v1198, 64
    %v1201 = vpop.permute.xlu0 %1200
    %1203 = vst.msk [vmem:[#allocation2 + $0x8] sm:$0xc] %vm316, %v1201
    %v1204 = vrot.slane %v1198, 2
    %1205 = vrot.lane.b32.xlu0 %v1204, 64
    %v1206 = vpop.permute.xlu0 %1205
    %v1207 = vsel %vm245, %v1206, 0
    %1209 = vmatpush.msra.mxu0 0.0
    %1210 = vmatpush.msra.mxu0 0.0
    %1211 = vmatpush.msra.mxu0 0.0
    %1212 = vmatpush.msra.mxu0 0.0
    %1213 = vmatpush.msra.mxu0 0.0
    %1214 = vmatpush.msra.mxu0 0.0
    %1215 = vmatpush.msra.mxu0 0.0
    %1216 = vmatpush.msra.mxu0 0.0
    %1217 = vmatpush.msra.mxu0 0.0
    %1218 = vmatpush.msra.mxu0 0.0
    %1219 = vmatpush.msra.mxu0 0.0
    %1220 = vmatpush.msra.mxu0 0.0
    %1221 = vmatpush.msra.mxu0 %v800
    %1222 = vmatpush.msra.mxu0 %v799
    %1223 = vmatpush.msra.mxu0 %v798
    %1224 = vmatpush.msra.mxu0 %v797
    %1225 = vmatmul.f32.gmra.mxu0 %v1207
    %v1226 = vpop.f32.mrf.mxu0
    %v1227 = vadd.f32 0.0, %v1226
    %1228 = vdwg.mxu0
    %v1230 = vrot.slane %v1227, 4
    %v1232 = vadd.f32 %v795, %v1230
    %v1233 = vxor.u32 %v1232, 2147483648
    %v1234 = vmul.f32 %v1233, 1.442695
    %v1235 = vpow.pop %v1234
    %v1236 = vadd.f32 %v1235, 1.0
    %v1237 = vrcp.pop %v1236
    %v1238 = vmul.f32 %v1236, %v1237
    %v1239 = vsub.f32 1.0, %v1238
    %v1240 = vmul.f32 %v1237, %v1239
    %v1241 = vadd.f32 %v1237, %v1240
    %vm1242 = vweird.f32 %v1236
    %vm1243 = vweird.f32 %v1237
    %vm1244 = vmor %vm1242, %vm1243
    %v1245 = vsel %vm1244, %v1237, %v1241
    %v1246 = vand.u32 2147483647, %v1236
    %vm1247 = vcmp.eq.f32.partialorder %v1246, 8.507059e+37
    %v1248 = vand.u32 %v1236, 2147483648
    %v1249 = vor.u32 1.1754944e-38, %v1248
    %v1250 = vsel %vm1247, %v1249, %v1245
    %v1251 = vmul.f32 1.0, %v1250
    %v1252 = vtanh.pop %v1232
    %v1254 = vrot.slane %v1192, 6
    %v1256 = vmul.f32 %v1251, %v1254
    %1258 = vrot.lane.b32.xlu0 %v1252, 32
    %v1259 = vpop.permute.xlu0 %1258
    %v1261 = vmul.f32 %v1251, %v1259
    %1263 = vrot.lane.b32.xlu0 %v1261, 32
    %v1264 = vpop.permute.xlu0 %1263
    %v1266 = vadd.f32 %v1256, %v1264
    %v1267 = vtanh.pop %v1266
    %1269 = vrot.lane.b32.xlu0 %v1267, 32
    %v1270 = vpop.permute.xlu0 %1269
    %v1272 = vmul.f32 %v1251, %v1270
    %1274 = vrot.lane.b32.xlu0 %v1272, 64
    %v1275 = vpop.permute.xlu0 %1274
    %1277 = vst.msk [vmem:[#allocation2 + $0x8] sm:$0x30] %vm391, %v1275
    %v1278 = vrot.slane %v1272, 4
    %1279 = vrot.lane.b32.xlu0 %v1278, 64
    %v1280 = vpop.permute.xlu0 %1279
    %v1281 = vsel %vm245, %v1280, 0
    %1283 = vmatpush.msra.mxu0 0.0
    %1284 = vmatpush.msra.mxu0 0.0
    %1285 = vmatpush.msra.mxu0 0.0
    %1286 = vmatpush.msra.mxu0 0.0
    %1287 = vmatpush.msra.mxu0 0.0
    %1288 = vmatpush.msra.mxu0 0.0
    %1289 = vmatpush.msra.mxu0 0.0
    %1290 = vmatpush.msra.mxu0 0.0
    %1291 = vmatpush.msra.mxu0 0.0
    %1292 = vmatpush.msra.mxu0 0.0
    %1293 = vmatpush.msra.mxu0 0.0
    %1294 = vmatpush.msra.mxu0 0.0
    %1295 = vmatpush.msra.mxu0 %v800
    %1296 = vmatpush.msra.mxu0 %v799
    %1297 = vmatpush.msra.mxu0 %v798
    %1298 = vmatpush.msra.mxu0 %v797
    %1299 = vmatmul.f32.gmra.mxu0 %v1281
    %v1300 = vpop.f32.mrf.mxu0
    %v1301 = vadd.f32 0.0, %v1300
    %1302 = vdwg.mxu0
    %v1304 = vrot.slane %v1301, 2
    %v1306 = vadd.f32 %v795, %v1304
    %v1307 = vxor.u32 %v1306, 2147483648
    %v1308 = vmul.f32 %v1307, 1.442695
    %v1309 = vpow.pop %v1308
    %v1310 = vadd.f32 %v1309, 1.0
    %v1311 = vrcp.pop %v1310
    %v1312 = vmul.f32 %v1310, %v1311
    %v1313 = vsub.f32 1.0, %v1312
    %v1314 = vmul.f32 %v1311, %v1313
    %v1315 = vadd.f32 %v1311, %v1314
    %vm1316 = vweird.f32 %v1310
    %vm1317 = vweird.f32 %v1311
    %vm1318 = vmor %vm1316, %vm1317
    %v1319 = vsel %vm1318, %v1311, %v1315
    %v1320 = vand.u32 2147483647, %v1310
    %vm1321 = vcmp.eq.f32.partialorder %v1320, 8.507059e+37
    %v1322 = vand.u32 %v1310, 2147483648
    %v1323 = vor.u32 1.1754944e-38, %v1322
    %v1324 = vsel %vm1321, %v1323, %v1319
    %v1325 = vmul.f32 1.0, %v1324
    %v1326 = vtanh.pop %v1306
    %v1328 = vrot.slane %v1266, 6
    %v1330 = vmul.f32 %v1325, %v1328
    %1332 = vrot.lane.b32.xlu0 %v1326, 32
    %v1333 = vpop.permute.xlu0 %1332
    %v1335 = vmul.f32 %v1325, %v1333
    %1337 = vrot.lane.b32.xlu0 %v1335, 32
    %v1338 = vpop.permute.xlu0 %1337
    %v1340 = vadd.f32 %v1330, %v1338
    %v1341 = vtanh.pop %v1340
    %1343 = vrot.lane.b32.xlu0 %v1341, 32
    %v1344 = vpop.permute.xlu0 %1343
    %v1346 = vmul.f32 %v1325, %v1344
    %1348 = vrot.lane.b32.xlu0 %v1346, 64
    %v1349 = vpop.permute.xlu0 %1348
    %1351 = vst.msk [vmem:[#allocation2 + $0x8] sm:$0xc0] %vm466, %v1349
    %v1352 = vld [vmem:[#allocation2] sm:$0xff]
    %v1353 = vld [vmem:[#allocation2 + $0x8] sm:$0xff]
    %v1354 = vld [vmem:[#allocation10] sm:$0xff]
    %v1355 = vld [vmem:[#allocation10 + $0x8] sm:$0xff]
    %v1356 = vld [vmem:[#allocation10 + $0x10] sm:$0xff]
    %v1357 = vld [vmem:[#allocation10 + $0x18] sm:$0xff]
    %v1358 = vld [vmem:[%s8] sm:$0x1]
    %v1360 = vperm.slane %v1358, 0
    %v1363 = vsel %vm245, %v1352, 0
    %v1366 = vsel %vm245, %v1353, 0
    %1368 = vmatpush.msra.mxu0 0.0
    %1369 = vmatpush.msra.mxu0 0.0
    %1370 = vmatpush.msra.mxu0 0.0
    %1371 = vmatpush.msra.mxu0 0.0
    %1372 = vmatpush.msra.mxu0 0.0
    %1373 = vmatpush.msra.mxu0 0.0
    %1374 = vmatpush.msra.mxu0 0.0
    %1375 = vmatpush.msra.mxu0 0.0
    %1376 = vmatpush.msra.mxu0 0.0
    %1377 = vmatpush.msra.mxu0 0.0
    %1378 = vmatpush.msra.mxu0 0.0
    %1379 = vmatpush.msra.mxu0 0.0
    %1380 = vmatpush.msra.mxu0 %v1357
    %1381 = vmatpush.msra.mxu0 %v1356
    %1382 = vmatpush.msra.mxu0 %v1355
    %1383 = vmatpush.msra.mxu0 %v1354
    %1384 = vmatmul.f32.gmra.mxu0 %v1363
    %v1385 = vpop.f32.mrf.mxu0
    %v1386 = vadd.f32 %v1360, %v1385
    %1387 = vmatmul.f32.gmra.mxu0 %v1366
    %v1388 = vpop.f32.mrf.mxu0
    %v1389 = vadd.f32 %v1360, %v1388
    %1390 = vdwg.mxu0
    %v1391 = vld [vmem:[#allocation12] sm:$0xff]
    %v1392 = vld [vmem:[#allocation12 + $0x8] sm:$0xff]
    %v1393 = vld [vmem:[#allocation12 + $0x10] sm:$0xff]
    %v1394 = vld [vmem:[#allocation12 + $0x18] sm:$0xff]
    %v1395 = vxor.u32 %v1386, 2147483648
    %v1396 = vmul.f32 %v1395, 1.442695
    %v1397 = vpow.pop %v1396
    %v1398 = vadd.f32 %v1397, 1.0
    %v1399 = vrcp.pop %v1398
    %v1400 = vmul.f32 %v1398, %v1399
    %v1401 = vsub.f32 1.0, %v1400
    %v1402 = vmul.f32 %v1399, %v1401
    %v1403 = vadd.f32 %v1399, %v1402
    %vm1404 = vweird.f32 %v1398
    %vm1405 = vweird.f32 %v1399
    %vm1406 = vmor %vm1404, %vm1405
    %v1407 = vsel %vm1406, %v1399, %v1403
    %v1408 = vand.u32 2147483647, %v1398
    %vm1409 = vcmp.eq.f32.partialorder %v1408, 8.507059e+37
    %v1410 = vand.u32 %v1398, 2147483648
    %v1411 = vor.u32 1.1754944e-38, %v1410
    %v1412 = vsel %vm1409, %v1411, %v1407
    %v1413 = vmul.f32 1.0, %v1412
    %v1414 = vtanh.pop %v1386
    %v1415 = vmul.f32 %v1413, 0.0
    %1417 = vrot.lane.b32.xlu0 %v1414, 32
    %v1418 = vpop.permute.xlu0 %1417
    %v1420 = vmul.f32 %v1413, %v1418
    %1422 = vrot.lane.b32.xlu0 %v1420, 32
    %v1423 = vpop.permute.xlu0 %1422
    %v1425 = vadd.f32 %v1415, %v1423
    %v1426 = vtanh.pop %v1425
    %1428 = vrot.lane.b32.xlu0 %v1426, 32
    %v1429 = vpop.permute.xlu0 %1428
    %v1431 = vmul.f32 %v1413, %v1429
    %1433 = vrot.lane.b32.xlu0 %v1431, 64
    %v1434 = vpop.permute.xlu0 %1433
    %1436 = vst.msk [vmem:[#allocation3] sm:$0x3] %vm243, %v1434
    %v1437 = vsel %vm245, %v1434, 0
    %1439 = vmatpush.msra.mxu0 0.0
    %1440 = vmatpush.msra.mxu0 0.0
    %1441 = vmatpush.msra.mxu0 0.0
    %1442 = vmatpush.msra.mxu0 0.0
    %1443 = vmatpush.msra.mxu0 0.0
    %1444 = vmatpush.msra.mxu0 0.0
    %1445 = vmatpush.msra.mxu0 0.0
    %1446 = vmatpush.msra.mxu0 0.0
    %1447 = vmatpush.msra.mxu0 0.0
    %1448 = vmatpush.msra.mxu0 0.0
    %1449 = vmatpush.msra.mxu0 0.0
    %1450 = vmatpush.msra.mxu0 0.0
    %1451 = vmatpush.msra.mxu0 %v1394
    %1452 = vmatpush.msra.mxu0 %v1393
    %1453 = vmatpush.msra.mxu0 %v1392
    %1454 = vmatpush.msra.mxu0 %v1391
    %1455 = vmatmul.f32.gmra.mxu0 %v1437
    %v1456 = vpop.f32.mrf.mxu0
    %v1457 = vadd.f32 0.0, %v1456
    %1458 = vdwg.mxu0
    %v1460 = vrot.slane %v1457, 6
    %v1462 = vadd.f32 %v1386, %v1460
    %v1463 = vxor.u32 %v1462, 2147483648
    %v1464 = vmul.f32 %v1463, 1.442695
    %v1465 = vpow.pop %v1464
    %v1466 = vadd.f32 %v1465, 1.0
    %v1467 = vrcp.pop %v1466
    %v1468 = vmul.f32 %v1466, %v1467
    %v1469 = vsub.f32 1.0, %v1468
    %v1470 = vmul.f32 %v1467, %v1469
    %v1471 = vadd.f32 %v1467, %v1470
    %vm1472 = vweird.f32 %v1466
    %vm1473 = vweird.f32 %v1467
    %vm1474 = vmor %vm1472, %vm1473
    %v1475 = vsel %vm1474, %v1467, %v1471
    %v1476 = vand.u32 2147483647, %v1466
    %vm1477 = vcmp.eq.f32.partialorder %v1476, 8.507059e+37
    %v1478 = vand.u32 %v1466, 2147483648
    %v1479 = vor.u32 1.1754944e-38, %v1478
    %v1480 = vsel %vm1477, %v1479, %v1475
    %v1481 = vmul.f32 1.0, %v1480
    %v1482 = vtanh.pop %v1462
    %v1484 = vrot.slane %v1425, 6
    %v1486 = vmul.f32 %v1481, %v1484
    %1488 = vrot.lane.b32.xlu0 %v1482, 32
    %v1489 = vpop.permute.xlu0 %1488
    %v1491 = vmul.f32 %v1481, %v1489
    %1493 = vrot.lane.b32.xlu0 %v1491, 32
    %v1494 = vpop.permute.xlu0 %1493
    %v1496 = vadd.f32 %v1486, %v1494
    %v1497 = vtanh.pop %v1496
    %1499 = vrot.lane.b32.xlu0 %v1497, 32
    %v1500 = vpop.permute.xlu0 %1499
    %v1502 = vmul.f32 %v1481, %v1500
    %1504 = vst.sshfl [vmem:[#allocation1] sm:$0xff pattern:$0x73625140] %v1502
    %s1505 = scalar_lea.vmem [#allocation1], 1
    %v1506 = vld [vmem:[%s1505] ss:$4 sm:$0xff]
    %1507 = vrot.lane.b32.xlu0 %v1506, 96
    %v1508 = vpop.permute.xlu0 %1507
    %vm1510 = vcmask 517376
    %1511 = vst.msk [vmem:[#allocation3] sm:$0x3] %vm1510, %v1508
    %v1512 = vrot.slane %v1502, 2
    %1513 = vrot.lane.b32.xlu0 %v1512, 64
    %v1514 = vpop.permute.xlu0 %1513
    %v1515 = vsel %vm245, %v1514, 0
    %1517 = vmatpush.msra.mxu0 0.0
    %1518 = vmatpush.msra.mxu0 0.0
    %1519 = vmatpush.msra.mxu0 0.0
    %1520 = vmatpush.msra.mxu0 0.0
    %1521 = vmatpush.msra.mxu0 0.0
    %1522 = vmatpush.msra.mxu0 0.0
    %1523 = vmatpush.msra.mxu0 0.0
    %1524 = vmatpush.msra.mxu0 0.0
    %1525 = vmatpush.msra.mxu0 0.0
    %1526 = vmatpush.msra.mxu0 0.0
    %1527 = vmatpush.msra.mxu0 0.0
    %1528 = vmatpush.msra.mxu0 0.0
    %1529 = vmatpush.msra.mxu0 %v1394
    %1530 = vmatpush.msra.mxu0 %v1393
    %1531 = vmatpush.msra.mxu0 %v1392
    %1532 = vmatpush.msra.mxu0 %v1391
    %1533 = vmatmul.f32.gmra.mxu0 %v1515
    %v1534 = vpop.f32.mrf.mxu0
    %v1535 = vadd.f32 0.0, %v1534
    %1536 = vdwg.mxu0
    %v1538 = vrot.slane %v1535, 4
    %v1540 = vadd.f32 %v1386, %v1538
    %v1541 = vxor.u32 %v1540, 2147483648
    %v1542 = vmul.f32 %v1541, 1.442695
    %v1543 = vpow.pop %v1542
    %v1544 = vadd.f32 %v1543, 1.0
    %v1545 = vrcp.pop %v1544
    %v1546 = vmul.f32 %v1544, %v1545
    %v1547 = vsub.f32 1.0, %v1546
    %v1548 = vmul.f32 %v1545, %v1547
    %v1549 = vadd.f32 %v1545, %v1548
    %vm1550 = vweird.f32 %v1544
    %vm1551 = vweird.f32 %v1545
    %vm1552 = vmor %vm1550, %vm1551
    %v1553 = vsel %vm1552, %v1545, %v1549
    %v1554 = vand.u32 2147483647, %v1544
    %vm1555 = vcmp.eq.f32.partialorder %v1554, 8.507059e+37
    %v1556 = vand.u32 %v1544, 2147483648
    %v1557 = vor.u32 1.1754944e-38, %v1556
    %v1558 = vsel %vm1555, %v1557, %v1553
    %v1559 = vmul.f32 1.0, %v1558
    %v1560 = vtanh.pop %v1540
    %v1562 = vrot.slane %v1496, 6
    %v1564 = vmul.f32 %v1559, %v1562
    %1566 = vrot.lane.b32.xlu0 %v1560, 32
    %v1567 = vpop.permute.xlu0 %1566
    %v1569 = vmul.f32 %v1559, %v1567
    %1571 = vrot.lane.b32.xlu0 %v1569, 32
    %v1572 = vpop.permute.xlu0 %1571
    %v1574 = vadd.f32 %v1564, %v1572
    %v1575 = vtanh.pop %v1574
    %1577 = vrot.lane.b32.xlu0 %v1575, 32
    %v1578 = vpop.permute.xlu0 %1577
    %v1580 = vmul.f32 %v1559, %v1578
    %1582 = vst.sshfl [vmem:[#allocation1] sm:$0xff pattern:$0x73625140] %v1580
    %s1583 = scalar_lea.vmem [#allocation1], 2
    %v1584 = vld [vmem:[%s1583] ss:$4 sm:$0xff]
    %vm1586 = vcmask 779776
    %1587 = vst.msk [vmem:[#allocation3] sm:$0x3] %vm1586, %v1584
    %v1588 = vrot.slane %v1580, 4
    %1589 = vrot.lane.b32.xlu0 %v1588, 64
    %v1590 = vpop.permute.xlu0 %1589
    %v1591 = vsel %vm245, %v1590, 0
    %1593 = vmatpush.msra.mxu0 0.0
    %1594 = vmatpush.msra.mxu0 0.0
    %1595 = vmatpush.msra.mxu0 0.0
    %1596 = vmatpush.msra.mxu0 0.0
    %1597 = vmatpush.msra.mxu0 0.0
    %1598 = vmatpush.msra.mxu0 0.0
    %1599 = vmatpush.msra.mxu0 0.0
    %1600 = vmatpush.msra.mxu0 0.0
    %1601 = vmatpush.msra.mxu0 0.0
    %1602 = vmatpush.msra.mxu0 0.0
    %1603 = vmatpush.msra.mxu0 0.0
    %1604 = vmatpush.msra.mxu0 0.0
    %1605 = vmatpush.msra.mxu0 %v1394
    %1606 = vmatpush.msra.mxu0 %v1393
    %1607 = vmatpush.msra.mxu0 %v1392
    %1608 = vmatpush.msra.mxu0 %v1391
    %1609 = vmatmul.f32.gmra.mxu0 %v1591
    %v1610 = vpop.f32.mrf.mxu0
    %v1611 = vadd.f32 0.0, %v1610
    %1612 = vdwg.mxu0
    %v1614 = vrot.slane %v1611, 2
    %v1616 = vadd.f32 %v1386, %v1614
    %v1617 = vxor.u32 %v1616, 2147483648
    %v1618 = vmul.f32 %v1617, 1.442695
    %v1619 = vpow.pop %v1618
    %v1620 = vadd.f32 %v1619, 1.0
    %v1621 = vrcp.pop %v1620
    %v1622 = vmul.f32 %v1620, %v1621
    %v1623 = vsub.f32 1.0, %v1622
    %v1624 = vmul.f32 %v1621, %v1623
    %v1625 = vadd.f32 %v1621, %v1624
    %vm1626 = vweird.f32 %v1620
    %vm1627 = vweird.f32 %v1621
    %vm1628 = vmor %vm1626, %vm1627
    %v1629 = vsel %vm1628, %v1621, %v1625
    %v1630 = vand.u32 2147483647, %v1620
    %vm1631 = vcmp.eq.f32.partialorder %v1630, 8.507059e+37
    %v1632 = vand.u32 %v1620, 2147483648
    %v1633 = vor.u32 1.1754944e-38, %v1632
    %v1634 = vsel %vm1631, %v1633, %v1629
    %v1635 = vmul.f32 1.0, %v1634
    %v1636 = vtanh.pop %v1616
    %v1638 = vrot.slane %v1574, 6
    %v1640 = vmul.f32 %v1635, %v1638
    %1642 = vrot.lane.b32.xlu0 %v1636, 32
    %v1643 = vpop.permute.xlu0 %1642
    %v1645 = vmul.f32 %v1635, %v1643
    %1647 = vrot.lane.b32.xlu0 %v1645, 32
    %v1648 = vpop.permute.xlu0 %1647
    %v1650 = vadd.f32 %v1640, %v1648
    %v1651 = vtanh.pop %v1650
    %1653 = vrot.lane.b32.xlu0 %v1651, 32
    %v1654 = vpop.permute.xlu0 %1653
    %v1656 = vmul.f32 %v1635, %v1654
    %1658 = vst.sshfl [vmem:[#allocation1] sm:$0xff pattern:$0x73625140] %v1656
    %s1659 = scalar_lea.vmem [#allocation1], 3
    %v1660 = vld [vmem:[%s1659] ss:$4 sm:$0xff]
    %1661 = vrot.lane.b32.xlu0 %v1660, 32
    %v1662 = vpop.permute.xlu0 %1661
    %vm1664 = vcmask 1042176
    %1665 = vst.msk [vmem:[#allocation3] sm:$0x3] %vm1664, %v1662
    %v1666 = vrot.slane %v1656, 6
    %1667 = vrot.lane.b32.xlu0 %v1666, 64
    %v1668 = vpop.permute.xlu0 %1667
    %v1669 = vsel %vm245, %v1668, 0
    %1671 = vmatpush.msra.mxu0 0.0
    %1672 = vmatpush.msra.mxu0 0.0
    %1673 = vmatpush.msra.mxu0 0.0
    %1674 = vmatpush.msra.mxu0 0.0
    %1675 = vmatpush.msra.mxu0 0.0
    %1676 = vmatpush.msra.mxu0 0.0
    %1677 = vmatpush.msra.mxu0 0.0
    %1678 = vmatpush.msra.mxu0 0.0
    %1679 = vmatpush.msra.mxu0 0.0
    %1680 = vmatpush.msra.mxu0 0.0
    %1681 = vmatpush.msra.mxu0 0.0
    %1682 = vmatpush.msra.mxu0 0.0
    %1683 = vmatpush.msra.mxu0 %v1394
    %1684 = vmatpush.msra.mxu0 %v1393
    %1685 = vmatpush.msra.mxu0 %v1392
    %1686 = vmatpush.msra.mxu0 %v1391
    %1687 = vmatmul.f32.gmra.mxu0 %v1669
    %v1688 = vpop.f32.mrf.mxu0
    %v1689 = vadd.f32 0.0, %v1688
    %1690 = vdwg.mxu0
    %v1691 = vadd.f32 %v1389, %v1689
    %v1692 = vxor.u32 %v1691, 2147483648
    %v1693 = vmul.f32 %v1692, 1.442695
    %v1694 = vpow.pop %v1693
    %v1695 = vadd.f32 %v1694, 1.0
    %v1696 = vrcp.pop %v1695
    %v1697 = vmul.f32 %v1695, %v1696
    %v1698 = vsub.f32 1.0, %v1697
    %v1699 = vmul.f32 %v1696, %v1698
    %v1700 = vadd.f32 %v1696, %v1699
    %vm1701 = vweird.f32 %v1695
    %vm1702 = vweird.f32 %v1696
    %vm1703 = vmor %vm1701, %vm1702
    %v1704 = vsel %vm1703, %v1696, %v1700
    %v1705 = vand.u32 2147483647, %v1695
    %vm1706 = vcmp.eq.f32.partialorder %v1705, 8.507059e+37
    %v1707 = vand.u32 %v1695, 2147483648
    %v1708 = vor.u32 1.1754944e-38, %v1707
    %v1709 = vsel %vm1706, %v1708, %v1704
    %v1710 = vmul.f32 1.0, %v1709
    %v1711 = vtanh.pop %v1691
    %v1713 = vrot.slane %v1650, 6
    %v1715 = vmul.f32 %v1710, %v1713
    %1717 = vrot.lane.b32.xlu0 %v1711, 32
    %v1718 = vpop.permute.xlu0 %1717
    %v1720 = vmul.f32 %v1710, %v1718
    %1722 = vrot.lane.b32.xlu0 %v1720, 32
    %v1723 = vpop.permute.xlu0 %1722
    %v1725 = vadd.f32 %v1715, %v1723
    %v1726 = vtanh.pop %v1725
    %1728 = vrot.lane.b32.xlu0 %v1726, 32
    %v1729 = vpop.permute.xlu0 %1728
    %v1731 = vmul.f32 %v1710, %v1729
    %1733 = vrot.lane.b32.xlu0 %v1731, 64
    %v1734 = vpop.permute.xlu0 %1733
    %1736 = vst.msk [vmem:[#allocation3 + $0x2] sm:$0x3] %vm243, %v1734
    %v1737 = vsel %vm245, %v1734, 0
    %1739 = vmatpush.msra.mxu0 0.0
    %1740 = vmatpush.msra.mxu0 0.0
    %1741 = vmatpush.msra.mxu0 0.0
    %1742 = vmatpush.msra.mxu0 0.0
    %1743 = vmatpush.msra.mxu0 0.0
    %1744 = vmatpush.msra.mxu0 0.0
    %1745 = vmatpush.msra.mxu0 0.0
    %1746 = vmatpush.msra.mxu0 0.0
    %1747 = vmatpush.msra.mxu0 0.0
    %1748 = vmatpush.msra.mxu0 0.0
    %1749 = vmatpush.msra.mxu0 0.0
    %1750 = vmatpush.msra.mxu0 0.0
    %1751 = vmatpush.msra.mxu0 %v1394
    %1752 = vmatpush.msra.mxu0 %v1393
    %1753 = vmatpush.msra.mxu0 %v1392
    %1754 = vmatpush.msra.mxu0 %v1391
    %1755 = vmatmul.f32.gmra.mxu0 %v1737
    %v1756 = vpop.f32.mrf.mxu0
    %v1757 = vadd.f32 0.0, %v1756
    %1758 = vdwg.mxu0
    %v1760 = vrot.slane %v1757, 6
    %v1762 = vadd.f32 %v1389, %v1760
    %v1763 = vxor.u32 %v1762, 2147483648
    %v1764 = vmul.f32 %v1763, 1.442695
    %v1765 = vpow.pop %v1764
    %v1766 = vadd.f32 %v1765, 1.0
    %v1767 = vrcp.pop %v1766
    %v1768 = vmul.f32 %v1766, %v1767
    %v1769 = vsub.f32 1.0, %v1768
    %v1770 = vmul.f32 %v1767, %v1769
    %v1771 = vadd.f32 %v1767, %v1770
    %vm1772 = vweird.f32 %v1766
    %vm1773 = vweird.f32 %v1767
    %vm1774 = vmor %vm1772, %vm1773
    %v1775 = vsel %vm1774, %v1767, %v1771
    %v1776 = vand.u32 2147483647, %v1766
    %vm1777 = vcmp.eq.f32.partialorder %v1776, 8.507059e+37
    %v1778 = vand.u32 %v1766, 2147483648
    %v1779 = vor.u32 1.1754944e-38, %v1778
    %v1780 = vsel %vm1777, %v1779, %v1775
    %v1781 = vmul.f32 1.0, %v1780
    %v1782 = vtanh.pop %v1762
    %v1784 = vrot.slane %v1725, 6
    %v1786 = vmul.f32 %v1781, %v1784
    %1788 = vrot.lane.b32.xlu0 %v1782, 32
    %v1789 = vpop.permute.xlu0 %1788
    %v1791 = vmul.f32 %v1781, %v1789
    %1793 = vrot.lane.b32.xlu0 %v1791, 32
    %v1794 = vpop.permute.xlu0 %1793
    %v1796 = vadd.f32 %v1786, %v1794
    %v1797 = vtanh.pop %v1796
    %1799 = vrot.lane.b32.xlu0 %v1797, 32
    %v1800 = vpop.permute.xlu0 %1799
    %v1802 = vmul.f32 %v1781, %v1800
    %1804 = vst.sshfl [vmem:[#allocation1] sm:$0xff pattern:$0x73625140] %v1802
    %s1805 = scalar_lea.vmem [#allocation1], 1
    %v1806 = vld [vmem:[%s1805] ss:$4 sm:$0xff]
    %1807 = vrot.lane.b32.xlu0 %v1806, 96
    %v1808 = vpop.permute.xlu0 %1807
    %1810 = vst.msk [vmem:[#allocation3 + $0x2] sm:$0x3] %vm1510, %v1808
    %v1811 = vrot.slane %v1802, 2
    %1812 = vrot.lane.b32.xlu0 %v1811, 64
    %v1813 = vpop.permute.xlu0 %1812
    %v1814 = vsel %vm245, %v1813, 0
    %1816 = vmatpush.msra.mxu0 0.0
    %1817 = vmatpush.msra.mxu0 0.0
    %1818 = vmatpush.msra.mxu0 0.0
    %1819 = vmatpush.msra.mxu0 0.0
    %1820 = vmatpush.msra.mxu0 0.0
    %1821 = vmatpush.msra.mxu0 0.0
    %1822 = vmatpush.msra.mxu0 0.0
    %1823 = vmatpush.msra.mxu0 0.0
    %1824 = vmatpush.msra.mxu0 0.0
    %1825 = vmatpush.msra.mxu0 0.0
    %1826 = vmatpush.msra.mxu0 0.0
    %1827 = vmatpush.msra.mxu0 0.0
    %1828 = vmatpush.msra.mxu0 %v1394
    %1829 = vmatpush.msra.mxu0 %v1393
    %1830 = vmatpush.msra.mxu0 %v1392
    %1831 = vmatpush.msra.mxu0 %v1391
    %1832 = vmatmul.f32.gmra.mxu0 %v1814
    %v1833 = vpop.f32.mrf.mxu0
    %v1834 = vadd.f32 0.0, %v1833
    %1835 = vdwg.mxu0
    %v1837 = vrot.slane %v1834, 4
    %v1839 = vadd.f32 %v1389, %v1837
    %v1840 = vxor.u32 %v1839, 2147483648
    %v1841 = vmul.f32 %v1840, 1.442695
    %v1842 = vpow.pop %v1841
    %v1843 = vadd.f32 %v1842, 1.0
    %v1844 = vrcp.pop %v1843
    %v1845 = vmul.f32 %v1843, %v1844
    %v1846 = vsub.f32 1.0, %v1845
    %v1847 = vmul.f32 %v1844, %v1846
    %v1848 = vadd.f32 %v1844, %v1847
    %vm1849 = vweird.f32 %v1843
    %vm1850 = vweird.f32 %v1844
    %vm1851 = vmor %vm1849, %vm1850
    %v1852 = vsel %vm1851, %v1844, %v1848
    %v1853 = vand.u32 2147483647, %v1843
    %vm1854 = vcmp.eq.f32.partialorder %v1853, 8.507059e+37
    %v1855 = vand.u32 %v1843, 2147483648
    %v1856 = vor.u32 1.1754944e-38, %v1855
    %v1857 = vsel %vm1854, %v1856, %v1852
    %v1858 = vmul.f32 1.0, %v1857
    %v1859 = vtanh.pop %v1839
    %v1861 = vrot.slane %v1796, 6
    %v1863 = vmul.f32 %v1858, %v1861
    %1865 = vrot.lane.b32.xlu0 %v1859, 32
    %v1866 = vpop.permute.xlu0 %1865
    %v1868 = vmul.f32 %v1858, %v1866
    %1870 = vrot.lane.b32.xlu0 %v1868, 32
    %v1871 = vpop.permute.xlu0 %1870
    %v1873 = vadd.f32 %v1863, %v1871
    %v1874 = vtanh.pop %v1873
    %1876 = vrot.lane.b32.xlu0 %v1874, 32
    %v1877 = vpop.permute.xlu0 %1876
    %v1879 = vmul.f32 %v1858, %v1877
    %1881 = vst.sshfl [vmem:[#allocation1] sm:$0xff pattern:$0x73625140] %v1879
    %s1882 = scalar_lea.vmem [#allocation1], 2
    %v1883 = vld [vmem:[%s1882] ss:$4 sm:$0xff]
    %1885 = vst.msk [vmem:[#allocation3 + $0x2] sm:$0x3] %vm1586, %v1883
    %v1886 = vrot.slane %v1879, 4
    %1887 = vrot.lane.b32.xlu0 %v1886, 64
    %v1888 = vpop.permute.xlu0 %1887
    %v1889 = vsel %vm245, %v1888, 0
    %1891 = vmatpush.msra.mxu0 0.0
    %1892 = vmatpush.msra.mxu0 0.0
    %1893 = vmatpush.msra.mxu0 0.0
    %1894 = vmatpush.msra.mxu0 0.0
    %1895 = vmatpush.msra.mxu0 0.0
    %1896 = vmatpush.msra.mxu0 0.0
    %1897 = vmatpush.msra.mxu0 0.0
    %1898 = vmatpush.msra.mxu0 0.0
    %1899 = vmatpush.msra.mxu0 0.0
    %1900 = vmatpush.msra.mxu0 0.0
    %1901 = vmatpush.msra.mxu0 0.0
    %1902 = vmatpush.msra.mxu0 0.0
    %1903 = vmatpush.msra.mxu0 %v1394
    %1904 = vmatpush.msra.mxu0 %v1393
    %1905 = vmatpush.msra.mxu0 %v1392
    %1906 = vmatpush.msra.mxu0 %v1391
    %1907 = vmatmul.f32.gmra.mxu0 %v1889
    %v1908 = vpop.f32.mrf.mxu0
    %v1909 = vadd.f32 0.0, %v1908
    %1910 = vdwg.mxu0
    %v1912 = vrot.slane %v1909, 2
    %v1914 = vadd.f32 %v1389, %v1912
    %v1915 = vxor.u32 %v1914, 2147483648
    %v1916 = vmul.f32 %v1915, 1.442695
    %v1917 = vpow.pop %v1916
    %v1918 = vadd.f32 %v1917, 1.0
    %v1919 = vrcp.pop %v1918
    %v1920 = vmul.f32 %v1918, %v1919
    %v1921 = vsub.f32 1.0, %v1920
    %v1922 = vmul.f32 %v1919, %v1921
    %v1923 = vadd.f32 %v1919, %v1922
    %vm1924 = vweird.f32 %v1918
    %vm1925 = vweird.f32 %v1919
    %vm1926 = vmor %vm1924, %vm1925
    %v1927 = vsel %vm1926, %v1919, %v1923
    %v1928 = vand.u32 2147483647, %v1918
    %vm1929 = vcmp.eq.f32.partialorder %v1928, 8.507059e+37
    %v1930 = vand.u32 %v1918, 2147483648
    %v1931 = vor.u32 1.1754944e-38, %v1930
    %v1932 = vsel %vm1929, %v1931, %v1927
    %v1933 = vmul.f32 1.0, %v1932
    %v1934 = vtanh.pop %v1914
    %v1936 = vrot.slane %v1873, 6
    %v1938 = vmul.f32 %v1933, %v1936
    %1940 = vrot.lane.b32.xlu0 %v1934, 32
    %v1941 = vpop.permute.xlu0 %1940
    %v1943 = vmul.f32 %v1933, %v1941
    %1945 = vrot.lane.b32.xlu0 %v1943, 32
    %v1946 = vpop.permute.xlu0 %1945
    %v1948 = vadd.f32 %v1938, %v1946
    %v1949 = vtanh.pop %v1948
    %1951 = vrot.lane.b32.xlu0 %v1949, 32
    %v1952 = vpop.permute.xlu0 %1951
    %v1954 = vmul.f32 %v1933, %v1952
    %1956 = vst.sshfl [vmem:[#allocation1] sm:$0xff pattern:$0x73625140] %v1954
    %s1957 = scalar_lea.vmem [#allocation1], 3
    %v1958 = vld [vmem:[%s1957] ss:$4 sm:$0xff]
    %1959 = vrot.lane.b32.xlu0 %v1958, 32
    %v1960 = vpop.permute.xlu0 %1959
    %1962 = vst.msk [vmem:[#allocation3 + $0x2] sm:$0x3] %vm1664, %v1960
    %v1963 = vld [vmem:[#allocation3] sm:$0xf]
    %v1964 = vld [vmem:[#allocation13] sm:$0xff]
    %v1965 = vld [vmem:[#allocation13 + $0x8] sm:$0xff]
    %v1966 = vld [vmem:[#allocation13 + $0x10] sm:$0xff]
    %v1967 = vld [vmem:[#allocation13 + $0x18] sm:$0xff]
    %v1968 = vld [vmem:[#allocation13 + $0x20] sm:$0xff]
    %v1969 = vld [vmem:[#allocation13 + $0x28] sm:$0xff]
    %v1970 = vld [vmem:[#allocation13 + $0x30] sm:$0xff]
    %v1971 = vld [vmem:[#allocation13 + $0x38] sm:$0xff]
    %v1972 = vld [vmem:[#allocation13 + $0x40] sm:$0xff]
    %v1973 = vld [vmem:[#allocation13 + $0x48] sm:$0xff]
    %v1974 = vld [vmem:[#allocation13 + $0x50] sm:$0xff]
    %v1975 = vld [vmem:[#allocation13 + $0x58] sm:$0xff]
    %v1976 = vld [vmem:[#allocation13 + $0x60] sm:$0xff]
    %v1977 = vld [vmem:[#allocation13 + $0x68] sm:$0xff]
    %v1978 = vld [vmem:[#allocation13 + $0x70] sm:$0xff]
    %v1979 = vld [vmem:[#allocation13 + $0x78] sm:$0xff]
    %v1980 = vld [vmem:[#allocation13 + $0x80] sm:$0xff]
    %v1981 = vld [vmem:[#allocation13 + $0x88] sm:$0xff]
    %v1982 = vld [vmem:[#allocation13 + $0x90] sm:$0xff]
    %v1983 = vld [vmem:[#allocation13 + $0x98] sm:$0xff]
    %v1984 = vld [vmem:[#allocation13 + $0xa0] sm:$0xff]
    %v1985 = vld [vmem:[#allocation13 + $0xa8] sm:$0xff]
    %v1986 = vld [vmem:[#allocation13 + $0xb0] sm:$0xff]
    %v1987 = vld [vmem:[#allocation13 + $0xb8] sm:$0xff]
    %v1988 = vld [vmem:[#allocation13 + $0xc0] sm:$0xff]
    %v1989 = vld [vmem:[#allocation13 + $0xc8] sm:$0xff]
    %v1990 = vld [vmem:[#allocation13 + $0xd0] sm:$0xff]
    %v1991 = vld [vmem:[#allocation13 + $0xd8] sm:$0xff]
    %v1992 = vld [vmem:[#allocation13 + $0xe0] sm:$0xff]
    %v1993 = vld [vmem:[#allocation13 + $0xe8] sm:$0xff]
    %v1994 = vld [vmem:[#allocation13 + $0xf0] sm:$0xff]
    %v1995 = vld [vmem:[#allocation13 + $0xf8] sm:$0xff]
    %v1996 = vld [vmem:[#allocation13 + $0x100] sm:$0xff]
    %v1997 = vld [vmem:[#allocation13 + $0x108] sm:$0xff]
    %v1998 = vld [vmem:[#allocation13 + $0x110] sm:$0xff]
    %v1999 = vld [vmem:[#allocation13 + $0x118] sm:$0xff]
    %v2000 = vld [vmem:[#allocation13 + $0x120] sm:$0xff]
    %v2001 = vld [vmem:[#allocation13 + $0x128] sm:$0xff]
    %v2002 = vld [vmem:[#allocation13 + $0x130] sm:$0xff]
    %v2003 = vld [vmem:[#allocation13 + $0x138] sm:$0xff]
    %v2004 = vld [vmem:[#allocation13 + $0x140] sm:$0xff]
    %v2005 = vld [vmem:[#allocation13 + $0x148] sm:$0xff]
    %v2006 = vld [vmem:[#allocation13 + $0x150] sm:$0xff]
    %v2007 = vld [vmem:[#allocation13 + $0x158] sm:$0xff]
    %v2008 = vld [vmem:[#allocation13 + $0x160] sm:$0xff]
    %v2009 = vld [vmem:[#allocation13 + $0x168] sm:$0xff]
    %v2010 = vld [vmem:[#allocation13 + $0x170] sm:$0xff]
    %v2011 = vld [vmem:[#allocation13 + $0x178] sm:$0xff]
    %v2012 = vld [vmem:[#allocation13 + $0x180] sm:$0xff]
    %v2013 = vld [vmem:[#allocation13 + $0x188] sm:$0xff]
    %v2014 = vld [vmem:[#allocation13 + $0x190] sm:$0xff]
    %v2015 = vld [vmem:[#allocation13 + $0x198] sm:$0xff]
    %v2016 = vld [vmem:[#allocation13 + $0x1a0] sm:$0xff]
    %v2017 = vld [vmem:[#allocation13 + $0x1a8] sm:$0xff]
    %v2018 = vld [vmem:[#allocation13 + $0x1b0] sm:$0xff]
    %v2019 = vld [vmem:[#allocation13 + $0x1b8] sm:$0xff]
    %v2020 = vld [vmem:[#allocation13 + $0x1c0] sm:$0xff]
    %v2021 = vld [vmem:[#allocation13 + $0x1c8] sm:$0xff]
    %v2022 = vld [vmem:[#allocation13 + $0x1d0] sm:$0xff]
    %v2023 = vld [vmem:[#allocation13 + $0x1d8] sm:$0xff]
    %v2024 = vld [vmem:[#allocation13 + $0x1e0] sm:$0xff]
    %v2025 = vld [vmem:[#allocation13 + $0x1e8] sm:$0xff]
    %v2026 = vld [vmem:[#allocation13 + $0x1f0] sm:$0xff]
    %v2027 = vld [vmem:[#allocation13 + $0x1f8] sm:$0xff]
    %v2028 = vld [vmem:[%s11] sm:$0x3]
    %v2030 = vperm.slane %v2028, 0
    %v2031 = vperm.slane %v2028, 1
    %2035 = vst [vmem:[#allocation1] ss:$4 sm:$0xff] %v1963
    %v2036 = vld.sshfl [vmem:[#allocation1] sm:$0xff pattern:$0x73625140]
    %v2037 = vld.sshfl [vmem:[#allocation1 + $0x8] sm:$0xff pattern:$0x73625140]
    %2040 = vmatpush.msra.mxu0 %v1994
    %2041 = vmatpush.msra.mxu0 %v1992
    %2042 = vmatpush.msra.mxu0 %v1990
    %2043 = vmatpush.msra.mxu0 %v1988
    %2044 = vmatpush.msra.mxu0 %v1986
    %2045 = vmatpush.msra.mxu0 %v1984
    %2046 = vmatpush.msra.mxu0 %v1982
    %2047 = vmatpush.msra.mxu0 %v1980
    %2048 = vmatpush.msra.mxu0 %v1978
    %2049 = vmatpush.msra.mxu0 %v1976
    %2050 = vmatpush.msra.mxu0 %v1974
    %2051 = vmatpush.msra.mxu0 %v1972
    %2052 = vmatpush.msra.mxu0 %v1970
    %2053 = vmatpush.msra.mxu0 %v1968
    %2054 = vmatpush.msra.mxu0 %v1966
    %2055 = vmatpush.msra.mxu0 %v1964
    %2056 = vmatmul.f32.gmra.mxu0 %v2036
    %v2057 = vpop.f32.mrf.mxu0
    %v2058 = vadd.f32 %v2030, %v2057
    %2059 = vdwg.mxu0
    %2060 = vmatpush.msra.mxu0 %v2026
    %2061 = vmatpush.msra.mxu0 %v2024
    %2062 = vmatpush.msra.mxu0 %v2022
    %2063 = vmatpush.msra.mxu0 %v2020
    %2064 = vmatpush.msra.mxu0 %v2018
    %2065 = vmatpush.msra.mxu0 %v2016
    %2066 = vmatpush.msra.mxu0 %v2014
    %2067 = vmatpush.msra.mxu0 %v2012
    %2068 = vmatpush.msra.mxu0 %v2010
    %2069 = vmatpush.msra.mxu0 %v2008
    %2070 = vmatpush.msra.mxu0 %v2006
    %2071 = vmatpush.msra.mxu0 %v2004
    %2072 = vmatpush.msra.mxu0 %v2002
    %2073 = vmatpush.msra.mxu0 %v2000
    %2074 = vmatpush.msra.mxu0 %v1998
    %2075 = vmatpush.msra.mxu0 %v1996
    %2076 = vmatmul.f32.gmra.mxu0 %v2037
    %v2077 = vpop.f32.mrf.mxu0
    %v2078 = vadd.f32 %v2058, %v2077
    %2079 = vdwg.mxu0
    %2080 = vmatpush.msra.mxu0 %v1995
    %2081 = vmatpush.msra.mxu0 %v1993
    %2082 = vmatpush.msra.mxu0 %v1991
    %2083 = vmatpush.msra.mxu0 %v1989
    %2084 = vmatpush.msra.mxu0 %v1987
    %2085 = vmatpush.msra.mxu0 %v1985
    %2086 = vmatpush.msra.mxu0 %v1983
    %2087 = vmatpush.msra.mxu0 %v1981
    %2088 = vmatpush.msra.mxu0 %v1979
    %2089 = vmatpush.msra.mxu0 %v1977
    %2090 = vmatpush.msra.mxu0 %v1975
    %2091 = vmatpush.msra.mxu0 %v1973
    %2092 = vmatpush.msra.mxu0 %v1971
    %2093 = vmatpush.msra.mxu0 %v1969
    %2094 = vmatpush.msra.mxu0 %v1967
    %2095 = vmatpush.msra.mxu0 %v1965
    %2096 = vmatmul.f32.gmra.mxu0 %v2036
    %v2097 = vpop.f32.mrf.mxu0
    %v2098 = vadd.f32 %v2031, %v2097
    %2099 = vdwg.mxu0
    %2100 = vmatpush.msra.mxu0 %v2027
    %2101 = vmatpush.msra.mxu0 %v2025
    %2102 = vmatpush.msra.mxu0 %v2023
    %2103 = vmatpush.msra.mxu0 %v2021
    %2104 = vmatpush.msra.mxu0 %v2019
    %2105 = vmatpush.msra.mxu0 %v2017
    %2106 = vmatpush.msra.mxu0 %v2015
    %2107 = vmatpush.msra.mxu0 %v2013
    %2108 = vmatpush.msra.mxu0 %v2011
    %2109 = vmatpush.msra.mxu0 %v2009
    %2110 = vmatpush.msra.mxu0 %v2007
    %2111 = vmatpush.msra.mxu0 %v2005
    %2112 = vmatpush.msra.mxu0 %v2003
    %2113 = vmatpush.msra.mxu0 %v2001
    %2114 = vmatpush.msra.mxu0 %v1999
    %2115 = vmatpush.msra.mxu0 %v1997
    %2116 = vmatmul.f32.gmra.mxu0 %v2037
    %v2117 = vpop.f32.mrf.mxu0
    %v2118 = vadd.f32 %v2098, %v2117
    %2119 = vdwg.mxu0
    %v2120 = vmax.f32 %v2078, 0.0
    %v2121 = vmax.f32 %v2118, 0.0
    %v2122 = vld [vmem:[#allocation15] sm:$0xff]
    %v2123 = vld [vmem:[#allocation15 + $0x8] sm:$0xff]
    %v2124 = vld [vmem:[#allocation15 + $0x10] sm:$0xff]
    %v2125 = vld [vmem:[#allocation15 + $0x18] sm:$0xff]
    %v2126 = vld [vmem:[#allocation15 + $0x20] sm:$0xff]
    %v2127 = vld [vmem:[#allocation15 + $0x28] sm:$0xff]
    %v2128 = vld [vmem:[#allocation15 + $0x30] sm:$0xff]
    %v2129 = vld [vmem:[#allocation15 + $0x38] sm:$0xff]
    %v2130 = vld [vmem:[#allocation15 + $0x40] sm:$0xff]
    %v2131 = vld [vmem:[#allocation15 + $0x48] sm:$0xff]
    %v2132 = vld [vmem:[#allocation15 + $0x50] sm:$0xff]
    %v2133 = vld [vmem:[#allocation15 + $0x58] sm:$0xff]
    %v2134 = vld [vmem:[#allocation15 + $0x60] sm:$0xff]
    %v2135 = vld [vmem:[#allocation15 + $0x68] sm:$0xff]
    %v2136 = vld [vmem:[#allocation15 + $0x70] sm:$0xff]
    %v2137 = vld [vmem:[#allocation15 + $0x78] sm:$0xff]
    %v2138 = vld [vmem:[#allocation15 + $0x80] sm:$0xff]
    %v2139 = vld [vmem:[#allocation15 + $0x88] sm:$0xff]
    %v2140 = vld [vmem:[#allocation15 + $0x90] sm:$0xff]
    %v2141 = vld [vmem:[#allocation15 + $0x98] sm:$0xff]
    %v2142 = vld [vmem:[#allocation15 + $0xa0] sm:$0xff]
    %v2143 = vld [vmem:[#allocation15 + $0xa8] sm:$0xff]
    %v2144 = vld [vmem:[#allocation15 + $0xb0] sm:$0xff]
    %v2145 = vld [vmem:[#allocation15 + $0xb8] sm:$0xff]
    %v2146 = vld [vmem:[#allocation15 + $0xc0] sm:$0xff]
    %v2147 = vld [vmem:[#allocation15 + $0xc8] sm:$0xff]
    %v2148 = vld [vmem:[#allocation15 + $0xd0] sm:$0xff]
    %v2149 = vld [vmem:[#allocation15 + $0xd8] sm:$0xff]
    %v2150 = vld [vmem:[#allocation15 + $0xe0] sm:$0xff]
    %v2151 = vld [vmem:[#allocation15 + $0xe8] sm:$0xff]
    %v2152 = vld [vmem:[#allocation15 + $0xf0] sm:$0xff]
    %v2153 = vld [vmem:[#allocation15 + $0xf8] sm:$0xff]
    %v2154 = vld [vmem:[%s13] sm:$0x1]
    %v2156 = vperm.slane %v2154, 0
    %2158 = vmatpush.msra.mxu0 %v2137
    %2159 = vmatpush.msra.mxu0 %v2136
    %2160 = vmatpush.msra.mxu0 %v2135
    %2161 = vmatpush.msra.mxu0 %v2134
    %2162 = vmatpush.msra.mxu0 %v2133
    %2163 = vmatpush.msra.mxu0 %v2132
    %2164 = vmatpush.msra.mxu0 %v2131
    %2165 = vmatpush.msra.mxu0 %v2130
    %2166 = vmatpush.msra.mxu0 %v2129
    %2167 = vmatpush.msra.mxu0 %v2128
    %2168 = vmatpush.msra.mxu0 %v2127
    %2169 = vmatpush.msra.mxu0 %v2126
    %2170 = vmatpush.msra.mxu0 %v2125
    %2171 = vmatpush.msra.mxu0 %v2124
    %2172 = vmatpush.msra.mxu0 %v2123
    %2173 = vmatpush.msra.mxu0 %v2122
    %2174 = vmatmul.f32.gmra.mxu0 %v2120
    %v2175 = vpop.f32.mrf.mxu0
    %v2176 = vadd.f32 %v2156, %v2175
    %2177 = vdwg.mxu0
    %2178 = vmatpush.msra.mxu0 %v2153
    %2179 = vmatpush.msra.mxu0 %v2152
    %2180 = vmatpush.msra.mxu0 %v2151
    %2181 = vmatpush.msra.mxu0 %v2150
    %2182 = vmatpush.msra.mxu0 %v2149
    %2183 = vmatpush.msra.mxu0 %v2148
    %2184 = vmatpush.msra.mxu0 %v2147
    %2185 = vmatpush.msra.mxu0 %v2146
    %2186 = vmatpush.msra.mxu0 %v2145
    %2187 = vmatpush.msra.mxu0 %v2144
    %2188 = vmatpush.msra.mxu0 %v2143
    %2189 = vmatpush.msra.mxu0 %v2142
    %2190 = vmatpush.msra.mxu0 %v2141
    %2191 = vmatpush.msra.mxu0 %v2140
    %2192 = vmatpush.msra.mxu0 %v2139
    %2193 = vmatpush.msra.mxu0 %v2138
    %2194 = vmatmul.f32.gmra.mxu0 %v2121
    %v2195 = vpop.f32.mrf.mxu0
    %v2196 = vadd.f32 %v2176, %v2195
    %2197 = vdwg.mxu0
    %2198 = vst [vmem:[#allocation16] sm:$0x3] %v2196
    // Predicated region
    $region86: #{tpu_custom_call.1} parent=1 // pred_check
      _
    $region87: #{tpu_custom_call.1} parent=1 // pred_check_branch
      %2200 = sbr.rel (0) target = $region89
    $region88: #{tpu_custom_call.1} parent=1 // pred_region
      %2202 = vsyncadd [#allocation6], 0
      %s2204 = sshll.u32 [#allocation16], 4
      %s2205 = int_to_ptr.vmem [resolvable:$true] %s2204
      %s2206 = sshll.u32 %s14, 4
      %s2207 = int_to_ptr.hbm [resolvable:$true] %s2206
      %2209 = dma.vmem_to_hbm [thread:$0]  %s2205, 32, %s2207, [#allocation6]
    $region89: #{tpu_custom_call.1} parent=1 // pred_fallthru
      _
    // Predicated region
    $region90: #{tpu_custom_call.1} parent=1 // pred_check
      _
    $region91: #{tpu_custom_call.1} parent=1 // pred_check_branch
      %2211 = sbr.rel (0) target = $region93
    $region92: #{tpu_custom_call.1} parent=1 // pred_region
      %2213 = dma.done [#allocation6], 32
    $region93: #{tpu_custom_call.1} parent=1 // pred_fallthru
      _
    %2214 = vsyncpa [#allocation5], 1
    %2215 = vsyncpa [#allocation8], 1
    %2216 = vsyncpa [#allocation11], 1
    %2217 = vsyncpa [#allocation14], 1
    %2218 = vsyncpa [#allocation6], 1

</llo_original>
